<compile_context>
chip_gen: v7x
topology: tpu7x:2x2x1
jax: 0.10.0
libtpu: 0.0.40
codegen_flags: <defaults>
</compile_context>

<pallas_src>
import functools
import math

import jax
import jax.numpy as jnp
from jax.experimental import pallas as pl
from jax.experimental.pallas import tpu as pltpu

BN_EPS = 1e-5
CP = 128  # padded channel width (lane-dense)


# ---------------------------------------------------------------------------
# Pallas kernels
# ---------------------------------------------------------------------------
def _conv_kernel(x_ref, w_ref, b_ref, o_ref, *, offs, L, Wo, Wc, relu):
    """Fused conv (sum of shifted-view matmuls) + folded-BN bias (+ ReLU).

    x_ref : (Lx, 128) bf16 flat zero-padded activation (one batch element).
    w_ref : (ntaps, 128, 128) bf16 weights with BN scale folded in.
    b_ref : (1, 128) f32 folded-BN bias.
    o_ref : (L, 128) bf16 flat output (row width Wc, junk columns zeroed).
    """
    acc = jnp.zeros((L, o_ref.shape[-1]), jnp.float32)
    for t, off in enumerate(offs):
        acc = acc + jnp.dot(x_ref[off:off + L, :], w_ref[t],
                            preferred_element_type=jnp.float32)
    y = acc + b_ref[...]
    if relu:
        y = jnp.maximum(y, 0.0)
    col = jax.lax.broadcasted_iota(jnp.int32, (L, 1), 0) % Wc
    y = jnp.where(col < Wo, y, 0.0)
    o_ref[...] = y.astype(o_ref.dtype)


def _resblock_kernel(x_ref, w1_ref, b1_ref, w2_ref, b2_ref, wsc_ref, bsc_ref,
                     o_ref, hpad_ref, *, offs1, off_sc, L, Wo, Wc):
    """Whole residual block fused:
       out = ReLU( conv2_bn( ReLU(conv1_bn(x)) ) + shortcut1x1_bn(x) )."""
    cq = o_ref.shape[-1]
    col = jax.lax.broadcasted_iota(jnp.int32, (L, 1), 0) % Wc
    valid = col < Wo

    # conv1 (+ folded BN1) + ReLU
    acc1 = jnp.zeros((L, cq), jnp.float32)
    for t, off in enumerate(offs1):
        acc1 = acc1 + jnp.dot(x_ref[off:off + L, :], w1_ref[t],
                              preferred_element_type=jnp.float32)
    h = jnp.where(valid, jnp.maximum(acc1 + b1_ref[...], 0.0), 0.0)

    # zero-padded intermediate in VMEM scratch (flat layout, row width Wc)
    hpad_ref[...] = jnp.zeros(hpad_ref.shape, hpad_ref.dtype)
    hpad_ref[Wc + 1:Wc + 1 + L, :] = h.astype(hpad_ref.dtype)

    # conv2 (+ folded BN2), stride 1 on the intermediate
    acc2 = jnp.zeros((L, cq), jnp.float32)
    for ky in range(3):
        for kx in range(3):
            off = ky * Wc + kx
            acc2 = acc2 + jnp.dot(hpad_ref[off:off + L, :], w2_ref[ky * 3 + kx],
                                  preferred_element_type=jnp.float32)

    # 1x1 shortcut (+ folded BN)
    sc = jnp.dot(x_ref[off_sc:off_sc + L, :], wsc_ref[...],
                 preferred_element_type=jnp.float32)

    out = jnp.maximum(acc2 + b2_ref[...] + sc + bsc_ref[...], 0.0)
    o_ref[...] = jnp.where(valid, out, 0.0).astype(o_ref.dtype)


def _decoder_kernel(x_ref, wc_ref, bc_ref, wf_ref, bf_ref, o_ref):
    """Pooled features -> 1x1 conv (+bias) -> Flatten -> Linear (+bias) -> ReLU."""
    y = jnp.dot(x_ref[...], wc_ref[...],
                preferred_element_type=jnp.float32) + bc_ref[...]
    # TODO(synk): nn.Dropout is identity in inference mode; stochastic dropout not modeled.
    y = jnp.dot(y.astype(jnp.bfloat16), wf_ref[...],
                preferred_element_type=jnp.float32) + bf_ref[...]
    o_ref[...] = jnp.maximum(y, 0.0)


# ---------------------------------------------------------------------------
# Wrapper-side layout glue (cheap, ~1x activation traffic; replaces 9x im2col)
# ---------------------------------------------------------------------------
def _pad_channels(x):
    c = x.shape[-1]
    if c < CP:
        x = jnp.pad(x, [(0, 0)] * (x.ndim - 1) + [(0, CP - c)])
    return x


def _prep_stride1(x):
    """NHWC -> flat zero-padded activation + static tap offsets (stride-1 3x3)."""
    B, H, W, C = x.shape
    Wc = W + 2
    xp = jnp.pad(x, ((0, 0), (1, 2), (1, 1), (0, 0)))      # (B, H+3, W+2, C)
    xf = xp.reshape(B, (H + 3) * Wc, C)
    offs = tuple(ky * Wc + kx for ky in range(3) for kx in range(3))
    off_sc = Wc + 1                                         # 1x1 stride-1 shortcut tap
    return xf, offs, off_sc, H, W, Wc


def _prep_stride2(x):
    """NHWC -> 4-phase (space-to-depth) flat activation + tap offsets (stride-2 3x3)."""
    B, H, W, C = x.shape
    Ho, Wo = H // 2, W // 2                                 # even H, W (true for this net)
    Wc = Wo + 2
    xp = jnp.pad(x, ((0, 0), (1, 3), (1, 3), (0, 0)))       # (B, H+4, W+4, C)
    Lp = (Ho + 2) * Wc
    phases = [xp[:, py::2, px::2, :].reshape(B, Lp, C)
              for py in range(2) for px in range(2)]        # 4 x (B, (Ho+2)*(Wo+2), C)
    xf = jnp.concatenate(phases, axis=1)                    # (B, 4*Lp, C)
    offs = tuple(((ky % 2) * 2 + (kx % 2)) * Lp + (ky // 2) * Wc + (kx // 2)
                 for ky in range(3) for kx in range(3))
    off_sc = 3 * Lp                                         # phase (1,1) == x[2ho, 2wo]
    return xf, offs, off_sc, Ho, Wo, Wc


def _flat_to_nhwc(y, Ho, Wo, Wc):
    B, _, C = y.shape
    return y.reshape(B, Ho, Wc, C)[:, :, :Wo, :]


# ---------------------------------------------------------------------------
# pallas_call wrappers
# ---------------------------------------------------------------------------
def conv_bn_act(x, w, b, relu=True):
    xf, offs, _, Ho, Wo, Wc = _prep_stride1(x)
    B, Lx, _ = xf.shape
    L = Ho * Wc
    kern = functools.partial(_conv_kernel, offs=offs, L=L, Wo=Wo, Wc=Wc, relu=relu)
    flops = 2 * B * L * CP * CP * len(offs)
    nbytes = (B * Lx * CP + int(w.size) + B * L * CP) * 2 + int(b.size) * 4
    out = pl.pallas_call(
        kern,
        out_shape=jax.ShapeDtypeStruct((B, L, CP), jnp.bfloat16),
        grid=(B,),
        in_specs=[
            pl.BlockSpec((None, Lx, CP), lambda i: (i, 0, 0)),
            pl.BlockSpec(tuple(w.shape), lambda i: (0, 0, 0)),
            pl.BlockSpec((1, CP), lambda i: (0, 0)),
        ],
        out_specs=pl.BlockSpec((None, L, CP), lambda i: (i, 0, 0)),
        compiler_params=pltpu.CompilerParams(dimension_semantics=("parallel",)),
        cost_estimate=pl.CostEstimate(flops=flops, transcendentals=0,
                                      bytes_accessed=nbytes),
    )(xf, w, b)
    return _flat_to_nhwc(out, Ho, Wo, Wc)


def residual_block(x, blk):
    if blk["stride"] == (2, 2):
        xf, offs, off_sc, Ho, Wo, Wc = _prep_stride2(x)
    else:
        xf, offs, off_sc, Ho, Wo, Wc = _prep_stride1(x)
    B, Lx, _ = xf.shape
    L = Ho * Wc
    hrows = -(-((Ho + 3) * Wc) // 8) * 8                    # scratch rows, 8-aligned
    kern = functools.partial(_resblock_kernel, offs1=offs, off_sc=off_sc,
                             L=L, Wo=Wo, Wc=Wc)
    flops = 2 * B * L * CP * CP * (9 + 9 + 1)
    nbytes = ((B * Lx * CP + B * L * CP) * 2
              + (int(blk["w1"].size) + int(blk["w2"].size) + int(blk["wsc"].size)) * 2
              + (int(blk["b1"].size) + int(blk["b2"].size) + int(blk["bsc"].size)) * 4)
    out = pl.pallas_call(
        kern,
        out_shape=jax.ShapeDtypeStruct((B, L, CP), jnp.bfloat16),
        grid=(B,),
        in_specs=[
            pl.BlockSpec((None, Lx, CP), lambda i: (i, 0, 0)),
            pl.BlockSpec((9, CP, CP), lambda i: (0, 0, 0)),
            pl.BlockSpec((1, CP), lambda i: (0, 0)),
            pl.BlockSpec((9, CP, CP), lambda i: (0, 0, 0)),
            pl.BlockSpec((1, CP), lambda i: (0, 0)),
            pl.BlockSpec((CP, CP), lambda i: (0, 0)),
            pl.BlockSpec((1, CP), lambda i: (0, 0)),
        ],
        out_specs=pl.BlockSpec((None, L, CP), lambda i: (i, 0, 0)),
        scratch_shapes=[pltpu.VMEM((hrows, CP), jnp.bfloat16)],
        compiler_params=pltpu.CompilerParams(dimension_semantics=("parallel",)),
        cost_estimate=pl.CostEstimate(flops=flops, transcendentals=0,
                                      bytes_accessed=nbytes),
    )(xf, blk["w1"], blk["b1"], blk["w2"], blk["b2"], blk["wsc"], blk["bsc"])
    return _flat_to_nhwc(out, Ho, Wo, Wc)


def decoder_forward(x, p):
    B, H, W, C = x.shape
    # AvgPool2d(kernel=2, stride=2) — tiny reduction, kept as JAX glue.
    xp = x.astype(jnp.float32).reshape(B, H // 2, 2, W // 2, 2, C).mean(axis=(2, 4))
    xp = xp.reshape(B, C).astype(jnp.bfloat16)  # spatial is 1x1 here -> Flatten is trivial
    flops = 2 * B * CP * CP * 2
    nbytes = (int(xp.size) + int(p["dec_wc"].size) + int(p["fc_w"].size)) * 2 \
        + (int(p["dec_bc"].size) + int(p["fc_b"].size)) * 4 + B * CP * 4
    y = pl.pallas_call(
        _decoder_kernel,
        out_shape=jax.ShapeDtypeStruct((B, CP), jnp.float32),
        grid=(1,),
        in_specs=[
            pl.BlockSpec((B, CP), lambda i: (0, 0)),
            pl.BlockSpec((CP, CP), lambda i: (0, 0)),
            pl.BlockSpec((1, CP), lambda i: (0, 0)),
            pl.BlockSpec((CP, CP), lambda i: (0, 0)),
            pl.BlockSpec((1, CP), lambda i: (0, 0)),
        ],
        out_specs=pl.BlockSpec((B, CP), lambda i: (0, 0)),
        cost_estimate=pl.CostEstimate(flops=flops, transcendentals=0,
                                      bytes_accessed=nbytes),
    )(xp, p["dec_wc"], p["dec_bc"], p["fc_w"], p["fc_b"])
    return y


# ---------------------------------------------------------------------------
# Parameter construction (matches the PyTorch module shapes / init_weights)
# ---------------------------------------------------------------------------
def _conv_w(key, kh, kw, cin, cout):
    std = math.sqrt(2.0 / (kh * kw * cout))   # init_weights: normal(0, sqrt(2/(k*k*cout)))
    return jax.random.normal(key, (kh, kw, cin, cout), jnp.float32) * std


def _bn_params(c):
    # eval-mode BatchNorm with default init: weight=1, bias=0, running mean=0, var=1
    return (jnp.ones((c,), jnp.float32), jnp.zeros((c,), jnp.float32),
            jnp.zeros((c,), jnp.float32), jnp.ones((c,), jnp.float32))


def _fold_pad_conv(w, bn):
    """Fold eval-mode BN into conv weights; zero-pad channels to 128; bf16 W, f32 bias."""
    gamma, beta, mean, var = bn
    scale = gamma / jnp.sqrt(var + BN_EPS)
    bias = beta - mean * scale
    kh, kw, cin, cout = w.shape
    wf = w * scale.reshape(1, 1, 1, cout)
    wf = jnp.pad(wf, ((0, 0), (0, 0), (0, CP - cin), (0, CP - cout)))
    wf = wf.reshape(kh * kw, CP, CP).astype(jnp.bfloat16)
    bf = jnp.pad(bias, (0, CP - cout)).reshape(1, CP).astype(jnp.float32)
    return wf, bf


def init_resnet_params(key, in_channels, out_features,
                       blocks_size=(8, 16, 32, 64), depths=(1, 1, 1, 1),
                       expansion=1):
    keys = iter(jax.random.split(key, 64))
    p = {"out_features": out_features}

    # encoder gate: conv3x3 -> BN -> ReLU
    p["gate_w"], p["gate_b"] = _fold_pad_conv(
        _conv_w(next(keys), 3, 3, in_channels, blocks_size[0]),
        _bn_params(blocks_size[0]))

    # encoder residual layers
    layers = []
    layer_io = [(blocks_size[0], blocks_size[0])] + list(zip(blocks_size, blocks_size[1:]))
    for (cin, cout), n in zip(layer_io, depths):
        blocks = []
        for b in range(n):
            bi = cin if b == 0 else cout
            stride = (2, 2) if (b == 0 and cin != cout) else (1, 1)
            w1, b1 = _fold_pad_conv(_conv_w(next(keys), 3, 3, bi, cout), _bn_params(cout))
            w2, b2 = _fold_pad_conv(_conv_w(next(keys), 3, 3, cout, cout), _bn_params(cout))
            wsc, bsc = _fold_pad_conv(_conv_w(next(keys), 1, 1, bi, cout), _bn_params(cout))
            blocks.append(dict(stride=stride, w1=w1, b1=b1, w2=w2, b2=b2,
                               wsc=wsc.reshape(CP, CP), bsc=bsc))
        layers.append(blocks)
    p["layers"] = layers

    # decoder: AvgPool(2,2) -> conv1x1(bias) -> Dropout -> Flatten -> Linear -> ReLU
    cf = blocks_size[-1]
    ce = int(cf * expansion)
    wc = jax.random.normal(next(keys), (cf, ce), jnp.float32) * 0.05
    bc = jax.random.normal(next(keys), (ce,), jnp.float32) * 0.05
    wf = jax.random.normal(next(keys), (ce, out_features), jnp.float32) * 0.05
    bf = jax.random.normal(next(keys), (out_features,), jnp.float32) * 0.05
    p["dec_wc"] = jnp.pad(wc, ((0, CP - cf), (0, CP - ce))).astype(jnp.bfloat16)
    p["dec_bc"] = jnp.pad(bc, (0, CP - ce)).reshape(1, CP).astype(jnp.float32)
    p["fc_w"] = jnp.pad(wf, ((0, CP - ce), (0, CP - out_features))).astype(jnp.bfloat16)
    p["fc_b"] = jnp.pad(bf, (0, CP - out_features)).reshape(1, CP).astype(jnp.float32)
    return p


# ---------------------------------------------------------------------------
# Forward pass
# ---------------------------------------------------------------------------
def resnet_forward(params, x_nchw):
    # NCHW (PyTorch) -> NHWC, zero-pad channels to 128 (lane-dense), bf16 activations
    x = jnp.transpose(x_nchw, (0, 2, 3, 1)).astype(jnp.float32)
    x = _pad_channels(x).astype(jnp.bfloat16)

    # encoder
    x = conv_bn_act(x, params["gate_w"], params["gate_b"], relu=True)
    for layer in params["layers"]:
        for blk in layer:
            x = residual_block(x, blk)

    # decoder
    y = decoder_forward(x, params)
    return y[:, :params["out_features"]]


# ---------------------------------------------------------------------------
if __name__ == "__main__":
    key = jax.random.PRNGKey(0)
    k_x, k_p = jax.random.split(key)

    B, C_in, H, W = 2, 4, 16, 16
    out_features = 10
    x = jax.random.normal(k_x, (B, C_in, H, W), jnp.float32)  # NCHW like PyTorch

    params = init_resnet_params(
        k_p, in_channels=C_in, out_features=out_features,
        blocks_size=(8, 16, 32, 64), depths=(1, 1, 1, 1), expansion=1)

    y = resnet_forward(params, x)
    y = jax.block_until_ready(y)
    assert y.shape == (B, out_features)
    assert bool(jnp.all(y >= 0.0))  # final ReLU
    print("KERNEL_OK")
</pallas_src>

<mosaic_0001>
module attributes {stable_mosaic.version = 11 : i64} {
  func.func @_conv_kernel(%arg0: i32, %arg1: memref<1x342x128xbf16, #tpu.memory_space<vmem>>, %arg2: memref<9x128x128xbf16, #tpu.memory_space<vmem>>, %arg3: memref<1x128xf32, #tpu.memory_space<vmem>>, %arg4: memref<1x288x128xbf16, #tpu.memory_space<vmem>>) attributes {dimension_semantics = [#tpu.dimension_semantics<parallel>], iteration_bounds = array<i64: 2>, scalar_prefetch = 0 : i64, scratch_operands = 0 : i64, tpu.core_type = #tpu.core_type<tc>, window_params = [{transform_indices = @transform_0, window_bounds = array<i64: 1, 342, 128>}, {pipeline_mode = #tpu.pipeline_mode<synchronous>, transform_indices = @transform_1, window_bounds = array<i64: 9, 128, 128>}, {pipeline_mode = #tpu.pipeline_mode<synchronous>, transform_indices = @transform_2, window_bounds = array<i64: 1, 128>}, {transform_indices = @transform_3, window_bounds = array<i64: 1, 288, 128>}]} {
    %cst = arith.constant 0.000000e+00 : f32
    %0 = vector.broadcast %cst : f32 to vector<288x128xf32>
    %c0 = arith.constant 0 : index
    %c0_0 = arith.constant 0 : index
    %c0_1 = arith.constant 0 : index
    %1 = vector.load %arg1[%c0, %c0_0, %c0_1] : memref<1x342x128xbf16, #tpu.memory_space<vmem>>, vector<1x288x128xbf16>
    %2 = vector.shape_cast %1 : vector<1x288x128xbf16> to vector<288x128xbf16>
    %c0_2 = arith.constant 0 : index
    %c0_3 = arith.constant 0 : index
    %c0_4 = arith.constant 0 : index
    %3 = vector.load %arg2[%c0_2, %c0_3, %c0_4] : memref<9x128x128xbf16, #tpu.memory_space<vmem>>, vector<1x128x128xbf16>
    %4 = vector.shape_cast %3 : vector<1x128x128xbf16> to vector<128x128xbf16>
    %cst_5 = arith.constant dense<0.000000e+00> : vector<288x128xf32>
    %5 = tpu.matmul %2, %4, %cst_5 {dimension_numbers = #tpu.dot_dimension_numbers<[1], [0], [0], [1], [0, 0, 1, 1], [], []>} : vector<288x128xbf16>, vector<128x128xbf16>, vector<288x128xf32> -> vector<288x128xf32>
    %6 = arith.addf %0, %5 : vector<288x128xf32>
    %c0_6 = arith.constant 0 : index
    %c1 = arith.constant 1 : index
    %c0_7 = arith.constant 0 : index
    %7 = vector.load %arg1[%c0_6, %c1, %c0_7] : memref<1x342x128xbf16, #tpu.memory_space<vmem>>, vector<1x288x128xbf16>
    %8 = vector.shape_cast %7 : vector<1x288x128xbf16> to vector<288x128xbf16>
    %c1_8 = arith.constant 1 : index
    %c0_9 = arith.constant 0 : index
    %c0_10 = arith.constant 0 : index
    %9 = vector.load %arg2[%c1_8, %c0_9, %c0_10] : memref<9x128x128xbf16, #tpu.memory_space<vmem>>, vector<1x128x128xbf16>
    %10 = vector.shape_cast %9 : vector<1x128x128xbf16> to vector<128x128xbf16>
    %cst_11 = arith.constant dense<0.000000e+00> : vector<288x128xf32>
    %11 = tpu.matmul %8, %10, %cst_11 {dimension_numbers = #tpu.dot_dimension_numbers<[1], [0], [0], [1], [0, 0, 1, 1], [], []>} : vector<288x128xbf16>, vector<128x128xbf16>, vector<288x128xf32> -> vector<288x128xf32>
    %12 = arith.addf %6, %11 : vector<288x128xf32>
    %c0_12 = arith.constant 0 : index
    %c2 = arith.constant 2 : index
    %c0_13 = arith.constant 0 : index
    %13 = vector.load %arg1[%c0_12, %c2, %c0_13] : memref<1x342x128xbf16, #tpu.memory_space<vmem>>, vector<1x288x128xbf16>
    %14 = vector.shape_cast %13 : vector<1x288x128xbf16> to vector<288x128xbf16>
    %c2_14 = arith.constant 2 : index
    %c0_15 = arith.constant 0 : index
    %c0_16 = arith.constant 0 : index
    %15 = vector.load %arg2[%c2_14, %c0_15, %c0_16] : memref<9x128x128xbf16, #tpu.memory_space<vmem>>, vector<1x128x128xbf16>
    %16 = vector.shape_cast %15 : vector<1x128x128xbf16> to vector<128x128xbf16>
    %cst_17 = arith.constant dense<0.000000e+00> : vector<288x128xf32>
    %17 = tpu.matmul %14, %16, %cst_17 {dimension_numbers = #tpu.dot_dimension_numbers<[1], [0], [0], [1], [0, 0, 1, 1], [], []>} : vector<288x128xbf16>, vector<128x128xbf16>, vector<288x128xf32> -> vector<288x128xf32>
    %18 = arith.addf %12, %17 : vector<288x128xf32>
    %c0_18 = arith.constant 0 : index
    %c18 = arith.constant 18 : index
    %c0_19 = arith.constant 0 : index
    %19 = vector.load %arg1[%c0_18, %c18, %c0_19] : memref<1x342x128xbf16, #tpu.memory_space<vmem>>, vector<1x288x128xbf16>
    %20 = vector.shape_cast %19 : vector<1x288x128xbf16> to vector<288x128xbf16>
    %c3 = arith.constant 3 : index
    %c0_20 = arith.constant 0 : index
    %c0_21 = arith.constant 0 : index
    %21 = vector.load %arg2[%c3, %c0_20, %c0_21] : memref<9x128x128xbf16, #tpu.memory_space<vmem>>, vector<1x128x128xbf16>
    %22 = vector.shape_cast %21 : vector<1x128x128xbf16> to vector<128x128xbf16>
    %cst_22 = arith.constant dense<0.000000e+00> : vector<288x128xf32>
    %23 = tpu.matmul %20, %22, %cst_22 {dimension_numbers = #tpu.dot_dimension_numbers<[1], [0], [0], [1], [0, 0, 1, 1], [], []>} : vector<288x128xbf16>, vector<128x128xbf16>, vector<288x128xf32> -> vector<288x128xf32>
    %24 = arith.addf %18, %23 : vector<288x128xf32>
    %c0_23 = arith.constant 0 : index
    %c19 = arith.constant 19 : index
    %c0_24 = arith.constant 0 : index
    %25 = vector.load %arg1[%c0_23, %c19, %c0_24] : memref<1x342x128xbf16, #tpu.memory_space<vmem>>, vector<1x288x128xbf16>
    %26 = vector.shape_cast %25 : vector<1x288x128xbf16> to vector<288x128xbf16>
    %c4 = arith.constant 4 : index
    %c0_25 = arith.constant 0 : index
    %c0_26 = arith.constant 0 : index
    %27 = vector.load %arg2[%c4, %c0_25, %c0_26] : memref<9x128x128xbf16, #tpu.memory_space<vmem>>, vector<1x128x128xbf16>
    %28 = vector.shape_cast %27 : vector<1x128x128xbf16> to vector<128x128xbf16>
    %cst_27 = arith.constant dense<0.000000e+00> : vector<288x128xf32>
    %29 = tpu.matmul %26, %28, %cst_27 {dimension_numbers = #tpu.dot_dimension_numbers<[1], [0], [0], [1], [0, 0, 1, 1], [], []>} : vector<288x128xbf16>, vector<128x128xbf16>, vector<288x128xf32> -> vector<288x128xf32>
    %30 = arith.addf %24, %29 : vector<288x128xf32>
    %c0_28 = arith.constant 0 : index
    %c20 = arith.constant 20 : index
    %c0_29 = arith.constant 0 : index
    %31 = vector.load %arg1[%c0_28, %c20, %c0_29] : memref<1x342x128xbf16, #tpu.memory_space<vmem>>, vector<1x288x128xbf16>
    %32 = vector.shape_cast %31 : vector<1x288x128xbf16> to vector<288x128xbf16>
    %c5 = arith.constant 5 : index
    %c0_30 = arith.constant 0 : index
    %c0_31 = arith.constant 0 : index
    %33 = vector.load %arg2[%c5, %c0_30, %c0_31] : memref<9x128x128xbf16, #tpu.memory_space<vmem>>, vector<1x128x128xbf16>
    %34 = vector.shape_cast %33 : vector<1x128x128xbf16> to vector<128x128xbf16>
    %cst_32 = arith.constant dense<0.000000e+00> : vector<288x128xf32>
    %35 = tpu.matmul %32, %34, %cst_32 {dimension_numbers = #tpu.dot_dimension_numbers<[1], [0], [0], [1], [0, 0, 1, 1], [], []>} : vector<288x128xbf16>, vector<128x128xbf16>, vector<288x128xf32> -> vector<288x128xf32>
    %36 = arith.addf %30, %35 : vector<288x128xf32>
    %c0_33 = arith.constant 0 : index
    %c36 = arith.constant 36 : index
    %c0_34 = arith.constant 0 : index
    %37 = vector.load %arg1[%c0_33, %c36, %c0_34] : memref<1x342x128xbf16, #tpu.memory_space<vmem>>, vector<1x288x128xbf16>
    %38 = vector.shape_cast %37 : vector<1x288x128xbf16> to vector<288x128xbf16>
    %c6 = arith.constant 6 : index
    %c0_35 = arith.constant 0 : index
    %c0_36 = arith.constant 0 : index
    %39 = vector.load %arg2[%c6, %c0_35, %c0_36] : memref<9x128x128xbf16, #tpu.memory_space<vmem>>, vector<1x128x128xbf16>
    %40 = vector.shape_cast %39 : vector<1x128x128xbf16> to vector<128x128xbf16>
    %cst_37 = arith.constant dense<0.000000e+00> : vector<288x128xf32>
    %41 = tpu.matmul %38, %40, %cst_37 {dimension_numbers = #tpu.dot_dimension_numbers<[1], [0], [0], [1], [0, 0, 1, 1], [], []>} : vector<288x128xbf16>, vector<128x128xbf16>, vector<288x128xf32> -> vector<288x128xf32>
    %42 = arith.addf %36, %41 : vector<288x128xf32>
    %c0_38 = arith.constant 0 : index
    %c37 = arith.constant 37 : index
    %c0_39 = arith.constant 0 : index
    %43 = vector.load %arg1[%c0_38, %c37, %c0_39] : memref<1x342x128xbf16, #tpu.memory_space<vmem>>, vector<1x288x128xbf16>
    %44 = vector.shape_cast %43 : vector<1x288x128xbf16> to vector<288x128xbf16>
    %c7 = arith.constant 7 : index
    %c0_40 = arith.constant 0 : index
    %c0_41 = arith.constant 0 : index
    %45 = vector.load %arg2[%c7, %c0_40, %c0_41] : memref<9x128x128xbf16, #tpu.memory_space<vmem>>, vector<1x128x128xbf16>
    %46 = vector.shape_cast %45 : vector<1x128x128xbf16> to vector<128x128xbf16>
    %cst_42 = arith.constant dense<0.000000e+00> : vector<288x128xf32>
    %47 = tpu.matmul %44, %46, %cst_42 {dimension_numbers = #tpu.dot_dimension_numbers<[1], [0], [0], [1], [0, 0, 1, 1], [], []>} : vector<288x128xbf16>, vector<128x128xbf16>, vector<288x128xf32> -> vector<288x128xf32>
    %48 = arith.addf %42, %47 : vector<288x128xf32>
    %c0_43 = arith.constant 0 : index
    %c38 = arith.constant 38 : index
    %c0_44 = arith.constant 0 : index
    %49 = vector.load %arg1[%c0_43, %c38, %c0_44] : memref<1x342x128xbf16, #tpu.memory_space<vmem>>, vector<1x288x128xbf16>
    %50 = vector.shape_cast %49 : vector<1x288x128xbf16> to vector<288x128xbf16>
    %c8 = arith.constant 8 : index
    %c0_45 = arith.constant 0 : index
    %c0_46 = arith.constant 0 : index
    %51 = vector.load %arg2[%c8, %c0_45, %c0_46] : memref<9x128x128xbf16, #tpu.memory_space<vmem>>, vector<1x128x128xbf16>
    %52 = vector.shape_cast %51 : vector<1x128x128xbf16> to vector<128x128xbf16>
    %cst_47 = arith.constant dense<0.000000e+00> : vector<288x128xf32>
    %53 = tpu.matmul %50, %52, %cst_47 {dimension_numbers = #tpu.dot_dimension_numbers<[1], [0], [0], [1], [0, 0, 1, 1], [], []>} : vector<288x128xbf16>, vector<128x128xbf16>, vector<288x128xf32> -> vector<288x128xf32>
    %54 = arith.addf %48, %53 : vector<288x128xf32>
    %c0_48 = arith.constant 0 : index
    %c0_49 = arith.constant 0 : index
    %55 = vector.load %arg3[%c0_48, %c0_49] : memref<1x128xf32, #tpu.memory_space<vmem>>, vector<1x128xf32>
    %56 = vector.broadcast %55 : vector<1x128xf32> to vector<288x128xf32>
    %57 = arith.addf %54, %56 : vector<288x128xf32>
    %cst_50 = arith.constant 0.000000e+00 : f32
    %58 = vector.broadcast %cst_50 : f32 to vector<288x128xf32>
    %59 = arith.maximumf %57, %58 : vector<288x128xf32>
    %60 = tpu.iota {dimensions = array<i32: 0>} : vector<288x1xi32>
    %c18_i32 = arith.constant 18 : i32
    %c0_i32 = arith.constant 0 : i32
    %61 = arith.cmpi eq, %c18_i32, %c0_i32 : i32
    %c1_i32 = arith.constant 1 : i32
    %62 = arith.select %61, %c1_i32, %c18_i32 : i32
    %63 = vector.broadcast %62 : i32 to vector<288x1xi32>
    %64 = arith.remsi %60, %63 : vector<288x1xi32>
    %c0_i32_51 = arith.constant 0 : i32
    %65 = vector.broadcast %c0_i32_51 : i32 to vector<288x1xi32>
    %66 = arith.cmpi ne, %64, %65 : vector<288x1xi32>
    %c0_i32_52 = arith.constant 0 : i32
    %67 = vector.broadcast %c0_i32_52 : i32 to vector<288x1xi32>
    %68 = arith.cmpi slt, %64, %67 : vector<288x1xi32>
    %c0_i32_53 = arith.constant 0 : i32
    %69 = arith.cmpi slt, %62, %c0_i32_53 : i32
    %70 = vector.broadcast %69 : i1 to vector<288x1xi1>
    %71 = vector.broadcast %70 : vector<288x1xi1> to vector<288x1xi1>
    %72 = arith.xori %68, %71 : vector<288x1xi1>
    %73 = arith.andi %72, %66 : vector<288x1xi1>
    %74 = vector.broadcast %62 : i32 to vector<288x1xi32>
    %75 = arith.addi %64, %74 : vector<288x1xi32>
    %76 = arith.select %73, %75, %64 : vector<288x1xi1>, vector<288x1xi32>
    %c16_i32 = arith.constant 16 : i32
    %77 = vector.broadcast %c16_i32 : i32 to vector<288x1xi32>
    %78 = arith.cmpi slt, %76, %77 : vector<288x1xi32>
    %cst_54 = arith.constant 0.000000e+00 : f32
    %79 = vector.shape_cast %78 : vector<288x1xi1> to vector<288x1xi1>
    %80 = vector.broadcast %79 : vector<288x1xi1> to vector<288x128xi1>
    %81 = vector.broadcast %cst_54 : f32 to vector<288x128xf32>
    %82 = arith.select %80, %59, %81 : vector<288x128xi1>, vector<288x128xf32>
    %83 = arith.truncf %82 : vector<288x128xf32> to vector<288x128xbf16>
    %c0_55 = arith.constant 0 : index
    %c0_56 = arith.constant 0 : index
    %c0_57 = arith.constant 0 : index
    %84 = vector.load %arg4[%c0_55, %c0_56, %c0_57] : memref<1x288x128xbf16, #tpu.memory_space<vmem>>, vector<1x288x128xbf16>
    %85 = vector.shape_cast %84 : vector<1x288x128xbf16> to vector<288x128xbf16>
    %86 = vector.shape_cast %83 : vector<288x128xbf16> to vector<1x288x128xbf16>
    tpu.vector_store %arg4[%c0_55, %c0_56, %c0_57], %86 {strides = array<i32>} : memref<1x288x128xbf16, #tpu.memory_space<vmem>>, vector<1x288x128xbf16>,
    return
  }
  func.func @transform_0(%arg0: i32) -> (i32, i32, i32) {
    %c0_i32 = arith.constant 0 : i32
    %c0_i32_0 = arith.constant 0 : i32
    %c0_i32_1 = arith.constant 0 : i32
    return %arg0, %c0_i32, %c0_i32_0 : i32, i32, i32
  }
  func.func @transform_1(%arg0: i32) -> (i32, i32, i32) {
    %c0_i32 = arith.constant 0 : i32
    %c0_i32_0 = arith.constant 0 : i32
    %c0_i32_1 = arith.constant 0 : i32
    %c0_i32_2 = arith.constant 0 : i32
    return %c0_i32, %c0_i32_0, %c0_i32_1 : i32, i32, i32
  }
  func.func @transform_2(%arg0: i32) -> (i32, i32) {
    %c0_i32 = arith.constant 0 : i32
    %c0_i32_0 = arith.constant 0 : i32
    %c0_i32_1 = arith.constant 0 : i32
    return %c0_i32, %c0_i32_0 : i32, i32
  }
  func.func @transform_3(%arg0: i32) -> (i32, i32, i32) {
    %c0_i32 = arith.constant 0 : i32
    %c0_i32_0 = arith.constant 0 : i32
    %c0_i32_1 = arith.constant 0 : i32
    return %arg0, %c0_i32, %c0_i32_0 : i32, i32, i32
  }
}

</mosaic_0001>

<llo_original>
// kernel: tpu_custom_call.1
$region0: #{tpu_custom_call.1}
  #allocation0 [shape = 'u32[]', space=smem, size = 0x4, offset = 0x4, fixed_abs, tag = 'smem constant byte address 0x4 - core index']
  #allocation1 [shape = 'u32[144,128]{1,0:T(1,128)}', space=vmem, size = 0x12000, scoped, tag = 'internal scratch']
  %s0 = inlined_call_operand.vmem [shape: bf16[2,342,128], index: 0, kind: input, shape index: {}]
  %s1 = inlined_call_operand.vmem [shape: bf16[9,128,128], index: 1, kind: input, shape index: {}]
  %s2 = inlined_call_operand.vmem [shape: f32[1,128], index: 2, kind: input, shape index: {}]
  %s3 = inlined_call_operand.hbm [shape: bf16[2,288,128], index: 3, kind: output, shape index: {}]
  %s4 = sld [smem:[#allocation0]]
  $region45: #{tpu_custom_call.1} parent=0
    _
  %s6 = ssub.s32 1, %s4
  %s7 = scalar_select 0, %s6, %s4
  $region1: #{tpu_custom_call.1} parent=0
    #allocation2 [shape = 'u8[147456]{0}', space=vmem, size = 0x24000, scoped, tag = 'output window, operand 0']
    #allocation3 [shape = 's32[2]{0}', space=sflag, size = 0x8, scoped, tag = 'scoped memory for tpu_custom_call.1']
    %8 = vsyncpa [#allocation3], 0
    %s9 = scalar_lea.sflag [#allocation3], 1
    %10 = vsyncpa %s9, 0
    loop: start=0, step=1, limit=4
    $region2: #{tpu_custom_call.1} parent=1 // loop_pre_header
      _
    $region3: #{tpu_custom_call.1} parent=1 // loop_header
      %s12 = sphi 0, %s16
      %p13 = scmp.ge.s32.totalorder %s12, 4
      %s22 = sphi 0, %s24
      %s25 = sphi 0, %s22
      %s26 = sphi 0, %s25
      %s42 = sphi 0, %s26
      %s46 = sphi 0, %s46
      %s48 = sphi 0, %s46
      %s49 = sphi 0, %s48
      %s63 = sphi 0, %s49
      %s67 = sphi 0, %s67
      %s69 = sphi 0, %s67
      %s70 = sphi 0, %s69
      %s84 = sphi 0, %s70
      %s90 = sphi 0, %s92
      %s93 = sphi 0, %s90
      %s94 = sphi 0, %s93
      %s110 = sphi 0, %s94
    $region4: #{tpu_custom_call.1} parent=1 // loop_header_branch
      %15 = sbr.rel (%p13) target = $region8
    $region5: #{tpu_custom_call.1} parent=1 // loop_body
      %s17 = ssub.s32 %s12, 1
      %s18 = ssub.s32 %s12, 2
      %s19 = sadd.s32 %s12, 1
      %s20 = ssub.s32 %s12, %s19
      %p21 = scmp.eq.s32.totalorder %s20, 0
      %s23 = sadd.s32 %s22, 1
      %s24 = scalar_select %p21, %s22, %s23
      %p27 = pneg %p21
      %p28 = scmp.eq.s32.totalorder %s12, 1
      %p29 = por %p27, %p28
      %p30 = scmp.ne.s32.totalorder %s22, %s25
      %p31 = scmp.eq.s32.totalorder %s12, 0
      %p32 = por %p30, %p31
      %p33 = scmp.ne.s32.totalorder %s22, %s25
      %p34 = scmp.eq.s32.totalorder %s17, 1
      %p35 = por %p33, %p34
      %p36 = scmp.ne.s32.totalorder %s25, %s26
      %p37 = scmp.eq.s32.totalorder %s17, 0
      %p38 = por %p36, %p37
      %p39 = scmp.ne.s32.totalorder %s25, %s26
      %p40 = scmp.eq.s32.totalorder %s18, 1
      %p41 = por %p39, %p40
      %p43 = scmp.ne.s32.totalorder %s26, %s42
      %p44 = scmp.eq.s32.totalorder %s18, 0
      %p45 = por %p43, %p44
      %s47 = sadd.s32 %s46, 1
      %p50 = scmp.eq.s32.totalorder %s12, 1
      %p51 = scmp.ne.s32.totalorder %s46, %s48
      %p52 = scmp.eq.s32.totalorder %s12, 0
      %p53 = por %p51, %p52
      %p54 = scmp.ne.s32.totalorder %s46, %s48
      %p55 = scmp.eq.s32.totalorder %s17, 1
      %p56 = por %p54, %p55
      %p57 = scmp.ne.s32.totalorder %s48, %s49
      %p58 = scmp.eq.s32.totalorder %s17, 0
      %p59 = por %p57, %p58
      %p60 = scmp.ne.s32.totalorder %s48, %s49
      %p61 = scmp.eq.s32.totalorder %s18, 1
      %p62 = por %p60, %p61
      %p64 = scmp.ne.s32.totalorder %s49, %s63
      %p65 = scmp.eq.s32.totalorder %s18, 0
      %p66 = por %p64, %p65
      %s68 = sadd.s32 %s67, 1
      %p71 = scmp.eq.s32.totalorder %s12, 1
      %p72 = scmp.ne.s32.totalorder %s67, %s69
      %p73 = scmp.eq.s32.totalorder %s12, 0
      %p74 = por %p72, %p73
      %p75 = scmp.ne.s32.totalorder %s67, %s69
      %p76 = scmp.eq.s32.totalorder %s17, 1
      %p77 = por %p75, %p76
      %p78 = scmp.ne.s32.totalorder %s69, %s70
      %p79 = scmp.eq.s32.totalorder %s17, 0
      %p80 = por %p78, %p79
      %p81 = scmp.ne.s32.totalorder %s69, %s70
      %p82 = scmp.eq.s32.totalorder %s18, 1
      %p83 = por %p81, %p82
      %p85 = scmp.ne.s32.totalorder %s70, %s84
      %p86 = scmp.eq.s32.totalorder %s18, 0
      %p87 = por %p85, %p86
      %s88 = ssub.s32 %s12, %s19
      %p89 = scmp.eq.s32.totalorder %s88, 0
      %s91 = sadd.s32 %s90, 1
      %s92 = scalar_select %p89, %s90, %s91
      %p95 = pneg %p89
      %p96 = scmp.eq.s32.totalorder %s12, 1
      %p97 = por %p95, %p96
      %p98 = scmp.ne.s32.totalorder %s90, %s93
      %p99 = scmp.eq.s32.totalorder %s12, 0
      %p100 = por %p98, %p99
      %p101 = scmp.ne.s32.totalorder %s90, %s93
      %p102 = scmp.eq.s32.totalorder %s17, 1
      %p103 = por %p101, %p102
      %p104 = scmp.ne.s32.totalorder %s93, %s94
      %p105 = scmp.eq.s32.totalorder %s17, 0
      %p106 = por %p104, %p105
      %p107 = scmp.ne.s32.totalorder %s93, %s94
      %p108 = scmp.eq.s32.totalorder %s18, 1
      %p109 = por %p107, %p108
      %p111 = scmp.ne.s32.totalorder %s94, %s110
      %p112 = scmp.eq.s32.totalorder %s18, 0
      %p113 = por %p111, %p112
      %p114 = scmp.le.s32.totalorder 1, %s12
      %p115 = scmp.lt.s32.totalorder %s12, 3
      %p116 = pnand %p114, %p115
      %p117 = pneg %p116
      // Predicated region
      $region9: #{tpu_custom_call.1} parent=5 // pred_check
        _
      $region10: #{tpu_custom_call.1} parent=5 // pred_check_branch
        %119 = sbr.rel (%p116) target = $region12
      $region11: #{tpu_custom_call.1} parent=5 // pred_region
        %s120 = ssub.s32 %s12, 1
        // Predicated region
        $region13: #{tpu_custom_call.1} parent=11 // pred_check
          %p121 = pneg %p59
        $region14: #{tpu_custom_call.1} parent=11 // pred_check_branch
          %123 = sbr.rel (%p121) target = $region16
        $region15: #{tpu_custom_call.1} parent=11 // pred_region
          _
        $region16: #{tpu_custom_call.1} parent=11 // pred_fallthru
          _
        // Predicated region
        $region17: #{tpu_custom_call.1} parent=11 // pred_check
          %p124 = pneg %p80
        $region18: #{tpu_custom_call.1} parent=11 // pred_check_branch
          %126 = sbr.rel (%p124) target = $region20
        $region19: #{tpu_custom_call.1} parent=11 // pred_region
          _
        $region20: #{tpu_custom_call.1} parent=11 // pred_fallthru
          _
      $region12: #{tpu_custom_call.1} parent=5 // pred_fallthru
        _
      %p127 = scmp.lt.s32.totalorder %s12, 2
      // Predicated region
      $region21: #{tpu_custom_call.1} parent=5 // pred_check
        %p128 = pneg %p127
      $region22: #{tpu_custom_call.1} parent=5 // pred_check_branch
        %130 = sbr.rel (%p128) target = $region24
      $region23: #{tpu_custom_call.1} parent=5 // pred_region
        // Predicated region
        $region25: #{tpu_custom_call.1} parent=23 // pred_check
          %p131 = pneg %p32
        $region26: #{tpu_custom_call.1} parent=23 // pred_check_branch
          %133 = sbr.rel (%p131) target = $region28
        $region27: #{tpu_custom_call.1} parent=23 // pred_region
          %p134 = scmp.lt.s32.totalorder %s12, 1
          %s135 = scalar_select %p134, %s12, 1
          %s136 = smul.addr %s135, 43
          %s137 = smul.addr %s136, 4
          %s138 = scalar_lea.vmem %s0, %s137
        $region28: #{tpu_custom_call.1} parent=23 // pred_fallthru
          _
      $region24: #{tpu_custom_call.1} parent=5 // pred_fallthru
        _
      %p139 = scmp.le.s32.totalorder 1, %s12
      %p140 = scmp.lt.s32.totalorder %s12, 3
      %p141 = pnand %p139, %p140
      %p142 = pneg %p141
      // Predicated region
      $region29: #{tpu_custom_call.1} parent=5 // pred_check
        _
      $region30: #{tpu_custom_call.1} parent=5 // pred_check_branch
        %144 = sbr.rel (%p141) target = $region32
      $region31: #{tpu_custom_call.1} parent=5 // pred_region
        %s145 = ssub.s32 %s12, 1
        %p146 = scmp.lt.s32.totalorder %s17, 1
        %s147 = scalar_select %p146, %s17, 1
        %s148 = smul.addr %s147, 43
        %s149 = smul.addr %s148, 4
        %s150 = scalar_lea.vmem %s0, %s149
        %p151 = pneg %p38
        %p152 = pneg %p35
        %p153 = pneg %p59
        %p154 = pneg %p56
        %p155 = pneg %p80
        %p156 = pneg %p77
        %p157 = pneg %p106
        %p158 = pneg %p103
        %s159 = sand.u32 %s93, 1
        %s160 = scalar_lea.sflag [#allocation3], %s159
        %s161 = sand.u32 %s93, 1
        %s162 = smul.addr %s161, 144
        %s163 = scalar_lea.vmem [#allocation2], %s162
        %p164 = scmp.lt.s32.totalorder %s17, 1
        %s165 = scalar_select %p164, %s17, 1
        %s166 = smul.addr %s165, 43
        %s167 = smul.addr %s166, 4
        %s168 = scalar_lea.vmem %s0, %s167
        %v170 = vld [vmem:[%s168] sm:$0xf]
        %v171 = vld [vmem:[%s168 + $0x4] sm:$0xf]
        %v172 = vld [vmem:[%s168 + $0x8] sm:$0xf]
        %v173 = vld [vmem:[%s168 + $0xc] sm:$0xf]
        %v174 = vld [vmem:[%s168 + $0x10] sm:$0xf]
        %v175 = vld [vmem:[%s168 + $0x14] sm:$0xf]
        %v176 = vld [vmem:[%s168 + $0x18] sm:$0xf]
        %v177 = vld [vmem:[%s168 + $0x1c] sm:$0xf]
        %v178 = vld [vmem:[%s168 + $0x20] sm:$0xf]
        %v179 = vld [vmem:[%s168 + $0x24] sm:$0xf]
        %v180 = vld [vmem:[%s168 + $0x28] sm:$0xf]
        %v181 = vld [vmem:[%s168 + $0x2c] sm:$0xf]
        %v182 = vld [vmem:[%s168 + $0x30] sm:$0xf]
        %v183 = vld [vmem:[%s168 + $0x34] sm:$0xf]
        %v184 = vld [vmem:[%s168 + $0x38] sm:$0xf]
        %v185 = vld [vmem:[%s168 + $0x3c] sm:$0xf]
        %v186 = vld [vmem:[%s168 + $0x40] sm:$0xf]
        %v187 = vld [vmem:[%s168 + $0x44] sm:$0xf]
        %v188 = vld [vmem:[%s168 + $0x48] sm:$0xf]
        %v189 = vld [vmem:[%s168 + $0x4c] sm:$0xf]
        %v190 = vld [vmem:[%s168 + $0x50] sm:$0xf]
        %v191 = vld [vmem:[%s168 + $0x54] sm:$0xf]
        %v192 = vld [vmem:[%s168 + $0x58] sm:$0xf]
        %v193 = vld [vmem:[%s168 + $0x5c] sm:$0xf]
        %v194 = vld [vmem:[%s168 + $0x60] sm:$0xf]
        %v195 = vld [vmem:[%s168 + $0x64] sm:$0xf]
        %v196 = vld [vmem:[%s168 + $0x68] sm:$0xf]
        %v197 = vld [vmem:[%s168 + $0x6c] sm:$0xf]
        %v198 = vld [vmem:[%s168 + $0x70] sm:$0xf]
        %v199 = vld [vmem:[%s168 + $0x74] sm:$0xf]
        %v200 = vld [vmem:[%s168 + $0x78] sm:$0xf]
        %v201 = vld [vmem:[%s168 + $0x7c] sm:$0xf]
        %v202 = vld [vmem:[%s168 + $0x80] sm:$0xf]
        %v203 = vld [vmem:[%s168 + $0x84] sm:$0xf]
        %v204 = vld [vmem:[%s168 + $0x88] sm:$0xf]
        %v205 = vld [vmem:[%s168 + $0x8c] sm:$0xf]
        %v206 = vld [vmem:[%s1] sm:$0xf]
        %v207 = vld [vmem:[%s1 + $0x4] sm:$0xf]
        %v208 = vld [vmem:[%s1 + $0x8] sm:$0xf]
        %v209 = vld [vmem:[%s1 + $0xc] sm:$0xf]
        %v210 = vld [vmem:[%s1 + $0x10] sm:$0xf]
        %v211 = vld [vmem:[%s1 + $0x14] sm:$0xf]
        %v212 = vld [vmem:[%s1 + $0x18] sm:$0xf]
        %v213 = vld [vmem:[%s1 + $0x1c] sm:$0xf]
        %v214 = vld [vmem:[%s1 + $0x20] sm:$0xf]
        %v215 = vld [vmem:[%s1 + $0x24] sm:$0xf]
        %v216 = vld [vmem:[%s1 + $0x28] sm:$0xf]
        %v217 = vld [vmem:[%s1 + $0x2c] sm:$0xf]
        %v218 = vld [vmem:[%s1 + $0x30] sm:$0xf]
        %v219 = vld [vmem:[%s1 + $0x34] sm:$0xf]
        %v220 = vld [vmem:[%s1 + $0x38] sm:$0xf]
        %v221 = vld [vmem:[%s1 + $0x3c] sm:$0xf]
        %v222 = vld [vmem:[%s168 + $0x90] sm:$0x1]
        %s223 = scalar_lea.vmem %s1, 64
        %v224 = vld [vmem:[%s223] sm:$0xf]
        %v225 = vld [vmem:[%s223 + $0x4] sm:$0xf]
        %v226 = vld [vmem:[%s223 + $0x8] sm:$0xf]
        %v227 = vld [vmem:[%s223 + $0xc] sm:$0xf]
        %v228 = vld [vmem:[%s223 + $0x10] sm:$0xf]
        %v229 = vld [vmem:[%s223 + $0x14] sm:$0xf]
        %v230 = vld [vmem:[%s223 + $0x18] sm:$0xf]
        %v231 = vld [vmem:[%s223 + $0x1c] sm:$0xf]
        %v232 = vld [vmem:[%s223 + $0x20] sm:$0xf]
        %v233 = vld [vmem:[%s223 + $0x24] sm:$0xf]
        %v234 = vld [vmem:[%s223 + $0x28] sm:$0xf]
        %v235 = vld [vmem:[%s223 + $0x2c] sm:$0xf]
        %v236 = vld [vmem:[%s223 + $0x30] sm:$0xf]
        %v237 = vld [vmem:[%s223 + $0x34] sm:$0xf]
        %v238 = vld [vmem:[%s223 + $0x38] sm:$0xf]
        %v239 = vld [vmem:[%s223 + $0x3c] sm:$0xf]
        %v277 = vunpack.c.l.b16 %v170
        %v278 = vunpack.c.l.b16 %v171
        %v279 = vunpack.c.l.b16 %v172
        %v280 = vunpack.c.l.b16 %v173
        %v281 = vunpack.c.l.b16 %v174
        %v282 = vunpack.c.l.b16 %v175
        %v283 = vunpack.c.l.b16 %v176
        %v284 = vunpack.c.l.b16 %v177
        %v285 = vunpack.c.l.b16 %v178
        %v286 = vunpack.c.l.b16 %v179
        %v287 = vunpack.c.l.b16 %v180
        %v288 = vunpack.c.l.b16 %v181
        %v289 = vunpack.c.l.b16 %v182
        %v290 = vunpack.c.l.b16 %v183
        %v291 = vunpack.c.l.b16 %v184
        %v292 = vunpack.c.l.b16 %v185
        %v293 = vunpack.c.l.b16 %v186
        %v294 = vunpack.c.l.b16 %v187
        %v295 = vunpack.c.l.b16 %v188
        %v296 = vunpack.c.l.b16 %v189
        %v297 = vunpack.c.l.b16 %v190
        %v298 = vunpack.c.l.b16 %v191
        %v299 = vunpack.c.l.b16 %v192
        %v300 = vunpack.c.l.b16 %v193
        %v301 = vunpack.c.l.b16 %v194
        %v302 = vunpack.c.l.b16 %v195
        %v303 = vunpack.c.l.b16 %v196
        %v304 = vunpack.c.l.b16 %v197
        %v305 = vunpack.c.l.b16 %v198
        %v306 = vunpack.c.l.b16 %v199
        %v307 = vunpack.c.l.b16 %v200
        %v308 = vunpack.c.l.b16 %v201
        %v309 = vunpack.c.l.b16 %v202
        %v310 = vunpack.c.l.b16 %v203
        %v311 = vunpack.c.l.b16 %v204
        %v312 = vunpack.c.l.b16 %v205
        %v313 = vunpack.c.l.b16 %v222
        %v314 = vpack.c.b16 %v278, %v277
        %v315 = vpack.c.b16 %v280, %v279
        %v316 = vpack.c.b16 %v282, %v281
        %v317 = vpack.c.b16 %v284, %v283
        %v318 = vpack.c.b16 %v286, %v285
        %v319 = vpack.c.b16 %v288, %v287
        %v320 = vpack.c.b16 %v290, %v289
        %v321 = vpack.c.b16 %v292, %v291
        %v322 = vpack.c.b16 %v294, %v293
        %v323 = vpack.c.b16 %v296, %v295
        %v324 = vpack.c.b16 %v298, %v297
        %v325 = vpack.c.b16 %v300, %v299
        %v326 = vpack.c.b16 %v302, %v301
        %v327 = vpack.c.b16 %v304, %v303
        %v328 = vpack.c.b16 %v306, %v305
        %v329 = vpack.c.b16 %v308, %v307
        %v330 = vpack.c.b16 %v310, %v309
        %v331 = vpack.c.b16 %v312, %v311
        %v332 = vpack.c.b16 %v313, %v313
        %vm333 = vsmask.f32 7424
        %v335 = vshrl.u32 %v314, 16
        %v337 = vshll.u32 %v314, 16
        %v339 = vrot.slane %v337, 1
        %v340 = vor.u32 %v335, %v339
        %v342 = vshll.u32 %v315, 16
        %v344 = vrot.slane %v342, 1
        %v345 = vsel %vm333, %v340, %v344
        %v346 = vshrl.u32 %v315, 16
        %v348 = vor.u32 %v346, %v344
        %v350 = vshll.u32 %v316, 16
        %v352 = vrot.slane %v350, 1
        %v353 = vsel %vm333, %v348, %v352
        %v354 = vshrl.u32 %v316, 16
        %v356 = vor.u32 %v354, %v352
        %v358 = vshll.u32 %v317, 16
        %v360 = vrot.slane %v358, 1
        %v361 = vsel %vm333, %v356, %v360
        %v362 = vshrl.u32 %v317, 16
        %v364 = vor.u32 %v362, %v360
        %v366 = vshll.u32 %v318, 16
        %v368 = vrot.slane %v366, 1
        %v369 = vsel %vm333, %v364, %v368
        %v370 = vshrl.u32 %v318, 16
        %v372 = vor.u32 %v370, %v368
        %v374 = vshll.u32 %v319, 16
        %v376 = vrot.slane %v374, 1
        %v377 = vsel %vm333, %v372, %v376
        %v378 = vshrl.u32 %v319, 16
        %v380 = vor.u32 %v378, %v376
        %v382 = vshll.u32 %v320, 16
        %v384 = vrot.slane %v382, 1
        %v385 = vsel %vm333, %v380, %v384
        %v386 = vshrl.u32 %v320, 16
        %v388 = vor.u32 %v386, %v384
        %v390 = vshll.u32 %v321, 16
        %v392 = vrot.slane %v390, 1
        %v393 = vsel %vm333, %v388, %v392
        %v394 = vshrl.u32 %v321, 16
        %v396 = vor.u32 %v394, %v392
        %v398 = vshll.u32 %v322, 16
        %v400 = vrot.slane %v398, 1
        %v401 = vsel %vm333, %v396, %v400
        %v402 = vshrl.u32 %v322, 16
        %v404 = vor.u32 %v402, %v400
        %v406 = vshll.u32 %v323, 16
        %v408 = vrot.slane %v406, 1
        %v409 = vsel %vm333, %v404, %v408
        %v410 = vshrl.u32 %v323, 16
        %v412 = vor.u32 %v410, %v408
        %v414 = vshll.u32 %v324, 16
        %v416 = vrot.slane %v414, 1
        %v417 = vsel %vm333, %v412, %v416
        %v418 = vshrl.u32 %v324, 16
        %v420 = vor.u32 %v418, %v416
        %v422 = vshll.u32 %v325, 16
        %v424 = vrot.slane %v422, 1
        %v425 = vsel %vm333, %v420, %v424
        %v426 = vshrl.u32 %v325, 16
        %v428 = vor.u32 %v426, %v424
        %v430 = vshll.u32 %v326, 16
        %v432 = vrot.slane %v430, 1
        %v433 = vsel %vm333, %v428, %v432
        %v434 = vshrl.u32 %v326, 16
        %v436 = vor.u32 %v434, %v432
        %v438 = vshll.u32 %v327, 16
        %v440 = vrot.slane %v438, 1
        %v441 = vsel %vm333, %v436, %v440
        %v442 = vshrl.u32 %v327, 16
        %v444 = vor.u32 %v442, %v440
        %v446 = vshll.u32 %v328, 16
        %v448 = vrot.slane %v446, 1
        %v449 = vsel %vm333, %v444, %v448
        %v450 = vshrl.u32 %v328, 16
        %v452 = vor.u32 %v450, %v448
        %v454 = vshll.u32 %v329, 16
        %v456 = vrot.slane %v454, 1
        %v457 = vsel %vm333, %v452, %v456
        %v458 = vshrl.u32 %v329, 16
        %v460 = vor.u32 %v458, %v456
        %v462 = vshll.u32 %v330, 16
        %v464 = vrot.slane %v462, 1
        %v465 = vsel %vm333, %v460, %v464
        %v466 = vshrl.u32 %v330, 16
        %v468 = vor.u32 %v466, %v464
        %v470 = vshll.u32 %v331, 16
        %v472 = vrot.slane %v470, 1
        %v473 = vsel %vm333, %v468, %v472
        %v474 = vshrl.u32 %v331, 16
        %v476 = vor.u32 %v474, %v472
        %v478 = vshll.u32 %v332, 16
        %v480 = vrot.slane %v478, 1
        %v481 = vsel %vm333, %v476, %v480
        %v516 = vunpack.c.l.b16 %v224
        %v517 = vunpack.c.l.b16 %v225
        %v518 = vunpack.c.l.b16 %v226
        %v519 = vunpack.c.l.b16 %v227
        %v520 = vunpack.c.l.b16 %v228
        %v521 = vunpack.c.l.b16 %v229
        %v522 = vunpack.c.l.b16 %v230
        %v523 = vunpack.c.l.b16 %v231
        %v524 = vunpack.c.l.b16 %v232
        %v525 = vunpack.c.l.b16 %v233
        %v526 = vunpack.c.l.b16 %v234
        %v527 = vunpack.c.l.b16 %v235
        %v528 = vunpack.c.l.b16 %v236
        %v529 = vunpack.c.l.b16 %v237
        %v530 = vunpack.c.l.b16 %v238
        %v531 = vunpack.c.l.b16 %v239
        %v532 = vpack.c.b16 %v517, %v516
        %v533 = vpack.c.b16 %v519, %v518
        %v534 = vpack.c.b16 %v521, %v520
        %v535 = vpack.c.b16 %v523, %v522
        %v536 = vpack.c.b16 %v525, %v524
        %v537 = vpack.c.b16 %v527, %v526
        %v538 = vpack.c.b16 %v529, %v528
        %v539 = vpack.c.b16 %v531, %v530
        %548 = vmatprep.subr.bf16.mxu0 0
        %549 = vmatpush1.bf16.msra.mxu0 %v532
        %550 = vmatprep.subr.bf16.mxu0 0
        %551 = vmatpush1.bf16.msra.mxu0 %v533
        %552 = vmatprep.subr.bf16.mxu0 0
        %553 = vmatpush1.bf16.msra.mxu0 %v534
        %554 = vmatprep.subr.bf16.mxu0 0
        %555 = vmatpush1.bf16.msra.mxu0 %v535
        %556 = vmatprep.subr.bf16.mxu0 0
        %557 = vmatpush1.bf16.msra.mxu0 %v536
        %558 = vmatprep.subr.bf16.mxu0 0
        %559 = vmatpush1.bf16.msra.mxu0 %v537
        %560 = vmatprep.subr.bf16.mxu0 0
        %561 = vmatpush1.bf16.msra.mxu0 %v538
        %562 = vmatprep.subr.bf16.mxu0 0
        %563 = vmatpush1.bf16.msra.mxu0 %v539
        %564 = vmatprep.subr.bf16.mxu0 0
        %565 = vmatpush1.bf16.msra.mxu0 0
        %566 = vmatprep.subr.bf16.mxu0 0
        %567 = vmatpush1.bf16.msra.mxu0 0
        %568 = vmatprep.subr.bf16.mxu0 0
        %569 = vmatpush1.bf16.msra.mxu0 0
        %570 = vmatprep.subr.bf16.mxu0 0
        %571 = vmatpush1.bf16.msra.mxu0 0
        %572 = vmatprep.subr.bf16.mxu0 0
        %573 = vmatpush1.bf16.msra.mxu0 0
        %574 = vmatprep.subr.bf16.mxu0 0
        %575 = vmatpush1.bf16.msra.mxu0 0
        %576 = vmatprep.subr.bf16.mxu0 0
        %577 = vmatpush1.bf16.msra.mxu0 0
        %578 = vmatprep.subr.bf16.mxu0 0
        %579 = vmatpush1.bf16.msra.mxu0 0
        %580 = vmatprep.mubr.bf16.mxu0 0
        %581 = vmatmul.mubr.bf16.gmra.mrb[0].mxu0 %v345
        %v582 = vpop.f32.mrb[0].mxu0
        %v583 = vadd.f32 0.0, %v582
        %v584 = vpop.f32.mrb[0].mxu0
        %v585 = vpop.f32.mrb[0].mxu0
        %v586 = vadd.f32 0.0, %v585
        %v587 = vpop.f32.mrb[0].mxu0
        %588 = vmatprep.mubr.bf16.mxu0 0
        %589 = vmatmul.mubr.bf16.gmra.mrb[0].mxu0 %v353
        %v590 = vpop.f32.mrb[0].mxu0
        %v591 = vadd.f32 0.0, %v590
        %v592 = vpop.f32.mrb[0].mxu0
        %v593 = vpop.f32.mrb[0].mxu0
        %v594 = vadd.f32 0.0, %v593
        %v595 = vpop.f32.mrb[0].mxu0
        %596 = vmatprep.mubr.bf16.mxu0 0
        %597 = vmatmul.mubr.bf16.gmra.mrb[0].mxu0 %v361
        %v598 = vpop.f32.mrb[0].mxu0
        %v599 = vadd.f32 0.0, %v598
        %v600 = vpop.f32.mrb[0].mxu0
        %v601 = vpop.f32.mrb[0].mxu0
        %v602 = vadd.f32 0.0, %v601
        %v603 = vpop.f32.mrb[0].mxu0
        %604 = vmatprep.mubr.bf16.mxu0 0
        %605 = vmatmul.mubr.bf16.gmra.mrb[0].mxu0 %v369
        %v606 = vpop.f32.mrb[0].mxu0
        %v607 = vadd.f32 0.0, %v606
        %v608 = vpop.f32.mrb[0].mxu0
        %v609 = vpop.f32.mrb[0].mxu0
        %v610 = vadd.f32 0.0, %v609
        %v611 = vpop.f32.mrb[0].mxu0
        %612 = vmatprep.mubr.bf16.mxu0 0
        %613 = vmatmul.mubr.bf16.gmra.mrb[0].mxu0 %v377
        %v614 = vpop.f32.mrb[0].mxu0
        %v615 = vadd.f32 0.0, %v614
        %v616 = vpop.f32.mrb[0].mxu0
        %v617 = vpop.f32.mrb[0].mxu0
        %v618 = vadd.f32 0.0, %v617
        %v619 = vpop.f32.mrb[0].mxu0
        %620 = vmatprep.mubr.bf16.mxu0 0
        %621 = vmatmul.mubr.bf16.gmra.mrb[0].mxu0 %v385
        %v622 = vpop.f32.mrb[0].mxu0
        %v623 = vadd.f32 0.0, %v622
        %v624 = vpop.f32.mrb[0].mxu0
        %v625 = vpop.f32.mrb[0].mxu0
        %v626 = vadd.f32 0.0, %v625
        %v627 = vpop.f32.mrb[0].mxu0
        %628 = vmatprep.mubr.bf16.mxu0 0
        %629 = vmatmul.mubr.bf16.gmra.mrb[0].mxu0 %v393
        %v630 = vpop.f32.mrb[0].mxu0
        %v631 = vadd.f32 0.0, %v630
        %v632 = vpop.f32.mrb[0].mxu0
        %v633 = vpop.f32.mrb[0].mxu0
        %v634 = vadd.f32 0.0, %v633
        %v635 = vpop.f32.mrb[0].mxu0
        %636 = vmatprep.mubr.bf16.mxu0 0
        %637 = vmatmul.mubr.bf16.gmra.mrb[0].mxu0 %v401
        %v638 = vpop.f32.mrb[0].mxu0
        %v639 = vadd.f32 0.0, %v638
        %v640 = vpop.f32.mrb[0].mxu0
        %v641 = vpop.f32.mrb[0].mxu0
        %v642 = vadd.f32 0.0, %v641
        %v643 = vpop.f32.mrb[0].mxu0
        %644 = vmatprep.mubr.bf16.mxu0 0
        %645 = vmatmul.mubr.bf16.gmra.mrb[0].mxu0 %v409
        %v646 = vpop.f32.mrb[0].mxu0
        %v647 = vadd.f32 0.0, %v646
        %v648 = vpop.f32.mrb[0].mxu0
        %v649 = vpop.f32.mrb[0].mxu0
        %v650 = vadd.f32 0.0, %v649
        %v651 = vpop.f32.mrb[0].mxu0
        %652 = vmatprep.mubr.bf16.mxu0 0
        %653 = vmatmul.mubr.bf16.gmra.mrb[0].mxu0 %v417
        %v654 = vpop.f32.mrb[0].mxu0
        %v655 = vadd.f32 0.0, %v654
        %v656 = vpop.f32.mrb[0].mxu0
        %v657 = vpop.f32.mrb[0].mxu0
        %v658 = vadd.f32 0.0, %v657
        %v659 = vpop.f32.mrb[0].mxu0
        %660 = vmatprep.mubr.bf16.mxu0 0
        %661 = vmatmul.mubr.bf16.gmra.mrb[0].mxu0 %v425
        %v662 = vpop.f32.mrb[0].mxu0
        %v663 = vadd.f32 0.0, %v662
        %v664 = vpop.f32.mrb[0].mxu0
        %v665 = vpop.f32.mrb[0].mxu0
        %v666 = vadd.f32 0.0, %v665
        %v667 = vpop.f32.mrb[0].mxu0
        %668 = vmatprep.mubr.bf16.mxu0 0
        %669 = vmatmul.mubr.bf16.gmra.mrb[0].mxu0 %v433
        %v670 = vpop.f32.mrb[0].mxu0
        %v671 = vadd.f32 0.0, %v670
        %v672 = vpop.f32.mrb[0].mxu0
        %v673 = vpop.f32.mrb[0].mxu0
        %v674 = vadd.f32 0.0, %v673
        %v675 = vpop.f32.mrb[0].mxu0
        %676 = vmatprep.mubr.bf16.mxu0 0
        %677 = vmatmul.mubr.bf16.gmra.mrb[0].mxu0 %v441
        %v678 = vpop.f32.mrb[0].mxu0
        %v679 = vadd.f32 0.0, %v678
        %v680 = vpop.f32.mrb[0].mxu0
        %v681 = vpop.f32.mrb[0].mxu0
        %v682 = vadd.f32 0.0, %v681
        %v683 = vpop.f32.mrb[0].mxu0
        %684 = vmatprep.mubr.bf16.mxu0 0
        %685 = vmatmul.mubr.bf16.gmra.mrb[0].mxu0 %v449
        %v686 = vpop.f32.mrb[0].mxu0
        %v687 = vadd.f32 0.0, %v686
        %v688 = vpop.f32.mrb[0].mxu0
        %v689 = vpop.f32.mrb[0].mxu0
        %v690 = vadd.f32 0.0, %v689
        %v691 = vpop.f32.mrb[0].mxu0
        %692 = vmatprep.mubr.bf16.mxu0 0
        %693 = vmatmul.mubr.bf16.gmra.mrb[0].mxu0 %v457
        %v694 = vpop.f32.mrb[0].mxu0
        %v695 = vadd.f32 0.0, %v694
        %v696 = vpop.f32.mrb[0].mxu0
        %v697 = vpop.f32.mrb[0].mxu0
        %v698 = vadd.f32 0.0, %v697
        %v699 = vpop.f32.mrb[0].mxu0
        %700 = vmatprep.mubr.bf16.mxu0 0
        %701 = vmatmul.mubr.bf16.gmra.mrb[0].mxu0 %v465
        %v702 = vpop.f32.mrb[0].mxu0
        %v703 = vadd.f32 0.0, %v702
        %v704 = vpop.f32.mrb[0].mxu0
        %v705 = vpop.f32.mrb[0].mxu0
        %v706 = vadd.f32 0.0, %v705
        %v707 = vpop.f32.mrb[0].mxu0
        %708 = vmatprep.mubr.bf16.mxu0 0
        %709 = vmatmul.mubr.bf16.gmra.mrb[0].mxu0 %v473
        %v710 = vpop.f32.mrb[0].mxu0
        %v711 = vadd.f32 0.0, %v710
        %v712 = vpop.f32.mrb[0].mxu0
        %v713 = vpop.f32.mrb[0].mxu0
        %v714 = vadd.f32 0.0, %v713
        %v715 = vpop.f32.mrb[0].mxu0
        %716 = vmatprep.mubr.bf16.mxu0 0
        %717 = vmatmul.mubr.bf16.gmra.mrb[0].mxu0 %v481
        %v718 = vpop.f32.mrb[0].mxu0
        %v719 = vadd.f32 0.0, %v718
        %v720 = vpop.f32.mrb[0].mxu0
        %v721 = vpop.f32.mrb[0].mxu0
        %v722 = vadd.f32 0.0, %v721
        %v723 = vpop.f32.mrb[0].mxu0
        %724 = vdwg.mxu0
        %v759 = vunpack.c.l.b16 %v206
        %v760 = vunpack.c.l.b16 %v207
        %v761 = vunpack.c.l.b16 %v208
        %v762 = vunpack.c.l.b16 %v209
        %v763 = vunpack.c.l.b16 %v210
        %v764 = vunpack.c.l.b16 %v211
        %v765 = vunpack.c.l.b16 %v212
        %v766 = vunpack.c.l.b16 %v213
        %v767 = vunpack.c.l.b16 %v214
        %v768 = vunpack.c.l.b16 %v215
        %v769 = vunpack.c.l.b16 %v216
        %v770 = vunpack.c.l.b16 %v217
        %v771 = vunpack.c.l.b16 %v218
        %v772 = vunpack.c.l.b16 %v219
        %v773 = vunpack.c.l.b16 %v220
        %v774 = vunpack.c.l.b16 %v221
        %v775 = vpack.c.b16 %v760, %v759
        %v776 = vpack.c.b16 %v762, %v761
        %v777 = vpack.c.b16 %v764, %v763
        %v778 = vpack.c.b16 %v766, %v765
        %v779 = vpack.c.b16 %v768, %v767
        %v780 = vpack.c.b16 %v770, %v769
        %v781 = vpack.c.b16 %v772, %v771
        %v782 = vpack.c.b16 %v774, %v773
        %791 = vmatprep.subr.bf16.mxu0 0
        %792 = vmatpush1.bf16.msra.mxu0 %v775
        %793 = vmatprep.subr.bf16.mxu0 0
        %794 = vmatpush1.bf16.msra.mxu0 %v776
        %795 = vmatprep.subr.bf16.mxu0 0
        %796 = vmatpush1.bf16.msra.mxu0 %v777
        %797 = vmatprep.subr.bf16.mxu0 0
        %798 = vmatpush1.bf16.msra.mxu0 %v778
        %799 = vmatprep.subr.bf16.mxu0 0
        %800 = vmatpush1.bf16.msra.mxu0 %v779
        %801 = vmatprep.subr.bf16.mxu0 0
        %802 = vmatpush1.bf16.msra.mxu0 %v780
        %803 = vmatprep.subr.bf16.mxu0 0
        %804 = vmatpush1.bf16.msra.mxu0 %v781
        %805 = vmatprep.subr.bf16.mxu0 0
        %806 = vmatpush1.bf16.msra.mxu0 %v782
        %807 = vmatprep.subr.bf16.mxu0 0
        %808 = vmatpush1.bf16.msra.mxu0 0
        %809 = vmatprep.subr.bf16.mxu0 0
        %810 = vmatpush1.bf16.msra.mxu0 0
        %811 = vmatprep.subr.bf16.mxu0 0
        %812 = vmatpush1.bf16.msra.mxu0 0
        %813 = vmatprep.subr.bf16.mxu0 0
        %814 = vmatpush1.bf16.msra.mxu0 0
        %815 = vmatprep.subr.bf16.mxu0 0
        %816 = vmatpush1.bf16.msra.mxu0 0
        %817 = vmatprep.subr.bf16.mxu0 0
        %818 = vmatpush1.bf16.msra.mxu0 0
        %819 = vmatprep.subr.bf16.mxu0 0
        %820 = vmatpush1.bf16.msra.mxu0 0
        %821 = vmatprep.subr.bf16.mxu0 0
        %822 = vmatpush1.bf16.msra.mxu0 0
        %823 = vmatprep.mubr.bf16.mxu0 0
        %824 = vmatmul.mubr.bf16.gmra.mrb[0].mxu0 %v314
        %v825 = vpop.f32.mrb[0].mxu0
        %v826 = vadd.f32 %v583, %v825
        %v827 = vpop.f32.mrb[0].mxu0
        %v828 = vpop.f32.mrb[0].mxu0
        %v829 = vadd.f32 %v586, %v828
        %v830 = vpop.f32.mrb[0].mxu0
        %831 = vmatprep.mubr.bf16.mxu0 0
        %832 = vmatmul.mubr.bf16.gmra.mrb[0].mxu0 %v315
        %v833 = vpop.f32.mrb[0].mxu0
        %v834 = vadd.f32 %v591, %v833
        %v835 = vpop.f32.mrb[0].mxu0
        %v836 = vpop.f32.mrb[0].mxu0
        %v837 = vadd.f32 %v594, %v836
        %v838 = vpop.f32.mrb[0].mxu0
        %839 = vmatprep.mubr.bf16.mxu0 0
        %840 = vmatmul.mubr.bf16.gmra.mrb[0].mxu0 %v316
        %v841 = vpop.f32.mrb[0].mxu0
        %v842 = vadd.f32 %v599, %v841
        %v843 = vpop.f32.mrb[0].mxu0
        %v844 = vpop.f32.mrb[0].mxu0
        %v845 = vadd.f32 %v602, %v844
        %v846 = vpop.f32.mrb[0].mxu0
        %847 = vmatprep.mubr.bf16.mxu0 0
        %848 = vmatmul.mubr.bf16.gmra.mrb[0].mxu0 %v317
        %v849 = vpop.f32.mrb[0].mxu0
        %v850 = vadd.f32 %v607, %v849
        %v851 = vpop.f32.mrb[0].mxu0
        %v852 = vpop.f32.mrb[0].mxu0
        %v853 = vadd.f32 %v610, %v852
        %v854 = vpop.f32.mrb[0].mxu0
        %855 = vmatprep.mubr.bf16.mxu0 0
        %856 = vmatmul.mubr.bf16.gmra.mrb[0].mxu0 %v318
        %v857 = vpop.f32.mrb[0].mxu0
        %v858 = vadd.f32 %v615, %v857
        %v859 = vpop.f32.mrb[0].mxu0
        %v860 = vpop.f32.mrb[0].mxu0
        %v861 = vadd.f32 %v618, %v860
        %v862 = vpop.f32.mrb[0].mxu0
        %863 = vmatprep.mubr.bf16.mxu0 0
        %864 = vmatmul.mubr.bf16.gmra.mrb[0].mxu0 %v319
        %v865 = vpop.f32.mrb[0].mxu0
        %v866 = vadd.f32 %v623, %v865
        %v867 = vpop.f32.mrb[0].mxu0
        %v868 = vpop.f32.mrb[0].mxu0
        %v869 = vadd.f32 %v626, %v868
        %v870 = vpop.f32.mrb[0].mxu0
        %871 = vmatprep.mubr.bf16.mxu0 0
        %872 = vmatmul.mubr.bf16.gmra.mrb[0].mxu0 %v320
        %v873 = vpop.f32.mrb[0].mxu0
        %v874 = vadd.f32 %v631, %v873
        %v875 = vpop.f32.mrb[0].mxu0
        %v876 = vpop.f32.mrb[0].mxu0
        %v877 = vadd.f32 %v634, %v876
        %v878 = vpop.f32.mrb[0].mxu0
        %879 = vmatprep.mubr.bf16.mxu0 0
        %880 = vmatmul.mubr.bf16.gmra.mrb[0].mxu0 %v321
        %v881 = vpop.f32.mrb[0].mxu0
        %v882 = vadd.f32 %v639, %v881
        %v883 = vpop.f32.mrb[0].mxu0
        %v884 = vpop.f32.mrb[0].mxu0
        %v885 = vadd.f32 %v642, %v884
        %v886 = vpop.f32.mrb[0].mxu0
        %887 = vmatprep.mubr.bf16.mxu0 0
        %888 = vmatmul.mubr.bf16.gmra.mrb[0].mxu0 %v322
        %v889 = vpop.f32.mrb[0].mxu0
        %v890 = vadd.f32 %v647, %v889
        %v891 = vpop.f32.mrb[0].mxu0
        %v892 = vpop.f32.mrb[0].mxu0
        %v893 = vadd.f32 %v650, %v892
        %v894 = vpop.f32.mrb[0].mxu0
        %895 = vmatprep.mubr.bf16.mxu0 0
        %896 = vmatmul.mubr.bf16.gmra.mrb[0].mxu0 %v323
        %v897 = vpop.f32.mrb[0].mxu0
        %v898 = vadd.f32 %v655, %v897
        %v899 = vpop.f32.mrb[0].mxu0
        %v900 = vpop.f32.mrb[0].mxu0
        %v901 = vadd.f32 %v658, %v900
        %v902 = vpop.f32.mrb[0].mxu0
        %903 = vmatprep.mubr.bf16.mxu0 0
        %904 = vmatmul.mubr.bf16.gmra.mrb[0].mxu0 %v324
        %v905 = vpop.f32.mrb[0].mxu0
        %v906 = vadd.f32 %v663, %v905
        %v907 = vpop.f32.mrb[0].mxu0
        %v908 = vpop.f32.mrb[0].mxu0
        %v909 = vadd.f32 %v666, %v908
        %v910 = vpop.f32.mrb[0].mxu0
        %911 = vmatprep.mubr.bf16.mxu0 0
        %912 = vmatmul.mubr.bf16.gmra.mrb[0].mxu0 %v325
        %v913 = vpop.f32.mrb[0].mxu0
        %v914 = vadd.f32 %v671, %v913
        %v915 = vpop.f32.mrb[0].mxu0
        %v916 = vpop.f32.mrb[0].mxu0
        %v917 = vadd.f32 %v674, %v916
        %v918 = vpop.f32.mrb[0].mxu0
        %919 = vmatprep.mubr.bf16.mxu0 0
        %920 = vmatmul.mubr.bf16.gmra.mrb[0].mxu0 %v326
        %v921 = vpop.f32.mrb[0].mxu0
        %v922 = vadd.f32 %v679, %v921
        %v923 = vpop.f32.mrb[0].mxu0
        %v924 = vpop.f32.mrb[0].mxu0
        %v925 = vadd.f32 %v682, %v924
        %v926 = vpop.f32.mrb[0].mxu0
        %927 = vmatprep.mubr.bf16.mxu0 0
        %928 = vmatmul.mubr.bf16.gmra.mrb[0].mxu0 %v327
        %v929 = vpop.f32.mrb[0].mxu0
        %v930 = vadd.f32 %v687, %v929
        %v931 = vpop.f32.mrb[0].mxu0
        %v932 = vpop.f32.mrb[0].mxu0
        %v933 = vadd.f32 %v690, %v932
        %v934 = vpop.f32.mrb[0].mxu0
        %935 = vmatprep.mubr.bf16.mxu0 0
        %936 = vmatmul.mubr.bf16.gmra.mrb[0].mxu0 %v328
        %v937 = vpop.f32.mrb[0].mxu0
        %v938 = vadd.f32 %v695, %v937
        %v939 = vpop.f32.mrb[0].mxu0
        %v940 = vpop.f32.mrb[0].mxu0
        %v941 = vadd.f32 %v698, %v940
        %v942 = vpop.f32.mrb[0].mxu0
        %943 = vmatprep.mubr.bf16.mxu0 0
        %944 = vmatmul.mubr.bf16.gmra.mrb[0].mxu0 %v329
        %v945 = vpop.f32.mrb[0].mxu0
        %v946 = vadd.f32 %v703, %v945
        %v947 = vpop.f32.mrb[0].mxu0
        %v948 = vpop.f32.mrb[0].mxu0
        %v949 = vadd.f32 %v706, %v948
        %v950 = vpop.f32.mrb[0].mxu0
        %951 = vmatprep.mubr.bf16.mxu0 0
        %952 = vmatmul.mubr.bf16.gmra.mrb[0].mxu0 %v330
        %v953 = vpop.f32.mrb[0].mxu0
        %v954 = vadd.f32 %v711, %v953
        %v955 = vpop.f32.mrb[0].mxu0
        %v956 = vpop.f32.mrb[0].mxu0
        %v957 = vadd.f32 %v714, %v956
        %v958 = vpop.f32.mrb[0].mxu0
        %959 = vmatprep.mubr.bf16.mxu0 0
        %960 = vmatmul.mubr.bf16.gmra.mrb[0].mxu0 %v331
        %v961 = vpop.f32.mrb[0].mxu0
        %v962 = vadd.f32 %v719, %v961
        %v963 = vpop.f32.mrb[0].mxu0
        %v964 = vpop.f32.mrb[0].mxu0
        %v965 = vadd.f32 %v722, %v964
        %v966 = vpop.f32.mrb[0].mxu0
        %967 = vdwg.mxu0
        %v968 = vld [vmem:[%s168] sm:$0xe]
        %s969 = scalar_lea.vmem %s1, 128
        %v970 = vld [vmem:[%s969] sm:$0xf]
        %v971 = vld [vmem:[%s969 + $0x4] sm:$0xf]
        %v972 = vld [vmem:[%s969 + $0x8] sm:$0xf]
        %v973 = vld [vmem:[%s969 + $0xc] sm:$0xf]
        %v974 = vld [vmem:[%s969 + $0x10] sm:$0xf]
        %v975 = vld [vmem:[%s969 + $0x14] sm:$0xf]
        %v976 = vld [vmem:[%s969 + $0x18] sm:$0xf]
        %v977 = vld [vmem:[%s969 + $0x1c] sm:$0xf]
        %v978 = vld [vmem:[%s969 + $0x20] sm:$0xf]
        %v979 = vld [vmem:[%s969 + $0x24] sm:$0xf]
        %v980 = vld [vmem:[%s969 + $0x28] sm:$0xf]
        %v981 = vld [vmem:[%s969 + $0x2c] sm:$0xf]
        %v982 = vld [vmem:[%s969 + $0x30] sm:$0xf]
        %v983 = vld [vmem:[%s969 + $0x34] sm:$0xf]
        %v984 = vld [vmem:[%s969 + $0x38] sm:$0xf]
        %v985 = vld [vmem:[%s969 + $0x3c] sm:$0xf]
        %v987 = vunpack.c.l.b16 %v968
        %v988 = vpack.c.b16 %v278, %v987
        %vm989 = vcmask 1046528
        %v990 = vrot.slane %v988, 1
        %v991 = vrot.slane %v315, 1
        %v992 = vsel %vm989, %v990, %v991
        %v993 = vrot.slane %v316, 1
        %v994 = vsel %vm989, %v991, %v993
        %v995 = vrot.slane %v317, 1
        %v996 = vsel %vm989, %v993, %v995
        %v997 = vrot.slane %v318, 1
        %v998 = vsel %vm989, %v995, %v997
        %v999 = vrot.slane %v319, 1
        %v1000 = vsel %vm989, %v997, %v999
        %v1001 = vrot.slane %v320, 1
        %v1002 = vsel %vm989, %v999, %v1001
        %v1003 = vrot.slane %v321, 1
        %v1004 = vsel %vm989, %v1001, %v1003
        %v1005 = vrot.slane %v322, 1
        %v1006 = vsel %vm989, %v1003, %v1005
        %v1007 = vrot.slane %v323, 1
        %v1008 = vsel %vm989, %v1005, %v1007
        %v1009 = vrot.slane %v324, 1
        %v1010 = vsel %vm989, %v1007, %v1009
        %v1011 = vrot.slane %v325, 1
        %v1012 = vsel %vm989, %v1009, %v1011
        %v1013 = vrot.slane %v326, 1
        %v1014 = vsel %vm989, %v1011, %v1013
        %v1015 = vrot.slane %v327, 1
        %v1016 = vsel %vm989, %v1013, %v1015
        %v1017 = vrot.slane %v328, 1
        %v1018 = vsel %vm989, %v1015, %v1017
        %v1019 = vrot.slane %v329, 1
        %v1020 = vsel %vm989, %v1017, %v1019
        %v1021 = vrot.slane %v330, 1
        %v1022 = vsel %vm989, %v1019, %v1021
        %v1023 = vrot.slane %v331, 1
        %v1024 = vsel %vm989, %v1021, %v1023
        %v1025 = vrot.slane %v332, 1
        %v1026 = vsel %vm989, %v1023, %v1025
        %v1061 = vunpack.c.l.b16 %v970
        %v1062 = vunpack.c.l.b16 %v971
        %v1063 = vunpack.c.l.b16 %v972
        %v1064 = vunpack.c.l.b16 %v973
        %v1065 = vunpack.c.l.b16 %v974
        %v1066 = vunpack.c.l.b16 %v975
        %v1067 = vunpack.c.l.b16 %v976
        %v1068 = vunpack.c.l.b16 %v977
        %v1069 = vunpack.c.l.b16 %v978
        %v1070 = vunpack.c.l.b16 %v979
        %v1071 = vunpack.c.l.b16 %v980
        %v1072 = vunpack.c.l.b16 %v981
        %v1073 = vunpack.c.l.b16 %v982
        %v1074 = vunpack.c.l.b16 %v983
        %v1075 = vunpack.c.l.b16 %v984
        %v1076 = vunpack.c.l.b16 %v985
        %v1077 = vpack.c.b16 %v1062, %v1061
        %v1078 = vpack.c.b16 %v1064, %v1063
        %v1079 = vpack.c.b16 %v1066, %v1065
        %v1080 = vpack.c.b16 %v1068, %v1067
        %v1081 = vpack.c.b16 %v1070, %v1069
        %v1082 = vpack.c.b16 %v1072, %v1071
        %v1083 = vpack.c.b16 %v1074, %v1073
        %v1084 = vpack.c.b16 %v1076, %v1075
        %1093 = vmatprep.subr.bf16.mxu0 0
        %1094 = vmatpush1.bf16.msra.mxu0 %v1077
        %1095 = vmatprep.subr.bf16.mxu0 0
        %1096 = vmatpush1.bf16.msra.mxu0 %v1078
        %1097 = vmatprep.subr.bf16.mxu0 0
        %1098 = vmatpush1.bf16.msra.mxu0 %v1079
        %1099 = vmatprep.subr.bf16.mxu0 0
        %1100 = vmatpush1.bf16.msra.mxu0 %v1080
        %1101 = vmatprep.subr.bf16.mxu0 0
        %1102 = vmatpush1.bf16.msra.mxu0 %v1081
        %1103 = vmatprep.subr.bf16.mxu0 0
        %1104 = vmatpush1.bf16.msra.mxu0 %v1082
        %1105 = vmatprep.subr.bf16.mxu0 0
        %1106 = vmatpush1.bf16.msra.mxu0 %v1083
        %1107 = vmatprep.subr.bf16.mxu0 0
        %1108 = vmatpush1.bf16.msra.mxu0 %v1084
        %1109 = vmatprep.subr.bf16.mxu0 0
        %1110 = vmatpush1.bf16.msra.mxu0 0
        %1111 = vmatprep.subr.bf16.mxu0 0
        %1112 = vmatpush1.bf16.msra.mxu0 0
        %1113 = vmatprep.subr.bf16.mxu0 0
        %1114 = vmatpush1.bf16.msra.mxu0 0
        %1115 = vmatprep.subr.bf16.mxu0 0
        %1116 = vmatpush1.bf16.msra.mxu0 0
        %1117 = vmatprep.subr.bf16.mxu0 0
        %1118 = vmatpush1.bf16.msra.mxu0 0
        %1119 = vmatprep.subr.bf16.mxu0 0
        %1120 = vmatpush1.bf16.msra.mxu0 0
        %1121 = vmatprep.subr.bf16.mxu0 0
        %1122 = vmatpush1.bf16.msra.mxu0 0
        %1123 = vmatprep.subr.bf16.mxu0 0
        %1124 = vmatpush1.bf16.msra.mxu0 0
        %1125 = vmatprep.mubr.bf16.mxu0 0
        %1126 = vmatmul.mubr.bf16.gmra.mrb[0].mxu0 %v992
        %v1127 = vpop.f32.mrb[0].mxu0
        %v1128 = vadd.f32 0.0, %v1127
        %v1129 = vpop.f32.mrb[0].mxu0
        %v1130 = vpop.f32.mrb[0].mxu0
        %v1131 = vadd.f32 0.0, %v1130
        %v1132 = vpop.f32.mrb[0].mxu0
        %1133 = vmatprep.mubr.bf16.mxu0 0
        %1134 = vmatmul.mubr.bf16.gmra.mrb[0].mxu0 %v994
        %v1135 = vpop.f32.mrb[0].mxu0
        %v1136 = vadd.f32 0.0, %v1135
        %v1137 = vpop.f32.mrb[0].mxu0
        %v1138 = vpop.f32.mrb[0].mxu0
        %v1139 = vadd.f32 0.0, %v1138
        %v1140 = vpop.f32.mrb[0].mxu0
        %1141 = vmatprep.mubr.bf16.mxu0 0
        %1142 = vmatmul.mubr.bf16.gmra.mrb[0].mxu0 %v996
        %v1143 = vpop.f32.mrb[0].mxu0
        %v1144 = vadd.f32 0.0, %v1143
        %v1145 = vpop.f32.mrb[0].mxu0
        %v1146 = vpop.f32.mrb[0].mxu0
        %v1147 = vadd.f32 0.0, %v1146
        %v1148 = vpop.f32.mrb[0].mxu0
        %1149 = vmatprep.mubr.bf16.mxu0 0
        %1150 = vmatmul.mubr.bf16.gmra.mrb[0].mxu0 %v998
        %v1151 = vpop.f32.mrb[0].mxu0
        %v1152 = vadd.f32 0.0, %v1151
        %v1153 = vpop.f32.mrb[0].mxu0
        %v1154 = vpop.f32.mrb[0].mxu0
        %v1155 = vadd.f32 0.0, %v1154
        %v1156 = vpop.f32.mrb[0].mxu0
        %1157 = vmatprep.mubr.bf16.mxu0 0
        %1158 = vmatmul.mubr.bf16.gmra.mrb[0].mxu0 %v1000
        %v1159 = vpop.f32.mrb[0].mxu0
        %v1160 = vadd.f32 0.0, %v1159
        %v1161 = vpop.f32.mrb[0].mxu0
        %v1162 = vpop.f32.mrb[0].mxu0
        %v1163 = vadd.f32 0.0, %v1162
        %v1164 = vpop.f32.mrb[0].mxu0
        %1165 = vmatprep.mubr.bf16.mxu0 0
        %1166 = vmatmul.mubr.bf16.gmra.mrb[0].mxu0 %v1002
        %v1167 = vpop.f32.mrb[0].mxu0
        %v1168 = vadd.f32 0.0, %v1167
        %v1169 = vpop.f32.mrb[0].mxu0
        %v1170 = vpop.f32.mrb[0].mxu0
        %v1171 = vadd.f32 0.0, %v1170
        %v1172 = vpop.f32.mrb[0].mxu0
        %1173 = vmatprep.mubr.bf16.mxu0 0
        %1174 = vmatmul.mubr.bf16.gmra.mrb[0].mxu0 %v1004
        %v1175 = vpop.f32.mrb[0].mxu0
        %v1176 = vadd.f32 0.0, %v1175
        %v1177 = vpop.f32.mrb[0].mxu0
        %v1178 = vpop.f32.mrb[0].mxu0
        %v1179 = vadd.f32 0.0, %v1178
        %v1180 = vpop.f32.mrb[0].mxu0
        %1181 = vmatprep.mubr.bf16.mxu0 0
        %1182 = vmatmul.mubr.bf16.gmra.mrb[0].mxu0 %v1006
        %v1183 = vpop.f32.mrb[0].mxu0
        %v1184 = vadd.f32 0.0, %v1183
        %v1185 = vpop.f32.mrb[0].mxu0
        %v1186 = vpop.f32.mrb[0].mxu0
        %v1187 = vadd.f32 0.0, %v1186
        %v1188 = vpop.f32.mrb[0].mxu0
        %1189 = vmatprep.mubr.bf16.mxu0 0
        %1190 = vmatmul.mubr.bf16.gmra.mrb[0].mxu0 %v1008
        %v1191 = vpop.f32.mrb[0].mxu0
        %v1192 = vadd.f32 0.0, %v1191
        %v1193 = vpop.f32.mrb[0].mxu0
        %v1194 = vpop.f32.mrb[0].mxu0
        %v1195 = vadd.f32 0.0, %v1194
        %v1196 = vpop.f32.mrb[0].mxu0
        %1197 = vmatprep.mubr.bf16.mxu0 0
        %1198 = vmatmul.mubr.bf16.gmra.mrb[0].mxu0 %v1010
        %v1199 = vpop.f32.mrb[0].mxu0
        %v1200 = vadd.f32 0.0, %v1199
        %v1201 = vpop.f32.mrb[0].mxu0
        %v1202 = vpop.f32.mrb[0].mxu0
        %v1203 = vadd.f32 0.0, %v1202
        %v1204 = vpop.f32.mrb[0].mxu0
        %1205 = vmatprep.mubr.bf16.mxu0 0
        %1206 = vmatmul.mubr.bf16.gmra.mrb[0].mxu0 %v1012
        %v1207 = vpop.f32.mrb[0].mxu0
        %v1208 = vadd.f32 0.0, %v1207
        %v1209 = vpop.f32.mrb[0].mxu0
        %v1210 = vpop.f32.mrb[0].mxu0
        %v1211 = vadd.f32 0.0, %v1210
        %v1212 = vpop.f32.mrb[0].mxu0
        %1213 = vmatprep.mubr.bf16.mxu0 0
        %1214 = vmatmul.mubr.bf16.gmra.mrb[0].mxu0 %v1014
        %v1215 = vpop.f32.mrb[0].mxu0
        %v1216 = vadd.f32 0.0, %v1215
        %v1217 = vpop.f32.mrb[0].mxu0
        %v1218 = vpop.f32.mrb[0].mxu0
        %v1219 = vadd.f32 0.0, %v1218
        %v1220 = vpop.f32.mrb[0].mxu0
        %1221 = vmatprep.mubr.bf16.mxu0 0
        %1222 = vmatmul.mubr.bf16.gmra.mrb[0].mxu0 %v1016
        %v1223 = vpop.f32.mrb[0].mxu0
        %v1224 = vadd.f32 0.0, %v1223
        %v1225 = vpop.f32.mrb[0].mxu0
        %v1226 = vpop.f32.mrb[0].mxu0
        %v1227 = vadd.f32 0.0, %v1226
        %v1228 = vpop.f32.mrb[0].mxu0
        %1229 = vmatprep.mubr.bf16.mxu0 0
        %1230 = vmatmul.mubr.bf16.gmra.mrb[0].mxu0 %v1018
        %v1231 = vpop.f32.mrb[0].mxu0
        %v1232 = vadd.f32 0.0, %v1231
        %v1233 = vpop.f32.mrb[0].mxu0
        %v1234 = vpop.f32.mrb[0].mxu0
        %v1235 = vadd.f32 0.0, %v1234
        %v1236 = vpop.f32.mrb[0].mxu0
        %1237 = vmatprep.mubr.bf16.mxu0 0
        %1238 = vmatmul.mubr.bf16.gmra.mrb[0].mxu0 %v1020
        %v1239 = vpop.f32.mrb[0].mxu0
        %v1240 = vadd.f32 0.0, %v1239
        %v1241 = vpop.f32.mrb[0].mxu0
        %v1242 = vpop.f32.mrb[0].mxu0
        %v1243 = vadd.f32 0.0, %v1242
        %v1244 = vpop.f32.mrb[0].mxu0
        %1245 = vmatprep.mubr.bf16.mxu0 0
        %1246 = vmatmul.mubr.bf16.gmra.mrb[0].mxu0 %v1022
        %v1247 = vpop.f32.mrb[0].mxu0
        %v1248 = vadd.f32 0.0, %v1247
        %v1249 = vpop.f32.mrb[0].mxu0
        %v1250 = vpop.f32.mrb[0].mxu0
        %v1251 = vadd.f32 0.0, %v1250
        %v1252 = vpop.f32.mrb[0].mxu0
        %1253 = vmatprep.mubr.bf16.mxu0 0
        %1254 = vmatmul.mubr.bf16.gmra.mrb[0].mxu0 %v1024
        %v1255 = vpop.f32.mrb[0].mxu0
        %v1256 = vadd.f32 0.0, %v1255
        %v1257 = vpop.f32.mrb[0].mxu0
        %v1258 = vpop.f32.mrb[0].mxu0
        %v1259 = vadd.f32 0.0, %v1258
        %v1260 = vpop.f32.mrb[0].mxu0
        %1261 = vmatprep.mubr.bf16.mxu0 0
        %1262 = vmatmul.mubr.bf16.gmra.mrb[0].mxu0 %v1026
        %v1263 = vpop.f32.mrb[0].mxu0
        %v1264 = vadd.f32 0.0, %v1263
        %v1265 = vpop.f32.mrb[0].mxu0
        %v1266 = vpop.f32.mrb[0].mxu0
        %v1267 = vadd.f32 0.0, %v1266
        %v1268 = vpop.f32.mrb[0].mxu0
        %1269 = vdwg.mxu0
        %v1270 = vadd.f32 %v826, %v1128
        %v1271 = vadd.f32 %v829, %v1131
        %v1272 = vadd.f32 %v834, %v1136
        %v1273 = vadd.f32 %v837, %v1139
        %v1274 = vadd.f32 %v842, %v1144
        %v1275 = vadd.f32 %v845, %v1147
        %v1276 = vadd.f32 %v850, %v1152
        %v1277 = vadd.f32 %v853, %v1155
        %v1278 = vadd.f32 %v858, %v1160
        %v1279 = vadd.f32 %v861, %v1163
        %v1280 = vadd.f32 %v866, %v1168
        %v1281 = vadd.f32 %v869, %v1171
        %v1282 = vadd.f32 %v874, %v1176
        %v1283 = vadd.f32 %v877, %v1179
        %v1284 = vadd.f32 %v882, %v1184
        %v1285 = vadd.f32 %v885, %v1187
        %v1286 = vadd.f32 %v890, %v1192
        %v1287 = vadd.f32 %v893, %v1195
        %v1288 = vadd.f32 %v898, %v1200
        %v1289 = vadd.f32 %v901, %v1203
        %v1290 = vadd.f32 %v906, %v1208
        %v1291 = vadd.f32 %v909, %v1211
        %v1292 = vadd.f32 %v914, %v1216
        %v1293 = vadd.f32 %v917, %v1219
        %v1294 = vadd.f32 %v922, %v1224
        %v1295 = vadd.f32 %v925, %v1227
        %v1296 = vadd.f32 %v930, %v1232
        %v1297 = vadd.f32 %v933, %v1235
        %v1298 = vadd.f32 %v938, %v1240
        %v1299 = vadd.f32 %v941, %v1243
        %v1300 = vadd.f32 %v946, %v1248
        %v1301 = vadd.f32 %v949, %v1251
        %v1302 = vadd.f32 %v954, %v1256
        %v1303 = vadd.f32 %v957, %v1259
        %v1304 = vadd.f32 %v962, %v1264
        %v1305 = vadd.f32 %v965, %v1267
        %v1306 = vld [vmem:[%s168 + $0x8] sm:$0xe]
        %v1307 = vld [vmem:[%s168 + $0xc] sm:$0xf]
        %v1308 = vld [vmem:[%s168 + $0x10] sm:$0xf]
        %v1309 = vld [vmem:[%s168 + $0x14] sm:$0xf]
        %v1310 = vld [vmem:[%s168 + $0x18] sm:$0xf]
        %v1311 = vld [vmem:[%s168 + $0x1c] sm:$0xf]
        %v1312 = vld [vmem:[%s168 + $0x20] sm:$0xf]
        %v1313 = vld [vmem:[%s168 + $0x24] sm:$0xf]
        %v1314 = vld [vmem:[%s168 + $0x28] sm:$0xf]
        %v1315 = vld [vmem:[%s168 + $0x2c] sm:$0xf]
        %v1316 = vld [vmem:[%s168 + $0x30] sm:$0xf]
        %v1317 = vld [vmem:[%s168 + $0x34] sm:$0xf]
        %v1318 = vld [vmem:[%s168 + $0x38] sm:$0xf]
        %v1319 = vld [vmem:[%s168 + $0x3c] sm:$0xf]
        %v1320 = vld [vmem:[%s168 + $0x40] sm:$0xf]
        %v1321 = vld [vmem:[%s168 + $0x44] sm:$0xf]
        %v1322 = vld [vmem:[%s168 + $0x48] sm:$0xf]
        %v1323 = vld [vmem:[%s168 + $0x4c] sm:$0xf]
        %v1324 = vld [vmem:[%s168 + $0x50] sm:$0xf]
        %v1325 = vld [vmem:[%s168 + $0x54] sm:$0xf]
        %v1326 = vld [vmem:[%s168 + $0x58] sm:$0xf]
        %v1327 = vld [vmem:[%s168 + $0x5c] sm:$0xf]
        %v1328 = vld [vmem:[%s168 + $0x60] sm:$0xf]
        %v1329 = vld [vmem:[%s168 + $0x64] sm:$0xf]
        %v1330 = vld [vmem:[%s168 + $0x68] sm:$0xf]
        %v1331 = vld [vmem:[%s168 + $0x6c] sm:$0xf]
        %v1332 = vld [vmem:[%s168 + $0x70] sm:$0xf]
        %v1333 = vld [vmem:[%s168 + $0x74] sm:$0xf]
        %v1334 = vld [vmem:[%s168 + $0x78] sm:$0xf]
        %v1335 = vld [vmem:[%s168 + $0x7c] sm:$0xf]
        %v1336 = vld [vmem:[%s168 + $0x80] sm:$0xf]
        %v1337 = vld [vmem:[%s168 + $0x84] sm:$0xf]
        %v1338 = vld [vmem:[%s168 + $0x88] sm:$0xf]
        %v1339 = vld [vmem:[%s168 + $0x8c] sm:$0xf]
        %v1340 = vld [vmem:[%s168 + $0x90] sm:$0xf]
        %v1341 = vld [vmem:[%s168 + $0x94] sm:$0xf]
        %v1342 = vld [vmem:[%s168 + $0x98] sm:$0x1]
        %s1343 = scalar_lea.vmem %s1, 192
        %v1344 = vld [vmem:[%s1343] sm:$0xf]
        %v1345 = vld [vmem:[%s1343 + $0x4] sm:$0xf]
        %v1346 = vld [vmem:[%s1343 + $0x8] sm:$0xf]
        %v1347 = vld [vmem:[%s1343 + $0xc] sm:$0xf]
        %v1348 = vld [vmem:[%s1343 + $0x10] sm:$0xf]
        %v1349 = vld [vmem:[%s1343 + $0x14] sm:$0xf]
        %v1350 = vld [vmem:[%s1343 + $0x18] sm:$0xf]
        %v1351 = vld [vmem:[%s1343 + $0x1c] sm:$0xf]
        %v1352 = vld [vmem:[%s1343 + $0x20] sm:$0xf]
        %v1353 = vld [vmem:[%s1343 + $0x24] sm:$0xf]
        %v1354 = vld [vmem:[%s1343 + $0x28] sm:$0xf]
        %v1355 = vld [vmem:[%s1343 + $0x2c] sm:$0xf]
        %v1356 = vld [vmem:[%s1343 + $0x30] sm:$0xf]
        %v1357 = vld [vmem:[%s1343 + $0x34] sm:$0xf]
        %v1358 = vld [vmem:[%s1343 + $0x38] sm:$0xf]
        %v1359 = vld [vmem:[%s1343 + $0x3c] sm:$0xf]
        %v1397 = vunpack.c.l.b16 %v1306
        %v1398 = vunpack.c.l.b16 %v1307
        %v1399 = vunpack.c.l.b16 %v1308
        %v1400 = vunpack.c.l.b16 %v1309
        %v1401 = vunpack.c.l.b16 %v1310
        %v1402 = vunpack.c.l.b16 %v1311
        %v1403 = vunpack.c.l.b16 %v1312
        %v1404 = vunpack.c.l.b16 %v1313
        %v1405 = vunpack.c.l.b16 %v1314
        %v1406 = vunpack.c.l.b16 %v1315
        %v1407 = vunpack.c.l.b16 %v1316
        %v1408 = vunpack.c.l.b16 %v1317
        %v1409 = vunpack.c.l.b16 %v1318
        %v1410 = vunpack.c.l.b16 %v1319
        %v1411 = vunpack.c.l.b16 %v1320
        %v1412 = vunpack.c.l.b16 %v1321
        %v1413 = vunpack.c.l.b16 %v1322
        %v1414 = vunpack.c.l.b16 %v1323
        %v1415 = vunpack.c.l.b16 %v1324
        %v1416 = vunpack.c.l.b16 %v1325
        %v1417 = vunpack.c.l.b16 %v1326
        %v1418 = vunpack.c.l.b16 %v1327
        %v1419 = vunpack.c.l.b16 %v1328
        %v1420 = vunpack.c.l.b16 %v1329
        %v1421 = vunpack.c.l.b16 %v1330
        %v1422 = vunpack.c.l.b16 %v1331
        %v1423 = vunpack.c.l.b16 %v1332
        %v1424 = vunpack.c.l.b16 %v1333
        %v1425 = vunpack.c.l.b16 %v1334
        %v1426 = vunpack.c.l.b16 %v1335
        %v1427 = vunpack.c.l.b16 %v1336
        %v1428 = vunpack.c.l.b16 %v1337
        %v1429 = vunpack.c.l.b16 %v1338
        %v1430 = vunpack.c.l.b16 %v1339
        %v1431 = vunpack.c.l.b16 %v1340
        %v1432 = vunpack.c.l.b16 %v1341
        %v1433 = vunpack.c.l.b16 %v1342
        %v1434 = vpack.c.b16 %v1398, %v1397
        %v1435 = vpack.c.b16 %v1400, %v1399
        %v1436 = vpack.c.b16 %v1402, %v1401
        %v1437 = vpack.c.b16 %v1404, %v1403
        %v1438 = vpack.c.b16 %v1406, %v1405
        %v1439 = vpack.c.b16 %v1408, %v1407
        %v1440 = vpack.c.b16 %v1410, %v1409
        %v1441 = vpack.c.b16 %v1412, %v1411
        %v1442 = vpack.c.b16 %v1414, %v1413
        %v1443 = vpack.c.b16 %v1416, %v1415
        %v1444 = vpack.c.b16 %v1418, %v1417
        %v1445 = vpack.c.b16 %v1420, %v1419
        %v1446 = vpack.c.b16 %v1422, %v1421
        %v1447 = vpack.c.b16 %v1424, %v1423
        %v1448 = vpack.c.b16 %v1426, %v1425
        %v1449 = vpack.c.b16 %v1428, %v1427
        %v1450 = vpack.c.b16 %v1430, %v1429
        %v1451 = vpack.c.b16 %v1432, %v1431
        %v1452 = vpack.c.b16 %v1433, %v1433
        %v1453 = vrot.slane %v1434, 1
        %v1454 = vrot.slane %v1435, 1
        %v1455 = vsel %vm989, %v1453, %v1454
        %v1456 = vrot.slane %v1436, 1
        %v1457 = vsel %vm989, %v1454, %v1456
        %v1458 = vrot.slane %v1437, 1
        %v1459 = vsel %vm989, %v1456, %v1458
        %v1460 = vrot.slane %v1438, 1
        %v1461 = vsel %vm989, %v1458, %v1460
        %v1462 = vrot.slane %v1439, 1
        %v1463 = vsel %vm989, %v1460, %v1462
        %v1464 = vrot.slane %v1440, 1
        %v1465 = vsel %vm989, %v1462, %v1464
        %v1466 = vrot.slane %v1441, 1
        %v1467 = vsel %vm989, %v1464, %v1466
        %v1468 = vrot.slane %v1442, 1
        %v1469 = vsel %vm989, %v1466, %v1468
        %v1470 = vrot.slane %v1443, 1
        %v1471 = vsel %vm989, %v1468, %v1470
        %v1472 = vrot.slane %v1444, 1
        %v1473 = vsel %vm989, %v1470, %v1472
        %v1474 = vrot.slane %v1445, 1
        %v1475 = vsel %vm989, %v1472, %v1474
        %v1476 = vrot.slane %v1446, 1
        %v1477 = vsel %vm989, %v1474, %v1476
        %v1478 = vrot.slane %v1447, 1
        %v1479 = vsel %vm989, %v1476, %v1478
        %v1480 = vrot.slane %v1448, 1
        %v1481 = vsel %vm989, %v1478, %v1480
        %v1482 = vrot.slane %v1449, 1
        %v1483 = vsel %vm989, %v1480, %v1482
        %v1484 = vrot.slane %v1450, 1
        %v1485 = vsel %vm989, %v1482, %v1484
        %v1486 = vrot.slane %v1451, 1
        %v1487 = vsel %vm989, %v1484, %v1486
        %v1488 = vrot.slane %v1452, 1
        %v1489 = vsel %vm989, %v1486, %v1488
        %v1524 = vunpack.c.l.b16 %v1344
        %v1525 = vunpack.c.l.b16 %v1345
        %v1526 = vunpack.c.l.b16 %v1346
        %v1527 = vunpack.c.l.b16 %v1347
        %v1528 = vunpack.c.l.b16 %v1348
        %v1529 = vunpack.c.l.b16 %v1349
        %v1530 = vunpack.c.l.b16 %v1350
        %v1531 = vunpack.c.l.b16 %v1351
        %v1532 = vunpack.c.l.b16 %v1352
        %v1533 = vunpack.c.l.b16 %v1353
        %v1534 = vunpack.c.l.b16 %v1354
        %v1535 = vunpack.c.l.b16 %v1355
        %v1536 = vunpack.c.l.b16 %v1356
        %v1537 = vunpack.c.l.b16 %v1357
        %v1538 = vunpack.c.l.b16 %v1358
        %v1539 = vunpack.c.l.b16 %v1359
        %v1540 = vpack.c.b16 %v1525, %v1524
        %v1541 = vpack.c.b16 %v1527, %v1526
        %v1542 = vpack.c.b16 %v1529, %v1528
        %v1543 = vpack.c.b16 %v1531, %v1530
        %v1544 = vpack.c.b16 %v1533, %v1532
        %v1545 = vpack.c.b16 %v1535, %v1534
        %v1546 = vpack.c.b16 %v1537, %v1536
        %v1547 = vpack.c.b16 %v1539, %v1538
        %1556 = vmatprep.subr.bf16.mxu0 0
        %1557 = vmatpush1.bf16.msra.mxu0 %v1540
        %1558 = vmatprep.subr.bf16.mxu0 0
        %1559 = vmatpush1.bf16.msra.mxu0 %v1541
        %1560 = vmatprep.subr.bf16.mxu0 0
        %1561 = vmatpush1.bf16.msra.mxu0 %v1542
        %1562 = vmatprep.subr.bf16.mxu0 0
        %1563 = vmatpush1.bf16.msra.mxu0 %v1543
        %1564 = vmatprep.subr.bf16.mxu0 0
        %1565 = vmatpush1.bf16.msra.mxu0 %v1544
        %1566 = vmatprep.subr.bf16.mxu0 0
        %1567 = vmatpush1.bf16.msra.mxu0 %v1545
        %1568 = vmatprep.subr.bf16.mxu0 0
        %1569 = vmatpush1.bf16.msra.mxu0 %v1546
        %1570 = vmatprep.subr.bf16.mxu0 0
        %1571 = vmatpush1.bf16.msra.mxu0 %v1547
        %1572 = vmatprep.subr.bf16.mxu0 0
        %1573 = vmatpush1.bf16.msra.mxu0 0
        %1574 = vmatprep.subr.bf16.mxu0 0
        %1575 = vmatpush1.bf16.msra.mxu0 0
        %1576 = vmatprep.subr.bf16.mxu0 0
        %1577 = vmatpush1.bf16.msra.mxu0 0
        %1578 = vmatprep.subr.bf16.mxu0 0
        %1579 = vmatpush1.bf16.msra.mxu0 0
        %1580 = vmatprep.subr.bf16.mxu0 0
        %1581 = vmatpush1.bf16.msra.mxu0 0
        %1582 = vmatprep.subr.bf16.mxu0 0
        %1583 = vmatpush1.bf16.msra.mxu0 0
        %1584 = vmatprep.subr.bf16.mxu0 0
        %1585 = vmatpush1.bf16.msra.mxu0 0
        %1586 = vmatprep.subr.bf16.mxu0 0
        %1587 = vmatpush1.bf16.msra.mxu0 0
        %1588 = vmatprep.mubr.bf16.mxu0 0
        %1589 = vmatmul.mubr.bf16.gmra.mrb[0].mxu0 %v1455
        %v1590 = vpop.f32.mrb[0].mxu0
        %v1591 = vadd.f32 0.0, %v1590
        %v1592 = vpop.f32.mrb[0].mxu0
        %v1593 = vpop.f32.mrb[0].mxu0
        %v1594 = vadd.f32 0.0, %v1593
        %v1595 = vpop.f32.mrb[0].mxu0
        %1596 = vmatprep.mubr.bf16.mxu0 0
        %1597 = vmatmul.mubr.bf16.gmra.mrb[0].mxu0 %v1457
        %v1598 = vpop.f32.mrb[0].mxu0
        %v1599 = vadd.f32 0.0, %v1598
        %v1600 = vpop.f32.mrb[0].mxu0
        %v1601 = vpop.f32.mrb[0].mxu0
        %v1602 = vadd.f32 0.0, %v1601
        %v1603 = vpop.f32.mrb[0].mxu0
        %1604 = vmatprep.mubr.bf16.mxu0 0
        %1605 = vmatmul.mubr.bf16.gmra.mrb[0].mxu0 %v1459
        %v1606 = vpop.f32.mrb[0].mxu0
        %v1607 = vadd.f32 0.0, %v1606
        %v1608 = vpop.f32.mrb[0].mxu0
        %v1609 = vpop.f32.mrb[0].mxu0
        %v1610 = vadd.f32 0.0, %v1609
        %v1611 = vpop.f32.mrb[0].mxu0
        %1612 = vmatprep.mubr.bf16.mxu0 0
        %1613 = vmatmul.mubr.bf16.gmra.mrb[0].mxu0 %v1461
        %v1614 = vpop.f32.mrb[0].mxu0
        %v1615 = vadd.f32 0.0, %v1614
        %v1616 = vpop.f32.mrb[0].mxu0
        %v1617 = vpop.f32.mrb[0].mxu0
        %v1618 = vadd.f32 0.0, %v1617
        %v1619 = vpop.f32.mrb[0].mxu0
        %1620 = vmatprep.mubr.bf16.mxu0 0
        %1621 = vmatmul.mubr.bf16.gmra.mrb[0].mxu0 %v1463
        %v1622 = vpop.f32.mrb[0].mxu0
        %v1623 = vadd.f32 0.0, %v1622
        %v1624 = vpop.f32.mrb[0].mxu0
        %v1625 = vpop.f32.mrb[0].mxu0
        %v1626 = vadd.f32 0.0, %v1625
        %v1627 = vpop.f32.mrb[0].mxu0
        %1628 = vmatprep.mubr.bf16.mxu0 0
        %1629 = vmatmul.mubr.bf16.gmra.mrb[0].mxu0 %v1465
        %v1630 = vpop.f32.mrb[0].mxu0
        %v1631 = vadd.f32 0.0, %v1630
        %v1632 = vpop.f32.mrb[0].mxu0
        %v1633 = vpop.f32.mrb[0].mxu0
        %v1634 = vadd.f32 0.0, %v1633
        %v1635 = vpop.f32.mrb[0].mxu0
        %1636 = vmatprep.mubr.bf16.mxu0 0
        %1637 = vmatmul.mubr.bf16.gmra.mrb[0].mxu0 %v1467
        %v1638 = vpop.f32.mrb[0].mxu0
        %v1639 = vadd.f32 0.0, %v1638
        %v1640 = vpop.f32.mrb[0].mxu0
        %v1641 = vpop.f32.mrb[0].mxu0
        %v1642 = vadd.f32 0.0, %v1641
        %v1643 = vpop.f32.mrb[0].mxu0
        %1644 = vmatprep.mubr.bf16.mxu0 0
        %1645 = vmatmul.mubr.bf16.gmra.mrb[0].mxu0 %v1469
        %v1646 = vpop.f32.mrb[0].mxu0
        %v1647 = vadd.f32 0.0, %v1646
        %v1648 = vpop.f32.mrb[0].mxu0
        %v1649 = vpop.f32.mrb[0].mxu0
        %v1650 = vadd.f32 0.0, %v1649
        %v1651 = vpop.f32.mrb[0].mxu0
        %1652 = vmatprep.mubr.bf16.mxu0 0
        %1653 = vmatmul.mubr.bf16.gmra.mrb[0].mxu0 %v1471
        %v1654 = vpop.f32.mrb[0].mxu0
        %v1655 = vadd.f32 0.0, %v1654
        %v1656 = vpop.f32.mrb[0].mxu0
        %v1657 = vpop.f32.mrb[0].mxu0
        %v1658 = vadd.f32 0.0, %v1657
        %v1659 = vpop.f32.mrb[0].mxu0
        %1660 = vmatprep.mubr.bf16.mxu0 0
        %1661 = vmatmul.mubr.bf16.gmra.mrb[0].mxu0 %v1473
        %v1662 = vpop.f32.mrb[0].mxu0
        %v1663 = vadd.f32 0.0, %v1662
        %v1664 = vpop.f32.mrb[0].mxu0
        %v1665 = vpop.f32.mrb[0].mxu0
        %v1666 = vadd.f32 0.0, %v1665
        %v1667 = vpop.f32.mrb[0].mxu0
        %1668 = vmatprep.mubr.bf16.mxu0 0
        %1669 = vmatmul.mubr.bf16.gmra.mrb[0].mxu0 %v1475
        %v1670 = vpop.f32.mrb[0].mxu0
        %v1671 = vadd.f32 0.0, %v1670
        %v1672 = vpop.f32.mrb[0].mxu0
        %v1673 = vpop.f32.mrb[0].mxu0
        %v1674 = vadd.f32 0.0, %v1673
        %v1675 = vpop.f32.mrb[0].mxu0
        %1676 = vmatprep.mubr.bf16.mxu0 0
        %1677 = vmatmul.mubr.bf16.gmra.mrb[0].mxu0 %v1477
        %v1678 = vpop.f32.mrb[0].mxu0
        %v1679 = vadd.f32 0.0, %v1678
        %v1680 = vpop.f32.mrb[0].mxu0
        %v1681 = vpop.f32.mrb[0].mxu0
        %v1682 = vadd.f32 0.0, %v1681
        %v1683 = vpop.f32.mrb[0].mxu0
        %1684 = vmatprep.mubr.bf16.mxu0 0
        %1685 = vmatmul.mubr.bf16.gmra.mrb[0].mxu0 %v1479
        %v1686 = vpop.f32.mrb[0].mxu0
        %v1687 = vadd.f32 0.0, %v1686
        %v1688 = vpop.f32.mrb[0].mxu0
        %v1689 = vpop.f32.mrb[0].mxu0
        %v1690 = vadd.f32 0.0, %v1689
        %v1691 = vpop.f32.mrb[0].mxu0
        %1692 = vmatprep.mubr.bf16.mxu0 0
        %1693 = vmatmul.mubr.bf16.gmra.mrb[0].mxu0 %v1481
        %v1694 = vpop.f32.mrb[0].mxu0
        %v1695 = vadd.f32 0.0, %v1694
        %v1696 = vpop.f32.mrb[0].mxu0
        %v1697 = vpop.f32.mrb[0].mxu0
        %v1698 = vadd.f32 0.0, %v1697
        %v1699 = vpop.f32.mrb[0].mxu0
        %1700 = vmatprep.mubr.bf16.mxu0 0
        %1701 = vmatmul.mubr.bf16.gmra.mrb[0].mxu0 %v1483
        %v1702 = vpop.f32.mrb[0].mxu0
        %v1703 = vadd.f32 0.0, %v1702
        %v1704 = vpop.f32.mrb[0].mxu0
        %v1705 = vpop.f32.mrb[0].mxu0
        %v1706 = vadd.f32 0.0, %v1705
        %v1707 = vpop.f32.mrb[0].mxu0
        %1708 = vmatprep.mubr.bf16.mxu0 0
        %1709 = vmatmul.mubr.bf16.gmra.mrb[0].mxu0 %v1485
        %v1710 = vpop.f32.mrb[0].mxu0
        %v1711 = vadd.f32 0.0, %v1710
        %v1712 = vpop.f32.mrb[0].mxu0
        %v1713 = vpop.f32.mrb[0].mxu0
        %v1714 = vadd.f32 0.0, %v1713
        %v1715 = vpop.f32.mrb[0].mxu0
        %1716 = vmatprep.mubr.bf16.mxu0 0
        %1717 = vmatmul.mubr.bf16.gmra.mrb[0].mxu0 %v1487
        %v1718 = vpop.f32.mrb[0].mxu0
        %v1719 = vadd.f32 0.0, %v1718
        %v1720 = vpop.f32.mrb[0].mxu0
        %v1721 = vpop.f32.mrb[0].mxu0
        %v1722 = vadd.f32 0.0, %v1721
        %v1723 = vpop.f32.mrb[0].mxu0
        %1724 = vmatprep.mubr.bf16.mxu0 0
        %1725 = vmatmul.mubr.bf16.gmra.mrb[0].mxu0 %v1489
        %v1726 = vpop.f32.mrb[0].mxu0
        %v1727 = vadd.f32 0.0, %v1726
        %v1728 = vpop.f32.mrb[0].mxu0
        %v1729 = vpop.f32.mrb[0].mxu0
        %v1730 = vadd.f32 0.0, %v1729
        %v1731 = vpop.f32.mrb[0].mxu0
        %1732 = vdwg.mxu0
        %v1733 = vadd.f32 %v1270, %v1591
        %v1734 = vadd.f32 %v1271, %v1594
        %v1735 = vadd.f32 %v1272, %v1599
        %v1736 = vadd.f32 %v1273, %v1602
        %v1737 = vadd.f32 %v1274, %v1607
        %v1738 = vadd.f32 %v1275, %v1610
        %v1739 = vadd.f32 %v1276, %v1615
        %v1740 = vadd.f32 %v1277, %v1618
        %v1741 = vadd.f32 %v1278, %v1623
        %v1742 = vadd.f32 %v1279, %v1626
        %v1743 = vadd.f32 %v1280, %v1631
        %v1744 = vadd.f32 %v1281, %v1634
        %v1745 = vadd.f32 %v1282, %v1639
        %v1746 = vadd.f32 %v1283, %v1642
        %v1747 = vadd.f32 %v1284, %v1647
        %v1748 = vadd.f32 %v1285, %v1650
        %v1749 = vadd.f32 %v1286, %v1655
        %v1750 = vadd.f32 %v1287, %v1658
        %v1751 = vadd.f32 %v1288, %v1663
        %v1752 = vadd.f32 %v1289, %v1666
        %v1753 = vadd.f32 %v1290, %v1671
        %v1754 = vadd.f32 %v1291, %v1674
        %v1755 = vadd.f32 %v1292, %v1679
        %v1756 = vadd.f32 %v1293, %v1682
        %v1757 = vadd.f32 %v1294, %v1687
        %v1758 = vadd.f32 %v1295, %v1690
        %v1759 = vadd.f32 %v1296, %v1695
        %v1760 = vadd.f32 %v1297, %v1698
        %v1761 = vadd.f32 %v1298, %v1703
        %v1762 = vadd.f32 %v1299, %v1706
        %v1763 = vadd.f32 %v1300, %v1711
        %v1764 = vadd.f32 %v1301, %v1714
        %v1765 = vadd.f32 %v1302, %v1719
        %v1766 = vadd.f32 %v1303, %v1722
        %v1767 = vadd.f32 %v1304, %v1727
        %v1768 = vadd.f32 %v1305, %v1730
        %v1769 = vld [vmem:[%s168 + $0x98] sm:$0x3]
        %s1770 = scalar_lea.vmem %s1, 256
        %v1771 = vld [vmem:[%s1770] sm:$0xf]
        %v1772 = vld [vmem:[%s1770 + $0x4] sm:$0xf]
        %v1773 = vld [vmem:[%s1770 + $0x8] sm:$0xf]
        %v1774 = vld [vmem:[%s1770 + $0xc] sm:$0xf]
        %v1775 = vld [vmem:[%s1770 + $0x10] sm:$0xf]
        %v1776 = vld [vmem:[%s1770 + $0x14] sm:$0xf]
        %v1777 = vld [vmem:[%s1770 + $0x18] sm:$0xf]
        %v1778 = vld [vmem:[%s1770 + $0x1c] sm:$0xf]
        %v1779 = vld [vmem:[%s1770 + $0x20] sm:$0xf]
        %v1780 = vld [vmem:[%s1770 + $0x24] sm:$0xf]
        %v1781 = vld [vmem:[%s1770 + $0x28] sm:$0xf]
        %v1782 = vld [vmem:[%s1770 + $0x2c] sm:$0xf]
        %v1783 = vld [vmem:[%s1770 + $0x30] sm:$0xf]
        %v1784 = vld [vmem:[%s1770 + $0x34] sm:$0xf]
        %v1785 = vld [vmem:[%s1770 + $0x38] sm:$0xf]
        %v1786 = vld [vmem:[%s1770 + $0x3c] sm:$0xf]
        %v1788 = vunpack.c.l.b16 %v1769
        %v1789 = vpack.c.b16 %v1788, %v1788
        %vm1790 = vsmask.f32 6400
        %v1792 = vshrl.u32 %v1434, 16
        %v1794 = vrot.slane %v1792, 1
        %v1795 = vshll.u32 %v1434, 16
        %v1797 = vrot.slane %v1795, 2
        %v1798 = vor.u32 %v1794, %v1797
        %v1800 = vshrl.u32 %v1435, 16
        %v1802 = vrot.slane %v1800, 1
        %v1803 = vshll.u32 %v1435, 16
        %v1805 = vrot.slane %v1803, 2
        %v1806 = vor.u32 %v1802, %v1805
        %v1807 = vsel %vm1790, %v1798, %v1806
        %v1809 = vshrl.u32 %v1436, 16
        %v1811 = vrot.slane %v1809, 1
        %v1812 = vshll.u32 %v1436, 16
        %v1814 = vrot.slane %v1812, 2
        %v1815 = vor.u32 %v1811, %v1814
        %v1816 = vsel %vm1790, %v1806, %v1815
        %v1818 = vshrl.u32 %v1437, 16
        %v1820 = vrot.slane %v1818, 1
        %v1821 = vshll.u32 %v1437, 16
        %v1823 = vrot.slane %v1821, 2
        %v1824 = vor.u32 %v1820, %v1823
        %v1825 = vsel %vm1790, %v1815, %v1824
        %v1827 = vshrl.u32 %v1438, 16
        %v1829 = vrot.slane %v1827, 1
        %v1830 = vshll.u32 %v1438, 16
        %v1832 = vrot.slane %v1830, 2
        %v1833 = vor.u32 %v1829, %v1832
        %v1834 = vsel %vm1790, %v1824, %v1833
        %v1836 = vshrl.u32 %v1439, 16
        %v1838 = vrot.slane %v1836, 1
        %v1839 = vshll.u32 %v1439, 16
        %v1841 = vrot.slane %v1839, 2
        %v1842 = vor.u32 %v1838, %v1841
        %v1843 = vsel %vm1790, %v1833, %v1842
        %v1845 = vshrl.u32 %v1440, 16
        %v1847 = vrot.slane %v1845, 1
        %v1848 = vshll.u32 %v1440, 16
        %v1850 = vrot.slane %v1848, 2
        %v1851 = vor.u32 %v1847, %v1850
        %v1852 = vsel %vm1790, %v1842, %v1851
        %v1854 = vshrl.u32 %v1441, 16
        %v1856 = vrot.slane %v1854, 1
        %v1857 = vshll.u32 %v1441, 16
        %v1859 = vrot.slane %v1857, 2
        %v1860 = vor.u32 %v1856, %v1859
        %v1861 = vsel %vm1790, %v1851, %v1860
        %v1863 = vshrl.u32 %v1442, 16
        %v1865 = vrot.slane %v1863, 1
        %v1866 = vshll.u32 %v1442, 16
        %v1868 = vrot.slane %v1866, 2
        %v1869 = vor.u32 %v1865, %v1868
        %v1870 = vsel %vm1790, %v1860, %v1869
        %v1872 = vshrl.u32 %v1443, 16
        %v1874 = vrot.slane %v1872, 1
        %v1875 = vshll.u32 %v1443, 16
        %v1877 = vrot.slane %v1875, 2
        %v1878 = vor.u32 %v1874, %v1877
        %v1879 = vsel %vm1790, %v1869, %v1878
        %v1881 = vshrl.u32 %v1444, 16
        %v1883 = vrot.slane %v1881, 1
        %v1884 = vshll.u32 %v1444, 16
        %v1886 = vrot.slane %v1884, 2
        %v1887 = vor.u32 %v1883, %v1886
        %v1888 = vsel %vm1790, %v1878, %v1887
        %v1890 = vshrl.u32 %v1445, 16
        %v1892 = vrot.slane %v1890, 1
        %v1893 = vshll.u32 %v1445, 16
        %v1895 = vrot.slane %v1893, 2
        %v1896 = vor.u32 %v1892, %v1895
        %v1897 = vsel %vm1790, %v1887, %v1896
        %v1899 = vshrl.u32 %v1446, 16
        %v1901 = vrot.slane %v1899, 1
        %v1902 = vshll.u32 %v1446, 16
        %v1904 = vrot.slane %v1902, 2
        %v1905 = vor.u32 %v1901, %v1904
        %v1906 = vsel %vm1790, %v1896, %v1905
        %v1908 = vshrl.u32 %v1447, 16
        %v1910 = vrot.slane %v1908, 1
        %v1911 = vshll.u32 %v1447, 16
        %v1913 = vrot.slane %v1911, 2
        %v1914 = vor.u32 %v1910, %v1913
        %v1915 = vsel %vm1790, %v1905, %v1914
        %v1917 = vshrl.u32 %v1448, 16
        %v1919 = vrot.slane %v1917, 1
        %v1920 = vshll.u32 %v1448, 16
        %v1922 = vrot.slane %v1920, 2
        %v1923 = vor.u32 %v1919, %v1922
        %v1924 = vsel %vm1790, %v1914, %v1923
        %v1926 = vshrl.u32 %v1449, 16
        %v1928 = vrot.slane %v1926, 1
        %v1929 = vshll.u32 %v1449, 16
        %v1931 = vrot.slane %v1929, 2
        %v1932 = vor.u32 %v1928, %v1931
        %v1933 = vsel %vm1790, %v1923, %v1932
        %v1935 = vshrl.u32 %v1450, 16
        %v1937 = vrot.slane %v1935, 1
        %v1938 = vshll.u32 %v1450, 16
        %v1940 = vrot.slane %v1938, 2
        %v1941 = vor.u32 %v1937, %v1940
        %v1942 = vsel %vm1790, %v1932, %v1941
        %v1944 = vshrl.u32 %v1451, 16
        %v1946 = vrot.slane %v1944, 1
        %v1947 = vshll.u32 %v1451, 16
        %v1949 = vrot.slane %v1947, 2
        %v1950 = vor.u32 %v1946, %v1949
        %v1951 = vsel %vm1790, %v1941, %v1950
        %v1953 = vshrl.u32 %v1789, 16
        %v1955 = vrot.slane %v1953, 1
        %v1956 = vshll.u32 %v1789, 16
        %v1958 = vrot.slane %v1956, 2
        %v1959 = vor.u32 %v1955, %v1958
        %v1960 = vsel %vm1790, %v1950, %v1959
        %v1995 = vunpack.c.l.b16 %v1771
        %v1996 = vunpack.c.l.b16 %v1772
        %v1997 = vunpack.c.l.b16 %v1773
        %v1998 = vunpack.c.l.b16 %v1774
        %v1999 = vunpack.c.l.b16 %v1775
        %v2000 = vunpack.c.l.b16 %v1776
        %v2001 = vunpack.c.l.b16 %v1777
        %v2002 = vunpack.c.l.b16 %v1778
        %v2003 = vunpack.c.l.b16 %v1779
        %v2004 = vunpack.c.l.b16 %v1780
        %v2005 = vunpack.c.l.b16 %v1781
        %v2006 = vunpack.c.l.b16 %v1782
        %v2007 = vunpack.c.l.b16 %v1783
        %v2008 = vunpack.c.l.b16 %v1784
        %v2009 = vunpack.c.l.b16 %v1785
        %v2010 = vunpack.c.l.b16 %v1786
        %v2011 = vpack.c.b16 %v1996, %v1995
        %v2012 = vpack.c.b16 %v1998, %v1997
        %v2013 = vpack.c.b16 %v2000, %v1999
        %v2014 = vpack.c.b16 %v2002, %v2001
        %v2015 = vpack.c.b16 %v2004, %v2003
        %v2016 = vpack.c.b16 %v2006, %v2005
        %v2017 = vpack.c.b16 %v2008, %v2007
        %v2018 = vpack.c.b16 %v2010, %v2009
        %2027 = vmatprep.subr.bf16.mxu0 0
        %2028 = vmatpush1.bf16.msra.mxu0 %v2011
        %2029 = vmatprep.subr.bf16.mxu0 0
        %2030 = vmatpush1.bf16.msra.mxu0 %v2012
        %2031 = vmatprep.subr.bf16.mxu0 0
        %2032 = vmatpush1.bf16.msra.mxu0 %v2013
        %2033 = vmatprep.subr.bf16.mxu0 0
        %2034 = vmatpush1.bf16.msra.mxu0 %v2014
        %2035 = vmatprep.subr.bf16.mxu0 0
        %2036 = vmatpush1.bf16.msra.mxu0 %v2015
        %2037 = vmatprep.subr.bf16.mxu0 0
        %2038 = vmatpush1.bf16.msra.mxu0 %v2016
        %2039 = vmatprep.subr.bf16.mxu0 0
        %2040 = vmatpush1.bf16.msra.mxu0 %v2017
        %2041 = vmatprep.subr.bf16.mxu0 0
        %2042 = vmatpush1.bf16.msra.mxu0 %v2018
        %2043 = vmatprep.subr.bf16.mxu0 0
        %2044 = vmatpush1.bf16.msra.mxu0 0
        %2045 = vmatprep.subr.bf16.mxu0 0
        %2046 = vmatpush1.bf16.msra.mxu0 0
        %2047 = vmatprep.subr.bf16.mxu0 0
        %2048 = vmatpush1.bf16.msra.mxu0 0
        %2049 = vmatprep.subr.bf16.mxu0 0
        %2050 = vmatpush1.bf16.msra.mxu0 0
        %2051 = vmatprep.subr.bf16.mxu0 0
        %2052 = vmatpush1.bf16.msra.mxu0 0
        %2053 = vmatprep.subr.bf16.mxu0 0
        %2054 = vmatpush1.bf16.msra.mxu0 0
        %2055 = vmatprep.subr.bf16.mxu0 0
        %2056 = vmatpush1.bf16.msra.mxu0 0
        %2057 = vmatprep.subr.bf16.mxu0 0
        %2058 = vmatpush1.bf16.msra.mxu0 0
        %2059 = vmatprep.mubr.bf16.mxu0 0
        %2060 = vmatmul.mubr.bf16.gmra.mrb[0].mxu0 %v1807
        %v2061 = vpop.f32.mrb[0].mxu0
        %v2062 = vadd.f32 0.0, %v2061
        %v2063 = vpop.f32.mrb[0].mxu0
        %v2064 = vpop.f32.mrb[0].mxu0
        %v2065 = vadd.f32 0.0, %v2064
        %v2066 = vpop.f32.mrb[0].mxu0
        %2067 = vmatprep.mubr.bf16.mxu0 0
        %2068 = vmatmul.mubr.bf16.gmra.mrb[0].mxu0 %v1816
        %v2069 = vpop.f32.mrb[0].mxu0
        %v2070 = vadd.f32 0.0, %v2069
        %v2071 = vpop.f32.mrb[0].mxu0
        %v2072 = vpop.f32.mrb[0].mxu0
        %v2073 = vadd.f32 0.0, %v2072
        %v2074 = vpop.f32.mrb[0].mxu0
        %2075 = vmatprep.mubr.bf16.mxu0 0
        %2076 = vmatmul.mubr.bf16.gmra.mrb[0].mxu0 %v1825
        %v2077 = vpop.f32.mrb[0].mxu0
        %v2078 = vadd.f32 0.0, %v2077
        %v2079 = vpop.f32.mrb[0].mxu0
        %v2080 = vpop.f32.mrb[0].mxu0
        %v2081 = vadd.f32 0.0, %v2080
        %v2082 = vpop.f32.mrb[0].mxu0
        %2083 = vmatprep.mubr.bf16.mxu0 0
        %2084 = vmatmul.mubr.bf16.gmra.mrb[0].mxu0 %v1834
        %v2085 = vpop.f32.mrb[0].mxu0
        %v2086 = vadd.f32 0.0, %v2085
        %v2087 = vpop.f32.mrb[0].mxu0
        %v2088 = vpop.f32.mrb[0].mxu0
        %v2089 = vadd.f32 0.0, %v2088
        %v2090 = vpop.f32.mrb[0].mxu0
        %2091 = vmatprep.mubr.bf16.mxu0 0
        %2092 = vmatmul.mubr.bf16.gmra.mrb[0].mxu0 %v1843
        %v2093 = vpop.f32.mrb[0].mxu0
        %v2094 = vadd.f32 0.0, %v2093
        %v2095 = vpop.f32.mrb[0].mxu0
        %v2096 = vpop.f32.mrb[0].mxu0
        %v2097 = vadd.f32 0.0, %v2096
        %v2098 = vpop.f32.mrb[0].mxu0
        %2099 = vmatprep.mubr.bf16.mxu0 0
        %2100 = vmatmul.mubr.bf16.gmra.mrb[0].mxu0 %v1852
        %v2101 = vpop.f32.mrb[0].mxu0
        %v2102 = vadd.f32 0.0, %v2101
        %v2103 = vpop.f32.mrb[0].mxu0
        %v2104 = vpop.f32.mrb[0].mxu0
        %v2105 = vadd.f32 0.0, %v2104
        %v2106 = vpop.f32.mrb[0].mxu0
        %2107 = vmatprep.mubr.bf16.mxu0 0
        %2108 = vmatmul.mubr.bf16.gmra.mrb[0].mxu0 %v1861
        %v2109 = vpop.f32.mrb[0].mxu0
        %v2110 = vadd.f32 0.0, %v2109
        %v2111 = vpop.f32.mrb[0].mxu0
        %v2112 = vpop.f32.mrb[0].mxu0
        %v2113 = vadd.f32 0.0, %v2112
        %v2114 = vpop.f32.mrb[0].mxu0
        %2115 = vmatprep.mubr.bf16.mxu0 0
        %2116 = vmatmul.mubr.bf16.gmra.mrb[0].mxu0 %v1870
        %v2117 = vpop.f32.mrb[0].mxu0
        %v2118 = vadd.f32 0.0, %v2117
        %v2119 = vpop.f32.mrb[0].mxu0
        %v2120 = vpop.f32.mrb[0].mxu0
        %v2121 = vadd.f32 0.0, %v2120
        %v2122 = vpop.f32.mrb[0].mxu0
        %2123 = vmatprep.mubr.bf16.mxu0 0
        %2124 = vmatmul.mubr.bf16.gmra.mrb[0].mxu0 %v1879
        %v2125 = vpop.f32.mrb[0].mxu0
        %v2126 = vadd.f32 0.0, %v2125
        %v2127 = vpop.f32.mrb[0].mxu0
        %v2128 = vpop.f32.mrb[0].mxu0
        %v2129 = vadd.f32 0.0, %v2128
        %v2130 = vpop.f32.mrb[0].mxu0
        %2131 = vmatprep.mubr.bf16.mxu0 0
        %2132 = vmatmul.mubr.bf16.gmra.mrb[0].mxu0 %v1888
        %v2133 = vpop.f32.mrb[0].mxu0
        %v2134 = vadd.f32 0.0, %v2133
        %v2135 = vpop.f32.mrb[0].mxu0
        %v2136 = vpop.f32.mrb[0].mxu0
        %v2137 = vadd.f32 0.0, %v2136
        %v2138 = vpop.f32.mrb[0].mxu0
        %2139 = vmatprep.mubr.bf16.mxu0 0
        %2140 = vmatmul.mubr.bf16.gmra.mrb[0].mxu0 %v1897
        %v2141 = vpop.f32.mrb[0].mxu0
        %v2142 = vadd.f32 0.0, %v2141
        %v2143 = vpop.f32.mrb[0].mxu0
        %v2144 = vpop.f32.mrb[0].mxu0
        %v2145 = vadd.f32 0.0, %v2144
        %v2146 = vpop.f32.mrb[0].mxu0
        %2147 = vmatprep.mubr.bf16.mxu0 0
        %2148 = vmatmul.mubr.bf16.gmra.mrb[0].mxu0 %v1906
        %v2149 = vpop.f32.mrb[0].mxu0
        %v2150 = vadd.f32 0.0, %v2149
        %v2151 = vpop.f32.mrb[0].mxu0
        %v2152 = vpop.f32.mrb[0].mxu0
        %v2153 = vadd.f32 0.0, %v2152
        %v2154 = vpop.f32.mrb[0].mxu0
        %2155 = vmatprep.mubr.bf16.mxu0 0
        %2156 = vmatmul.mubr.bf16.gmra.mrb[0].mxu0 %v1915
        %v2157 = vpop.f32.mrb[0].mxu0
        %v2158 = vadd.f32 0.0, %v2157
        %v2159 = vpop.f32.mrb[0].mxu0
        %v2160 = vpop.f32.mrb[0].mxu0
        %v2161 = vadd.f32 0.0, %v2160
        %v2162 = vpop.f32.mrb[0].mxu0
        %2163 = vmatprep.mubr.bf16.mxu0 0
        %2164 = vmatmul.mubr.bf16.gmra.mrb[0].mxu0 %v1924
        %v2165 = vpop.f32.mrb[0].mxu0
        %v2166 = vadd.f32 0.0, %v2165
        %v2167 = vpop.f32.mrb[0].mxu0
        %v2168 = vpop.f32.mrb[0].mxu0
        %v2169 = vadd.f32 0.0, %v2168
        %v2170 = vpop.f32.mrb[0].mxu0
        %2171 = vmatprep.mubr.bf16.mxu0 0
        %2172 = vmatmul.mubr.bf16.gmra.mrb[0].mxu0 %v1933
        %v2173 = vpop.f32.mrb[0].mxu0
        %v2174 = vadd.f32 0.0, %v2173
        %v2175 = vpop.f32.mrb[0].mxu0
        %v2176 = vpop.f32.mrb[0].mxu0
        %v2177 = vadd.f32 0.0, %v2176
        %v2178 = vpop.f32.mrb[0].mxu0
        %2179 = vmatprep.mubr.bf16.mxu0 0
        %2180 = vmatmul.mubr.bf16.gmra.mrb[0].mxu0 %v1942
        %v2181 = vpop.f32.mrb[0].mxu0
        %v2182 = vadd.f32 0.0, %v2181
        %v2183 = vpop.f32.mrb[0].mxu0
        %v2184 = vpop.f32.mrb[0].mxu0
        %v2185 = vadd.f32 0.0, %v2184
        %v2186 = vpop.f32.mrb[0].mxu0
        %2187 = vmatprep.mubr.bf16.mxu0 0
        %2188 = vmatmul.mubr.bf16.gmra.mrb[0].mxu0 %v1951
        %v2189 = vpop.f32.mrb[0].mxu0
        %v2190 = vadd.f32 0.0, %v2189
        %v2191 = vpop.f32.mrb[0].mxu0
        %v2192 = vpop.f32.mrb[0].mxu0
        %v2193 = vadd.f32 0.0, %v2192
        %v2194 = vpop.f32.mrb[0].mxu0
        %2195 = vmatprep.mubr.bf16.mxu0 0
        %2196 = vmatmul.mubr.bf16.gmra.mrb[0].mxu0 %v1960
        %v2197 = vpop.f32.mrb[0].mxu0
        %v2198 = vadd.f32 0.0, %v2197
        %v2199 = vpop.f32.mrb[0].mxu0
        %v2200 = vpop.f32.mrb[0].mxu0
        %v2201 = vadd.f32 0.0, %v2200
        %v2202 = vpop.f32.mrb[0].mxu0
        %2203 = vdwg.mxu0
        %v2204 = vadd.f32 %v1733, %v2062
        %v2205 = vadd.f32 %v1734, %v2065
        %v2206 = vadd.f32 %v1735, %v2070
        %v2207 = vadd.f32 %v1736, %v2073
        %v2208 = vadd.f32 %v1737, %v2078
        %v2209 = vadd.f32 %v1738, %v2081
        %v2210 = vadd.f32 %v1739, %v2086
        %v2211 = vadd.f32 %v1740, %v2089
        %v2212 = vadd.f32 %v1741, %v2094
        %v2213 = vadd.f32 %v1742, %v2097
        %v2214 = vadd.f32 %v1743, %v2102
        %v2215 = vadd.f32 %v1744, %v2105
        %v2216 = vadd.f32 %v1745, %v2110
        %v2217 = vadd.f32 %v1746, %v2113
        %v2218 = vadd.f32 %v1747, %v2118
        %v2219 = vadd.f32 %v1748, %v2121
        %v2220 = vadd.f32 %v1749, %v2126
        %v2221 = vadd.f32 %v1750, %v2129
        %v2222 = vadd.f32 %v1751, %v2134
        %v2223 = vadd.f32 %v1752, %v2137
        %v2224 = vadd.f32 %v1753, %v2142
        %v2225 = vadd.f32 %v1754, %v2145
        %v2226 = vadd.f32 %v1755, %v2150
        %v2227 = vadd.f32 %v1756, %v2153
        %v2228 = vadd.f32 %v1757, %v2158
        %v2229 = vadd.f32 %v1758, %v2161
        %v2230 = vadd.f32 %v1759, %v2166
        %v2231 = vadd.f32 %v1760, %v2169
        %v2232 = vadd.f32 %v1761, %v2174
        %v2233 = vadd.f32 %v1762, %v2177
        %v2234 = vadd.f32 %v1763, %v2182
        %v2235 = vadd.f32 %v1764, %v2185
        %v2236 = vadd.f32 %v1765, %v2190
        %v2237 = vadd.f32 %v1766, %v2193
        %v2238 = vadd.f32 %v1767, %v2198
        %v2239 = vadd.f32 %v1768, %v2201
        %v2240 = vld [vmem:[%s168 + $0x8] sm:$0xc]
        %s2241 = scalar_lea.vmem %s1, 320
        %v2242 = vld [vmem:[%s2241] sm:$0xf]
        %v2243 = vld [vmem:[%s2241 + $0x4] sm:$0xf]
        %v2244 = vld [vmem:[%s2241 + $0x8] sm:$0xf]
        %v2245 = vld [vmem:[%s2241 + $0xc] sm:$0xf]
        %v2246 = vld [vmem:[%s2241 + $0x10] sm:$0xf]
        %v2247 = vld [vmem:[%s2241 + $0x14] sm:$0xf]
        %v2248 = vld [vmem:[%s2241 + $0x18] sm:$0xf]
        %v2249 = vld [vmem:[%s2241 + $0x1c] sm:$0xf]
        %v2250 = vld [vmem:[%s2241 + $0x20] sm:$0xf]
        %v2251 = vld [vmem:[%s2241 + $0x24] sm:$0xf]
        %v2252 = vld [vmem:[%s2241 + $0x28] sm:$0xf]
        %v2253 = vld [vmem:[%s2241 + $0x2c] sm:$0xf]
        %v2254 = vld [vmem:[%s2241 + $0x30] sm:$0xf]
        %v2255 = vld [vmem:[%s2241 + $0x34] sm:$0xf]
        %v2256 = vld [vmem:[%s2241 + $0x38] sm:$0xf]
        %v2257 = vld [vmem:[%s2241 + $0x3c] sm:$0xf]
        %v2259 = vunpack.c.l.b16 %v2240
        %v2260 = vpack.c.b16 %v1398, %v2259
        %vm2261 = vcmask 1045504
        %v2262 = vrot.slane %v2260, 2
        %v2263 = vrot.slane %v1435, 2
        %v2264 = vsel %vm2261, %v2262, %v2263
        %v2265 = vrot.slane %v1436, 2
        %v2266 = vsel %vm2261, %v2263, %v2265
        %v2267 = vrot.slane %v1437, 2
        %v2268 = vsel %vm2261, %v2265, %v2267
        %v2269 = vrot.slane %v1438, 2
        %v2270 = vsel %vm2261, %v2267, %v2269
        %v2271 = vrot.slane %v1439, 2
        %v2272 = vsel %vm2261, %v2269, %v2271
        %v2273 = vrot.slane %v1440, 2
        %v2274 = vsel %vm2261, %v2271, %v2273
        %v2275 = vrot.slane %v1441, 2
        %v2276 = vsel %vm2261, %v2273, %v2275
        %v2277 = vrot.slane %v1442, 2
        %v2278 = vsel %vm2261, %v2275, %v2277
        %v2279 = vrot.slane %v1443, 2
        %v2280 = vsel %vm2261, %v2277, %v2279
        %v2281 = vrot.slane %v1444, 2
        %v2282 = vsel %vm2261, %v2279, %v2281
        %v2283 = vrot.slane %v1445, 2
        %v2284 = vsel %vm2261, %v2281, %v2283
        %v2285 = vrot.slane %v1446, 2
        %v2286 = vsel %vm2261, %v2283, %v2285
        %v2287 = vrot.slane %v1447, 2
        %v2288 = vsel %vm2261, %v2285, %v2287
        %v2289 = vrot.slane %v1448, 2
        %v2290 = vsel %vm2261, %v2287, %v2289
        %v2291 = vrot.slane %v1449, 2
        %v2292 = vsel %vm2261, %v2289, %v2291
        %v2293 = vrot.slane %v1450, 2
        %v2294 = vsel %vm2261, %v2291, %v2293
        %v2295 = vrot.slane %v1451, 2
        %v2296 = vsel %vm2261, %v2293, %v2295
        %v2297 = vrot.slane %v1789, 2
        %v2298 = vsel %vm2261, %v2295, %v2297
        %v2333 = vunpack.c.l.b16 %v2242
        %v2334 = vunpack.c.l.b16 %v2243
        %v2335 = vunpack.c.l.b16 %v2244
        %v2336 = vunpack.c.l.b16 %v2245
        %v2337 = vunpack.c.l.b16 %v2246
        %v2338 = vunpack.c.l.b16 %v2247
        %v2339 = vunpack.c.l.b16 %v2248
        %v2340 = vunpack.c.l.b16 %v2249
        %v2341 = vunpack.c.l.b16 %v2250
        %v2342 = vunpack.c.l.b16 %v2251
        %v2343 = vunpack.c.l.b16 %v2252
        %v2344 = vunpack.c.l.b16 %v2253
        %v2345 = vunpack.c.l.b16 %v2254
        %v2346 = vunpack.c.l.b16 %v2255
        %v2347 = vunpack.c.l.b16 %v2256
        %v2348 = vunpack.c.l.b16 %v2257
        %v2349 = vpack.c.b16 %v2334, %v2333
        %v2350 = vpack.c.b16 %v2336, %v2335
        %v2351 = vpack.c.b16 %v2338, %v2337
        %v2352 = vpack.c.b16 %v2340, %v2339
        %v2353 = vpack.c.b16 %v2342, %v2341
        %v2354 = vpack.c.b16 %v2344, %v2343
        %v2355 = vpack.c.b16 %v2346, %v2345
        %v2356 = vpack.c.b16 %v2348, %v2347
        %2365 = vmatprep.subr.bf16.mxu0 0
        %2366 = vmatpush1.bf16.msra.mxu0 %v2349
        %2367 = vmatprep.subr.bf16.mxu0 0
        %2368 = vmatpush1.bf16.msra.mxu0 %v2350
        %2369 = vmatprep.subr.bf16.mxu0 0
        %2370 = vmatpush1.bf16.msra.mxu0 %v2351
        %2371 = vmatprep.subr.bf16.mxu0 0
        %2372 = vmatpush1.bf16.msra.mxu0 %v2352
        %2373 = vmatprep.subr.bf16.mxu0 0
        %2374 = vmatpush1.bf16.msra.mxu0 %v2353
        %2375 = vmatprep.subr.bf16.mxu0 0
        %2376 = vmatpush1.bf16.msra.mxu0 %v2354
        %2377 = vmatprep.subr.bf16.mxu0 0
        %2378 = vmatpush1.bf16.msra.mxu0 %v2355
        %2379 = vmatprep.subr.bf16.mxu0 0
        %2380 = vmatpush1.bf16.msra.mxu0 %v2356
        %2381 = vmatprep.subr.bf16.mxu0 0
        %2382 = vmatpush1.bf16.msra.mxu0 0
        %2383 = vmatprep.subr.bf16.mxu0 0
        %2384 = vmatpush1.bf16.msra.mxu0 0
        %2385 = vmatprep.subr.bf16.mxu0 0
        %2386 = vmatpush1.bf16.msra.mxu0 0
        %2387 = vmatprep.subr.bf16.mxu0 0
        %2388 = vmatpush1.bf16.msra.mxu0 0
        %2389 = vmatprep.subr.bf16.mxu0 0
        %2390 = vmatpush1.bf16.msra.mxu0 0
        %2391 = vmatprep.subr.bf16.mxu0 0
        %2392 = vmatpush1.bf16.msra.mxu0 0
        %2393 = vmatprep.subr.bf16.mxu0 0
        %2394 = vmatpush1.bf16.msra.mxu0 0
        %2395 = vmatprep.subr.bf16.mxu0 0
        %2396 = vmatpush1.bf16.msra.mxu0 0
        %2397 = vmatprep.mubr.bf16.mxu0 0
        %2398 = vmatmul.mubr.bf16.gmra.mrb[0].mxu0 %v2264
        %v2399 = vpop.f32.mrb[0].mxu0
        %v2400 = vadd.f32 0.0, %v2399
        %v2401 = vpop.f32.mrb[0].mxu0
        %v2402 = vpop.f32.mrb[0].mxu0
        %v2403 = vadd.f32 0.0, %v2402
        %v2404 = vpop.f32.mrb[0].mxu0
        %2405 = vmatprep.mubr.bf16.mxu0 0
        %2406 = vmatmul.mubr.bf16.gmra.mrb[0].mxu0 %v2266
        %v2407 = vpop.f32.mrb[0].mxu0
        %v2408 = vadd.f32 0.0, %v2407
        %v2409 = vpop.f32.mrb[0].mxu0
        %v2410 = vpop.f32.mrb[0].mxu0
        %v2411 = vadd.f32 0.0, %v2410
        %v2412 = vpop.f32.mrb[0].mxu0
        %2413 = vmatprep.mubr.bf16.mxu0 0
        %2414 = vmatmul.mubr.bf16.gmra.mrb[0].mxu0 %v2268
        %v2415 = vpop.f32.mrb[0].mxu0
        %v2416 = vadd.f32 0.0, %v2415
        %v2417 = vpop.f32.mrb[0].mxu0
        %v2418 = vpop.f32.mrb[0].mxu0
        %v2419 = vadd.f32 0.0, %v2418
        %v2420 = vpop.f32.mrb[0].mxu0
        %2421 = vmatprep.mubr.bf16.mxu0 0
        %2422 = vmatmul.mubr.bf16.gmra.mrb[0].mxu0 %v2270
        %v2423 = vpop.f32.mrb[0].mxu0
        %v2424 = vadd.f32 0.0, %v2423
        %v2425 = vpop.f32.mrb[0].mxu0
        %v2426 = vpop.f32.mrb[0].mxu0
        %v2427 = vadd.f32 0.0, %v2426
        %v2428 = vpop.f32.mrb[0].mxu0
        %2429 = vmatprep.mubr.bf16.mxu0 0
        %2430 = vmatmul.mubr.bf16.gmra.mrb[0].mxu0 %v2272
        %v2431 = vpop.f32.mrb[0].mxu0
        %v2432 = vadd.f32 0.0, %v2431
        %v2433 = vpop.f32.mrb[0].mxu0
        %v2434 = vpop.f32.mrb[0].mxu0
        %v2435 = vadd.f32 0.0, %v2434
        %v2436 = vpop.f32.mrb[0].mxu0
        %2437 = vmatprep.mubr.bf16.mxu0 0
        %2438 = vmatmul.mubr.bf16.gmra.mrb[0].mxu0 %v2274
        %v2439 = vpop.f32.mrb[0].mxu0
        %v2440 = vadd.f32 0.0, %v2439
        %v2441 = vpop.f32.mrb[0].mxu0
        %v2442 = vpop.f32.mrb[0].mxu0
        %v2443 = vadd.f32 0.0, %v2442
        %v2444 = vpop.f32.mrb[0].mxu0
        %2445 = vmatprep.mubr.bf16.mxu0 0
        %2446 = vmatmul.mubr.bf16.gmra.mrb[0].mxu0 %v2276
        %v2447 = vpop.f32.mrb[0].mxu0
        %v2448 = vadd.f32 0.0, %v2447
        %v2449 = vpop.f32.mrb[0].mxu0
        %v2450 = vpop.f32.mrb[0].mxu0
        %v2451 = vadd.f32 0.0, %v2450
        %v2452 = vpop.f32.mrb[0].mxu0
        %2453 = vmatprep.mubr.bf16.mxu0 0
        %2454 = vmatmul.mubr.bf16.gmra.mrb[0].mxu0 %v2278
        %v2455 = vpop.f32.mrb[0].mxu0
        %v2456 = vadd.f32 0.0, %v2455
        %v2457 = vpop.f32.mrb[0].mxu0
        %v2458 = vpop.f32.mrb[0].mxu0
        %v2459 = vadd.f32 0.0, %v2458
        %v2460 = vpop.f32.mrb[0].mxu0
        %2461 = vmatprep.mubr.bf16.mxu0 0
        %2462 = vmatmul.mubr.bf16.gmra.mrb[0].mxu0 %v2280
        %v2463 = vpop.f32.mrb[0].mxu0
        %v2464 = vadd.f32 0.0, %v2463
        %v2465 = vpop.f32.mrb[0].mxu0
        %v2466 = vpop.f32.mrb[0].mxu0
        %v2467 = vadd.f32 0.0, %v2466
        %v2468 = vpop.f32.mrb[0].mxu0
        %2469 = vmatprep.mubr.bf16.mxu0 0
        %2470 = vmatmul.mubr.bf16.gmra.mrb[0].mxu0 %v2282
        %v2471 = vpop.f32.mrb[0].mxu0
        %v2472 = vadd.f32 0.0, %v2471
        %v2473 = vpop.f32.mrb[0].mxu0
        %v2474 = vpop.f32.mrb[0].mxu0
        %v2475 = vadd.f32 0.0, %v2474
        %v2476 = vpop.f32.mrb[0].mxu0
        %2477 = vmatprep.mubr.bf16.mxu0 0
        %2478 = vmatmul.mubr.bf16.gmra.mrb[0].mxu0 %v2284
        %v2479 = vpop.f32.mrb[0].mxu0
        %v2480 = vadd.f32 0.0, %v2479
        %v2481 = vpop.f32.mrb[0].mxu0
        %v2482 = vpop.f32.mrb[0].mxu0
        %v2483 = vadd.f32 0.0, %v2482
        %v2484 = vpop.f32.mrb[0].mxu0
        %2485 = vmatprep.mubr.bf16.mxu0 0
        %2486 = vmatmul.mubr.bf16.gmra.mrb[0].mxu0 %v2286
        %v2487 = vpop.f32.mrb[0].mxu0
        %v2488 = vadd.f32 0.0, %v2487
        %v2489 = vpop.f32.mrb[0].mxu0
        %v2490 = vpop.f32.mrb[0].mxu0
        %v2491 = vadd.f32 0.0, %v2490
        %v2492 = vpop.f32.mrb[0].mxu0
        %2493 = vmatprep.mubr.bf16.mxu0 0
        %2494 = vmatmul.mubr.bf16.gmra.mrb[0].mxu0 %v2288
        %v2495 = vpop.f32.mrb[0].mxu0
        %v2496 = vadd.f32 0.0, %v2495
        %v2497 = vpop.f32.mrb[0].mxu0
        %v2498 = vpop.f32.mrb[0].mxu0
        %v2499 = vadd.f32 0.0, %v2498
        %v2500 = vpop.f32.mrb[0].mxu0
        %2501 = vmatprep.mubr.bf16.mxu0 0
        %2502 = vmatmul.mubr.bf16.gmra.mrb[0].mxu0 %v2290
        %v2503 = vpop.f32.mrb[0].mxu0
        %v2504 = vadd.f32 0.0, %v2503
        %v2505 = vpop.f32.mrb[0].mxu0
        %v2506 = vpop.f32.mrb[0].mxu0
        %v2507 = vadd.f32 0.0, %v2506
        %v2508 = vpop.f32.mrb[0].mxu0
        %2509 = vmatprep.mubr.bf16.mxu0 0
        %2510 = vmatmul.mubr.bf16.gmra.mrb[0].mxu0 %v2292
        %v2511 = vpop.f32.mrb[0].mxu0
        %v2512 = vadd.f32 0.0, %v2511
        %v2513 = vpop.f32.mrb[0].mxu0
        %v2514 = vpop.f32.mrb[0].mxu0
        %v2515 = vadd.f32 0.0, %v2514
        %v2516 = vpop.f32.mrb[0].mxu0
        %2517 = vmatprep.mubr.bf16.mxu0 0
        %2518 = vmatmul.mubr.bf16.gmra.mrb[0].mxu0 %v2294
        %v2519 = vpop.f32.mrb[0].mxu0
        %v2520 = vadd.f32 0.0, %v2519
        %v2521 = vpop.f32.mrb[0].mxu0
        %v2522 = vpop.f32.mrb[0].mxu0
        %v2523 = vadd.f32 0.0, %v2522
        %v2524 = vpop.f32.mrb[0].mxu0
        %2525 = vmatprep.mubr.bf16.mxu0 0
        %2526 = vmatmul.mubr.bf16.gmra.mrb[0].mxu0 %v2296
        %v2527 = vpop.f32.mrb[0].mxu0
        %v2528 = vadd.f32 0.0, %v2527
        %v2529 = vpop.f32.mrb[0].mxu0
        %v2530 = vpop.f32.mrb[0].mxu0
        %v2531 = vadd.f32 0.0, %v2530
        %v2532 = vpop.f32.mrb[0].mxu0
        %2533 = vmatprep.mubr.bf16.mxu0 0
        %2534 = vmatmul.mubr.bf16.gmra.mrb[0].mxu0 %v2298
        %v2535 = vpop.f32.mrb[0].mxu0
        %v2536 = vadd.f32 0.0, %v2535
        %v2537 = vpop.f32.mrb[0].mxu0
        %v2538 = vpop.f32.mrb[0].mxu0
        %v2539 = vadd.f32 0.0, %v2538
        %v2540 = vpop.f32.mrb[0].mxu0
        %2541 = vdwg.mxu0
        %v2542 = vadd.f32 %v2204, %v2400
        %v2543 = vadd.f32 %v2205, %v2403
        %v2544 = vadd.f32 %v2206, %v2408
        %v2545 = vadd.f32 %v2207, %v2411
        %v2546 = vadd.f32 %v2208, %v2416
        %v2547 = vadd.f32 %v2209, %v2419
        %v2548 = vadd.f32 %v2210, %v2424
        %v2549 = vadd.f32 %v2211, %v2427
        %v2550 = vadd.f32 %v2212, %v2432
        %v2551 = vadd.f32 %v2213, %v2435
        %v2552 = vadd.f32 %v2214, %v2440
        %v2553 = vadd.f32 %v2215, %v2443
        %v2554 = vadd.f32 %v2216, %v2448
        %v2555 = vadd.f32 %v2217, %v2451
        %v2556 = vadd.f32 %v2218, %v2456
        %v2557 = vadd.f32 %v2219, %v2459
        %v2558 = vadd.f32 %v2220, %v2464
        %v2559 = vadd.f32 %v2221, %v2467
        %v2560 = vadd.f32 %v2222, %v2472
        %v2561 = vadd.f32 %v2223, %v2475
        %v2562 = vadd.f32 %v2224, %v2480
        %v2563 = vadd.f32 %v2225, %v2483
        %v2564 = vadd.f32 %v2226, %v2488
        %v2565 = vadd.f32 %v2227, %v2491
        %v2566 = vadd.f32 %v2228, %v2496
        %v2567 = vadd.f32 %v2229, %v2499
        %v2568 = vadd.f32 %v2230, %v2504
        %v2569 = vadd.f32 %v2231, %v2507
        %v2570 = vadd.f32 %v2232, %v2512
        %v2571 = vadd.f32 %v2233, %v2515
        %v2572 = vadd.f32 %v2234, %v2520
        %v2573 = vadd.f32 %v2235, %v2523
        %v2574 = vadd.f32 %v2236, %v2528
        %v2575 = vadd.f32 %v2237, %v2531
        %v2576 = vadd.f32 %v2238, %v2536
        %v2577 = vadd.f32 %v2239, %v2539
        %v2578 = vld [vmem:[%s168 + $0x10] sm:$0xc]
        %v2579 = vld [vmem:[%s168 + $0x14] sm:$0xf]
        %v2580 = vld [vmem:[%s168 + $0x18] sm:$0xf]
        %v2581 = vld [vmem:[%s168 + $0x1c] sm:$0xf]
        %v2582 = vld [vmem:[%s168 + $0x20] sm:$0xf]
        %v2583 = vld [vmem:[%s168 + $0x24] sm:$0xf]
        %v2584 = vld [vmem:[%s168 + $0x28] sm:$0xf]
        %v2585 = vld [vmem:[%s168 + $0x2c] sm:$0xf]
        %v2586 = vld [vmem:[%s168 + $0x30] sm:$0xf]
        %v2587 = vld [vmem:[%s168 + $0x34] sm:$0xf]
        %v2588 = vld [vmem:[%s168 + $0x38] sm:$0xf]
        %v2589 = vld [vmem:[%s168 + $0x3c] sm:$0xf]
        %v2590 = vld [vmem:[%s168 + $0x40] sm:$0xf]
        %v2591 = vld [vmem:[%s168 + $0x44] sm:$0xf]
        %v2592 = vld [vmem:[%s168 + $0x48] sm:$0xf]
        %v2593 = vld [vmem:[%s168 + $0x4c] sm:$0xf]
        %v2594 = vld [vmem:[%s168 + $0x50] sm:$0xf]
        %v2595 = vld [vmem:[%s168 + $0x54] sm:$0xf]
        %v2596 = vld [vmem:[%s168 + $0x58] sm:$0xf]
        %v2597 = vld [vmem:[%s168 + $0x5c] sm:$0xf]
        %v2598 = vld [vmem:[%s168 + $0x60] sm:$0xf]
        %v2599 = vld [vmem:[%s168 + $0x64] sm:$0xf]
        %v2600 = vld [vmem:[%s168 + $0x68] sm:$0xf]
        %v2601 = vld [vmem:[%s168 + $0x6c] sm:$0xf]
        %v2602 = vld [vmem:[%s168 + $0x70] sm:$0xf]
        %v2603 = vld [vmem:[%s168 + $0x74] sm:$0xf]
        %v2604 = vld [vmem:[%s168 + $0x78] sm:$0xf]
        %v2605 = vld [vmem:[%s168 + $0x7c] sm:$0xf]
        %v2606 = vld [vmem:[%s168 + $0x80] sm:$0xf]
        %v2607 = vld [vmem:[%s168 + $0x84] sm:$0xf]
        %v2608 = vld [vmem:[%s168 + $0x88] sm:$0xf]
        %v2609 = vld [vmem:[%s168 + $0x8c] sm:$0xf]
        %v2610 = vld [vmem:[%s168 + $0x90] sm:$0xf]
        %v2611 = vld [vmem:[%s168 + $0x94] sm:$0xf]
        %v2612 = vld [vmem:[%s168 + $0x98] sm:$0xf]
        %v2613 = vld [vmem:[%s168 + $0x9c] sm:$0xf]
        %v2614 = vld [vmem:[%s168 + $0xa0] sm:$0x3]
        %s2615 = scalar_lea.vmem %s1, 384
        %v2616 = vld [vmem:[%s2615] sm:$0xf]
        %v2617 = vld [vmem:[%s2615 + $0x4] sm:$0xf]
        %v2618 = vld [vmem:[%s2615 + $0x8] sm:$0xf]
        %v2619 = vld [vmem:[%s2615 + $0xc] sm:$0xf]
        %v2620 = vld [vmem:[%s2615 + $0x10] sm:$0xf]
        %v2621 = vld [vmem:[%s2615 + $0x14] sm:$0xf]
        %v2622 = vld [vmem:[%s2615 + $0x18] sm:$0xf]
        %v2623 = vld [vmem:[%s2615 + $0x1c] sm:$0xf]
        %v2624 = vld [vmem:[%s2615 + $0x20] sm:$0xf]
        %v2625 = vld [vmem:[%s2615 + $0x24] sm:$0xf]
        %v2626 = vld [vmem:[%s2615 + $0x28] sm:$0xf]
        %v2627 = vld [vmem:[%s2615 + $0x2c] sm:$0xf]
        %v2628 = vld [vmem:[%s2615 + $0x30] sm:$0xf]
        %v2629 = vld [vmem:[%s2615 + $0x34] sm:$0xf]
        %v2630 = vld [vmem:[%s2615 + $0x38] sm:$0xf]
        %v2631 = vld [vmem:[%s2615 + $0x3c] sm:$0xf]
        %v2669 = vunpack.c.l.b16 %v2578
        %v2670 = vunpack.c.l.b16 %v2579
        %v2671 = vunpack.c.l.b16 %v2580
        %v2672 = vunpack.c.l.b16 %v2581
        %v2673 = vunpack.c.l.b16 %v2582
        %v2674 = vunpack.c.l.b16 %v2583
        %v2675 = vunpack.c.l.b16 %v2584
        %v2676 = vunpack.c.l.b16 %v2585
        %v2677 = vunpack.c.l.b16 %v2586
        %v2678 = vunpack.c.l.b16 %v2587
        %v2679 = vunpack.c.l.b16 %v2588
        %v2680 = vunpack.c.l.b16 %v2589
        %v2681 = vunpack.c.l.b16 %v2590
        %v2682 = vunpack.c.l.b16 %v2591
        %v2683 = vunpack.c.l.b16 %v2592
        %v2684 = vunpack.c.l.b16 %v2593
        %v2685 = vunpack.c.l.b16 %v2594
        %v2686 = vunpack.c.l.b16 %v2595
        %v2687 = vunpack.c.l.b16 %v2596
        %v2688 = vunpack.c.l.b16 %v2597
        %v2689 = vunpack.c.l.b16 %v2598
        %v2690 = vunpack.c.l.b16 %v2599
        %v2691 = vunpack.c.l.b16 %v2600
        %v2692 = vunpack.c.l.b16 %v2601
        %v2693 = vunpack.c.l.b16 %v2602
        %v2694 = vunpack.c.l.b16 %v2603
        %v2695 = vunpack.c.l.b16 %v2604
        %v2696 = vunpack.c.l.b16 %v2605
        %v2697 = vunpack.c.l.b16 %v2606
        %v2698 = vunpack.c.l.b16 %v2607
        %v2699 = vunpack.c.l.b16 %v2608
        %v2700 = vunpack.c.l.b16 %v2609
        %v2701 = vunpack.c.l.b16 %v2610
        %v2702 = vunpack.c.l.b16 %v2611
        %v2703 = vunpack.c.l.b16 %v2612
        %v2704 = vunpack.c.l.b16 %v2613
        %v2705 = vunpack.c.l.b16 %v2614
        %v2706 = vpack.c.b16 %v2670, %v2669
        %v2707 = vpack.c.b16 %v2672, %v2671
        %v2708 = vpack.c.b16 %v2674, %v2673
        %v2709 = vpack.c.b16 %v2676, %v2675
        %v2710 = vpack.c.b16 %v2678, %v2677
        %v2711 = vpack.c.b16 %v2680, %v2679
        %v2712 = vpack.c.b16 %v2682, %v2681
        %v2713 = vpack.c.b16 %v2684, %v2683
        %v2714 = vpack.c.b16 %v2686, %v2685
        %v2715 = vpack.c.b16 %v2688, %v2687
        %v2716 = vpack.c.b16 %v2690, %v2689
        %v2717 = vpack.c.b16 %v2692, %v2691
        %v2718 = vpack.c.b16 %v2694, %v2693
        %v2719 = vpack.c.b16 %v2696, %v2695
        %v2720 = vpack.c.b16 %v2698, %v2697
        %v2721 = vpack.c.b16 %v2700, %v2699
        %v2722 = vpack.c.b16 %v2702, %v2701
        %v2723 = vpack.c.b16 %v2704, %v2703
        %v2724 = vpack.c.b16 %v2705, %v2705
        %v2725 = vrot.slane %v2706, 2
        %v2726 = vrot.slane %v2707, 2
        %v2727 = vsel %vm2261, %v2725, %v2726
        %v2728 = vrot.slane %v2708, 2
        %v2729 = vsel %vm2261, %v2726, %v2728
        %v2730 = vrot.slane %v2709, 2
        %v2731 = vsel %vm2261, %v2728, %v2730
        %v2732 = vrot.slane %v2710, 2
        %v2733 = vsel %vm2261, %v2730, %v2732
        %v2734 = vrot.slane %v2711, 2
        %v2735 = vsel %vm2261, %v2732, %v2734
        %v2736 = vrot.slane %v2712, 2
        %v2737 = vsel %vm2261, %v2734, %v2736
        %v2738 = vrot.slane %v2713, 2
        %v2739 = vsel %vm2261, %v2736, %v2738
        %v2740 = vrot.slane %v2714, 2
        %v2741 = vsel %vm2261, %v2738, %v2740
        %v2742 = vrot.slane %v2715, 2
        %v2743 = vsel %vm2261, %v2740, %v2742
        %v2744 = vrot.slane %v2716, 2
        %v2745 = vsel %vm2261, %v2742, %v2744
        %v2746 = vrot.slane %v2717, 2
        %v2747 = vsel %vm2261, %v2744, %v2746
        %v2748 = vrot.slane %v2718, 2
        %v2749 = vsel %vm2261, %v2746, %v2748
        %v2750 = vrot.slane %v2719, 2
        %v2751 = vsel %vm2261, %v2748, %v2750
        %v2752 = vrot.slane %v2720, 2
        %v2753 = vsel %vm2261, %v2750, %v2752
        %v2754 = vrot.slane %v2721, 2
        %v2755 = vsel %vm2261, %v2752, %v2754
        %v2756 = vrot.slane %v2722, 2
        %v2757 = vsel %vm2261, %v2754, %v2756
        %v2758 = vrot.slane %v2723, 2
        %v2759 = vsel %vm2261, %v2756, %v2758
        %v2760 = vrot.slane %v2724, 2
        %v2761 = vsel %vm2261, %v2758, %v2760
        %v2796 = vunpack.c.l.b16 %v2616
        %v2797 = vunpack.c.l.b16 %v2617
        %v2798 = vunpack.c.l.b16 %v2618
        %v2799 = vunpack.c.l.b16 %v2619
        %v2800 = vunpack.c.l.b16 %v2620
        %v2801 = vunpack.c.l.b16 %v2621
        %v2802 = vunpack.c.l.b16 %v2622
        %v2803 = vunpack.c.l.b16 %v2623
        %v2804 = vunpack.c.l.b16 %v2624
        %v2805 = vunpack.c.l.b16 %v2625
        %v2806 = vunpack.c.l.b16 %v2626
        %v2807 = vunpack.c.l.b16 %v2627
        %v2808 = vunpack.c.l.b16 %v2628
        %v2809 = vunpack.c.l.b16 %v2629
        %v2810 = vunpack.c.l.b16 %v2630
        %v2811 = vunpack.c.l.b16 %v2631
        %v2812 = vpack.c.b16 %v2797, %v2796
        %v2813 = vpack.c.b16 %v2799, %v2798
        %v2814 = vpack.c.b16 %v2801, %v2800
        %v2815 = vpack.c.b16 %v2803, %v2802
        %v2816 = vpack.c.b16 %v2805, %v2804
        %v2817 = vpack.c.b16 %v2807, %v2806
        %v2818 = vpack.c.b16 %v2809, %v2808
        %v2819 = vpack.c.b16 %v2811, %v2810
        %2828 = vmatprep.subr.bf16.mxu0 0
        %2829 = vmatpush1.bf16.msra.mxu0 %v2812
        %2830 = vmatprep.subr.bf16.mxu0 0
        %2831 = vmatpush1.bf16.msra.mxu0 %v2813
        %2832 = vmatprep.subr.bf16.mxu0 0
        %2833 = vmatpush1.bf16.msra.mxu0 %v2814
        %2834 = vmatprep.subr.bf16.mxu0 0
        %2835 = vmatpush1.bf16.msra.mxu0 %v2815
        %2836 = vmatprep.subr.bf16.mxu0 0
        %2837 = vmatpush1.bf16.msra.mxu0 %v2816
        %2838 = vmatprep.subr.bf16.mxu0 0
        %2839 = vmatpush1.bf16.msra.mxu0 %v2817
        %2840 = vmatprep.subr.bf16.mxu0 0
        %2841 = vmatpush1.bf16.msra.mxu0 %v2818
        %2842 = vmatprep.subr.bf16.mxu0 0
        %2843 = vmatpush1.bf16.msra.mxu0 %v2819
        %2844 = vmatprep.subr.bf16.mxu0 0
        %2845 = vmatpush1.bf16.msra.mxu0 0
        %2846 = vmatprep.subr.bf16.mxu0 0
        %2847 = vmatpush1.bf16.msra.mxu0 0
        %2848 = vmatprep.subr.bf16.mxu0 0
        %2849 = vmatpush1.bf16.msra.mxu0 0
        %2850 = vmatprep.subr.bf16.mxu0 0
        %2851 = vmatpush1.bf16.msra.mxu0 0
        %2852 = vmatprep.subr.bf16.mxu0 0
        %2853 = vmatpush1.bf16.msra.mxu0 0
        %2854 = vmatprep.subr.bf16.mxu0 0
        %2855 = vmatpush1.bf16.msra.mxu0 0
        %2856 = vmatprep.subr.bf16.mxu0 0
        %2857 = vmatpush1.bf16.msra.mxu0 0
        %2858 = vmatprep.subr.bf16.mxu0 0
        %2859 = vmatpush1.bf16.msra.mxu0 0
        %2860 = vmatprep.mubr.bf16.mxu0 0
        %2861 = vmatmul.mubr.bf16.gmra.mrb[0].mxu0 %v2727
        %v2862 = vpop.f32.mrb[0].mxu0
        %v2863 = vadd.f32 0.0, %v2862
        %v2864 = vpop.f32.mrb[0].mxu0
        %v2865 = vpop.f32.mrb[0].mxu0
        %v2866 = vadd.f32 0.0, %v2865
        %v2867 = vpop.f32.mrb[0].mxu0
        %2868 = vmatprep.mubr.bf16.mxu0 0
        %2869 = vmatmul.mubr.bf16.gmra.mrb[0].mxu0 %v2729
        %v2870 = vpop.f32.mrb[0].mxu0
        %v2871 = vadd.f32 0.0, %v2870
        %v2872 = vpop.f32.mrb[0].mxu0
        %v2873 = vpop.f32.mrb[0].mxu0
        %v2874 = vadd.f32 0.0, %v2873
        %v2875 = vpop.f32.mrb[0].mxu0
        %2876 = vmatprep.mubr.bf16.mxu0 0
        %2877 = vmatmul.mubr.bf16.gmra.mrb[0].mxu0 %v2731
        %v2878 = vpop.f32.mrb[0].mxu0
        %v2879 = vadd.f32 0.0, %v2878
        %v2880 = vpop.f32.mrb[0].mxu0
        %v2881 = vpop.f32.mrb[0].mxu0
        %v2882 = vadd.f32 0.0, %v2881
        %v2883 = vpop.f32.mrb[0].mxu0
        %2884 = vmatprep.mubr.bf16.mxu0 0
        %2885 = vmatmul.mubr.bf16.gmra.mrb[0].mxu0 %v2733
        %v2886 = vpop.f32.mrb[0].mxu0
        %v2887 = vadd.f32 0.0, %v2886
        %v2888 = vpop.f32.mrb[0].mxu0
        %v2889 = vpop.f32.mrb[0].mxu0
        %v2890 = vadd.f32 0.0, %v2889
        %v2891 = vpop.f32.mrb[0].mxu0
        %2892 = vmatprep.mubr.bf16.mxu0 0
        %2893 = vmatmul.mubr.bf16.gmra.mrb[0].mxu0 %v2735
        %v2894 = vpop.f32.mrb[0].mxu0
        %v2895 = vadd.f32 0.0, %v2894
        %v2896 = vpop.f32.mrb[0].mxu0
        %v2897 = vpop.f32.mrb[0].mxu0
        %v2898 = vadd.f32 0.0, %v2897
        %v2899 = vpop.f32.mrb[0].mxu0
        %2900 = vmatprep.mubr.bf16.mxu0 0
        %2901 = vmatmul.mubr.bf16.gmra.mrb[0].mxu0 %v2737
        %v2902 = vpop.f32.mrb[0].mxu0
        %v2903 = vadd.f32 0.0, %v2902
        %v2904 = vpop.f32.mrb[0].mxu0
        %v2905 = vpop.f32.mrb[0].mxu0
        %v2906 = vadd.f32 0.0, %v2905
        %v2907 = vpop.f32.mrb[0].mxu0
        %2908 = vmatprep.mubr.bf16.mxu0 0
        %2909 = vmatmul.mubr.bf16.gmra.mrb[0].mxu0 %v2739
        %v2910 = vpop.f32.mrb[0].mxu0
        %v2911 = vadd.f32 0.0, %v2910
        %v2912 = vpop.f32.mrb[0].mxu0
        %v2913 = vpop.f32.mrb[0].mxu0
        %v2914 = vadd.f32 0.0, %v2913
        %v2915 = vpop.f32.mrb[0].mxu0
        %2916 = vmatprep.mubr.bf16.mxu0 0
        %2917 = vmatmul.mubr.bf16.gmra.mrb[0].mxu0 %v2741
        %v2918 = vpop.f32.mrb[0].mxu0
        %v2919 = vadd.f32 0.0, %v2918
        %v2920 = vpop.f32.mrb[0].mxu0
        %v2921 = vpop.f32.mrb[0].mxu0
        %v2922 = vadd.f32 0.0, %v2921
        %v2923 = vpop.f32.mrb[0].mxu0
        %2924 = vmatprep.mubr.bf16.mxu0 0
        %2925 = vmatmul.mubr.bf16.gmra.mrb[0].mxu0 %v2743
        %v2926 = vpop.f32.mrb[0].mxu0
        %v2927 = vadd.f32 0.0, %v2926
        %v2928 = vpop.f32.mrb[0].mxu0
        %v2929 = vpop.f32.mrb[0].mxu0
        %v2930 = vadd.f32 0.0, %v2929
        %v2931 = vpop.f32.mrb[0].mxu0
        %2932 = vmatprep.mubr.bf16.mxu0 0
        %2933 = vmatmul.mubr.bf16.gmra.mrb[0].mxu0 %v2745
        %v2934 = vpop.f32.mrb[0].mxu0
        %v2935 = vadd.f32 0.0, %v2934
        %v2936 = vpop.f32.mrb[0].mxu0
        %v2937 = vpop.f32.mrb[0].mxu0
        %v2938 = vadd.f32 0.0, %v2937
        %v2939 = vpop.f32.mrb[0].mxu0
        %2940 = vmatprep.mubr.bf16.mxu0 0
        %2941 = vmatmul.mubr.bf16.gmra.mrb[0].mxu0 %v2747
        %v2942 = vpop.f32.mrb[0].mxu0
        %v2943 = vadd.f32 0.0, %v2942
        %v2944 = vpop.f32.mrb[0].mxu0
        %v2945 = vpop.f32.mrb[0].mxu0
        %v2946 = vadd.f32 0.0, %v2945
        %v2947 = vpop.f32.mrb[0].mxu0
        %2948 = vmatprep.mubr.bf16.mxu0 0
        %2949 = vmatmul.mubr.bf16.gmra.mrb[0].mxu0 %v2749
        %v2950 = vpop.f32.mrb[0].mxu0
        %v2951 = vadd.f32 0.0, %v2950
        %v2952 = vpop.f32.mrb[0].mxu0
        %v2953 = vpop.f32.mrb[0].mxu0
        %v2954 = vadd.f32 0.0, %v2953
        %v2955 = vpop.f32.mrb[0].mxu0
        %2956 = vmatprep.mubr.bf16.mxu0 0
        %2957 = vmatmul.mubr.bf16.gmra.mrb[0].mxu0 %v2751
        %v2958 = vpop.f32.mrb[0].mxu0
        %v2959 = vadd.f32 0.0, %v2958
        %v2960 = vpop.f32.mrb[0].mxu0
        %v2961 = vpop.f32.mrb[0].mxu0
        %v2962 = vadd.f32 0.0, %v2961
        %v2963 = vpop.f32.mrb[0].mxu0
        %2964 = vmatprep.mubr.bf16.mxu0 0
        %2965 = vmatmul.mubr.bf16.gmra.mrb[0].mxu0 %v2753
        %v2966 = vpop.f32.mrb[0].mxu0
        %v2967 = vadd.f32 0.0, %v2966
        %v2968 = vpop.f32.mrb[0].mxu0
        %v2969 = vpop.f32.mrb[0].mxu0
        %v2970 = vadd.f32 0.0, %v2969
        %v2971 = vpop.f32.mrb[0].mxu0
        %2972 = vmatprep.mubr.bf16.mxu0 0
        %2973 = vmatmul.mubr.bf16.gmra.mrb[0].mxu0 %v2755
        %v2974 = vpop.f32.mrb[0].mxu0
        %v2975 = vadd.f32 0.0, %v2974
        %v2976 = vpop.f32.mrb[0].mxu0
        %v2977 = vpop.f32.mrb[0].mxu0
        %v2978 = vadd.f32 0.0, %v2977
        %v2979 = vpop.f32.mrb[0].mxu0
        %2980 = vmatprep.mubr.bf16.mxu0 0
        %2981 = vmatmul.mubr.bf16.gmra.mrb[0].mxu0 %v2757
        %v2982 = vpop.f32.mrb[0].mxu0
        %v2983 = vadd.f32 0.0, %v2982
        %v2984 = vpop.f32.mrb[0].mxu0
        %v2985 = vpop.f32.mrb[0].mxu0
        %v2986 = vadd.f32 0.0, %v2985
        %v2987 = vpop.f32.mrb[0].mxu0
        %2988 = vmatprep.mubr.bf16.mxu0 0
        %2989 = vmatmul.mubr.bf16.gmra.mrb[0].mxu0 %v2759
        %v2990 = vpop.f32.mrb[0].mxu0
        %v2991 = vadd.f32 0.0, %v2990
        %v2992 = vpop.f32.mrb[0].mxu0
        %v2993 = vpop.f32.mrb[0].mxu0
        %v2994 = vadd.f32 0.0, %v2993
        %v2995 = vpop.f32.mrb[0].mxu0
        %2996 = vmatprep.mubr.bf16.mxu0 0
        %2997 = vmatmul.mubr.bf16.gmra.mrb[0].mxu0 %v2761
        %v2998 = vpop.f32.mrb[0].mxu0
        %v2999 = vadd.f32 0.0, %v2998
        %v3000 = vpop.f32.mrb[0].mxu0
        %v3001 = vpop.f32.mrb[0].mxu0
        %v3002 = vadd.f32 0.0, %v3001
        %v3003 = vpop.f32.mrb[0].mxu0
        %3004 = vdwg.mxu0
        %v3005 = vadd.f32 %v2542, %v2863
        %v3006 = vadd.f32 %v2543, %v2866
        %v3007 = vadd.f32 %v2544, %v2871
        %v3008 = vadd.f32 %v2545, %v2874
        %v3009 = vadd.f32 %v2546, %v2879
        %v3010 = vadd.f32 %v2547, %v2882
        %v3011 = vadd.f32 %v2548, %v2887
        %v3012 = vadd.f32 %v2549, %v2890
        %v3013 = vadd.f32 %v2550, %v2895
        %v3014 = vadd.f32 %v2551, %v2898
        %v3015 = vadd.f32 %v2552, %v2903
        %v3016 = vadd.f32 %v2553, %v2906
        %v3017 = vadd.f32 %v2554, %v2911
        %v3018 = vadd.f32 %v2555, %v2914
        %v3019 = vadd.f32 %v2556, %v2919
        %v3020 = vadd.f32 %v2557, %v2922
        %v3021 = vadd.f32 %v2558, %v2927
        %v3022 = vadd.f32 %v2559, %v2930
        %v3023 = vadd.f32 %v2560, %v2935
        %v3024 = vadd.f32 %v2561, %v2938
        %v3025 = vadd.f32 %v2562, %v2943
        %v3026 = vadd.f32 %v2563, %v2946
        %v3027 = vadd.f32 %v2564, %v2951
        %v3028 = vadd.f32 %v2565, %v2954
        %v3029 = vadd.f32 %v2566, %v2959
        %v3030 = vadd.f32 %v2567, %v2962
        %v3031 = vadd.f32 %v2568, %v2967
        %v3032 = vadd.f32 %v2569, %v2970
        %v3033 = vadd.f32 %v2570, %v2975
        %v3034 = vadd.f32 %v2571, %v2978
        %v3035 = vadd.f32 %v2572, %v2983
        %v3036 = vadd.f32 %v2573, %v2986
        %v3037 = vadd.f32 %v2574, %v2991
        %v3038 = vadd.f32 %v2575, %v2994
        %v3039 = vadd.f32 %v2576, %v2999
        %v3040 = vadd.f32 %v2577, %v3002
        %v3041 = vld [vmem:[%s168 + $0xa0] sm:$0x7]
        %s3042 = scalar_lea.vmem %s1, 448
        %v3043 = vld [vmem:[%s3042] sm:$0xf]
        %v3044 = vld [vmem:[%s3042 + $0x4] sm:$0xf]
        %v3045 = vld [vmem:[%s3042 + $0x8] sm:$0xf]
        %v3046 = vld [vmem:[%s3042 + $0xc] sm:$0xf]
        %v3047 = vld [vmem:[%s3042 + $0x10] sm:$0xf]
        %v3048 = vld [vmem:[%s3042 + $0x14] sm:$0xf]
        %v3049 = vld [vmem:[%s3042 + $0x18] sm:$0xf]
        %v3050 = vld [vmem:[%s3042 + $0x1c] sm:$0xf]
        %v3051 = vld [vmem:[%s3042 + $0x20] sm:$0xf]
        %v3052 = vld [vmem:[%s3042 + $0x24] sm:$0xf]
        %v3053 = vld [vmem:[%s3042 + $0x28] sm:$0xf]
        %v3054 = vld [vmem:[%s3042 + $0x2c] sm:$0xf]
        %v3055 = vld [vmem:[%s3042 + $0x30] sm:$0xf]
        %v3056 = vld [vmem:[%s3042 + $0x34] sm:$0xf]
        %v3057 = vld [vmem:[%s3042 + $0x38] sm:$0xf]
        %v3058 = vld [vmem:[%s3042 + $0x3c] sm:$0xf]
        %v3060 = vunpack.c.l.b16 %v3041
        %v3061 = vpack.c.b16 %v3060, %v3060
        %vm3062 = vsmask.f32 5376
        %v3064 = vshrl.u32 %v2706, 16
        %v3066 = vrot.slane %v3064, 2
        %v3067 = vshll.u32 %v2706, 16
        %v3069 = vrot.slane %v3067, 3
        %v3070 = vor.u32 %v3066, %v3069
        %v3072 = vshrl.u32 %v2707, 16
        %v3074 = vrot.slane %v3072, 2
        %v3075 = vshll.u32 %v2707, 16
        %v3077 = vrot.slane %v3075, 3
        %v3078 = vor.u32 %v3074, %v3077
        %v3079 = vsel %vm3062, %v3070, %v3078
        %v3081 = vshrl.u32 %v2708, 16
        %v3083 = vrot.slane %v3081, 2
        %v3084 = vshll.u32 %v2708, 16
        %v3086 = vrot.slane %v3084, 3
        %v3087 = vor.u32 %v3083, %v3086
        %v3088 = vsel %vm3062, %v3078, %v3087
        %v3090 = vshrl.u32 %v2709, 16
        %v3092 = vrot.slane %v3090, 2
        %v3093 = vshll.u32 %v2709, 16
        %v3095 = vrot.slane %v3093, 3
        %v3096 = vor.u32 %v3092, %v3095
        %v3097 = vsel %vm3062, %v3087, %v3096
        %v3099 = vshrl.u32 %v2710, 16
        %v3101 = vrot.slane %v3099, 2
        %v3102 = vshll.u32 %v2710, 16
        %v3104 = vrot.slane %v3102, 3
        %v3105 = vor.u32 %v3101, %v3104
        %v3106 = vsel %vm3062, %v3096, %v3105
        %v3108 = vshrl.u32 %v2711, 16
        %v3110 = vrot.slane %v3108, 2
        %v3111 = vshll.u32 %v2711, 16
        %v3113 = vrot.slane %v3111, 3
        %v3114 = vor.u32 %v3110, %v3113
        %v3115 = vsel %vm3062, %v3105, %v3114
        %v3117 = vshrl.u32 %v2712, 16
        %v3119 = vrot.slane %v3117, 2
        %v3120 = vshll.u32 %v2712, 16
        %v3122 = vrot.slane %v3120, 3
        %v3123 = vor.u32 %v3119, %v3122
        %v3124 = vsel %vm3062, %v3114, %v3123
        %v3126 = vshrl.u32 %v2713, 16
        %v3128 = vrot.slane %v3126, 2
        %v3129 = vshll.u32 %v2713, 16
        %v3131 = vrot.slane %v3129, 3
        %v3132 = vor.u32 %v3128, %v3131
        %v3133 = vsel %vm3062, %v3123, %v3132
        %v3135 = vshrl.u32 %v2714, 16
        %v3137 = vrot.slane %v3135, 2
        %v3138 = vshll.u32 %v2714, 16
        %v3140 = vrot.slane %v3138, 3
        %v3141 = vor.u32 %v3137, %v3140
        %v3142 = vsel %vm3062, %v3132, %v3141
        %v3144 = vshrl.u32 %v2715, 16
        %v3146 = vrot.slane %v3144, 2
        %v3147 = vshll.u32 %v2715, 16
        %v3149 = vrot.slane %v3147, 3
        %v3150 = vor.u32 %v3146, %v3149
        %v3151 = vsel %vm3062, %v3141, %v3150
        %v3153 = vshrl.u32 %v2716, 16
        %v3155 = vrot.slane %v3153, 2
        %v3156 = vshll.u32 %v2716, 16
        %v3158 = vrot.slane %v3156, 3
        %v3159 = vor.u32 %v3155, %v3158
        %v3160 = vsel %vm3062, %v3150, %v3159
        %v3162 = vshrl.u32 %v2717, 16
        %v3164 = vrot.slane %v3162, 2
        %v3165 = vshll.u32 %v2717, 16
        %v3167 = vrot.slane %v3165, 3
        %v3168 = vor.u32 %v3164, %v3167
        %v3169 = vsel %vm3062, %v3159, %v3168
        %v3171 = vshrl.u32 %v2718, 16
        %v3173 = vrot.slane %v3171, 2
        %v3174 = vshll.u32 %v2718, 16
        %v3176 = vrot.slane %v3174, 3
        %v3177 = vor.u32 %v3173, %v3176
        %v3178 = vsel %vm3062, %v3168, %v3177
        %v3180 = vshrl.u32 %v2719, 16
        %v3182 = vrot.slane %v3180, 2
        %v3183 = vshll.u32 %v2719, 16
        %v3185 = vrot.slane %v3183, 3
        %v3186 = vor.u32 %v3182, %v3185
        %v3187 = vsel %vm3062, %v3177, %v3186
        %v3189 = vshrl.u32 %v2720, 16
        %v3191 = vrot.slane %v3189, 2
        %v3192 = vshll.u32 %v2720, 16
        %v3194 = vrot.slane %v3192, 3
        %v3195 = vor.u32 %v3191, %v3194
        %v3196 = vsel %vm3062, %v3186, %v3195
        %v3198 = vshrl.u32 %v2721, 16
        %v3200 = vrot.slane %v3198, 2
        %v3201 = vshll.u32 %v2721, 16
        %v3203 = vrot.slane %v3201, 3
        %v3204 = vor.u32 %v3200, %v3203
        %v3205 = vsel %vm3062, %v3195, %v3204
        %v3207 = vshrl.u32 %v2722, 16
        %v3209 = vrot.slane %v3207, 2
        %v3210 = vshll.u32 %v2722, 16
        %v3212 = vrot.slane %v3210, 3
        %v3213 = vor.u32 %v3209, %v3212
        %v3214 = vsel %vm3062, %v3204, %v3213
        %v3216 = vshrl.u32 %v2723, 16
        %v3218 = vrot.slane %v3216, 2
        %v3219 = vshll.u32 %v2723, 16
        %v3221 = vrot.slane %v3219, 3
        %v3222 = vor.u32 %v3218, %v3221
        %v3223 = vsel %vm3062, %v3213, %v3222
        %v3225 = vshrl.u32 %v3061, 16
        %v3227 = vrot.slane %v3225, 2
        %v3228 = vshll.u32 %v3061, 16
        %v3230 = vrot.slane %v3228, 3
        %v3231 = vor.u32 %v3227, %v3230
        %v3232 = vsel %vm3062, %v3222, %v3231
        %v3267 = vunpack.c.l.b16 %v3043
        %v3268 = vunpack.c.l.b16 %v3044
        %v3269 = vunpack.c.l.b16 %v3045
        %v3270 = vunpack.c.l.b16 %v3046
        %v3271 = vunpack.c.l.b16 %v3047
        %v3272 = vunpack.c.l.b16 %v3048
        %v3273 = vunpack.c.l.b16 %v3049
        %v3274 = vunpack.c.l.b16 %v3050
        %v3275 = vunpack.c.l.b16 %v3051
        %v3276 = vunpack.c.l.b16 %v3052
        %v3277 = vunpack.c.l.b16 %v3053
        %v3278 = vunpack.c.l.b16 %v3054
        %v3279 = vunpack.c.l.b16 %v3055
        %v3280 = vunpack.c.l.b16 %v3056
        %v3281 = vunpack.c.l.b16 %v3057
        %v3282 = vunpack.c.l.b16 %v3058
        %v3283 = vpack.c.b16 %v3268, %v3267
        %v3284 = vpack.c.b16 %v3270, %v3269
        %v3285 = vpack.c.b16 %v3272, %v3271
        %v3286 = vpack.c.b16 %v3274, %v3273
        %v3287 = vpack.c.b16 %v3276, %v3275
        %v3288 = vpack.c.b16 %v3278, %v3277
        %v3289 = vpack.c.b16 %v3280, %v3279
        %v3290 = vpack.c.b16 %v3282, %v3281
        %3299 = vmatprep.subr.bf16.mxu0 0
        %3300 = vmatpush1.bf16.msra.mxu0 %v3283
        %3301 = vmatprep.subr.bf16.mxu0 0
        %3302 = vmatpush1.bf16.msra.mxu0 %v3284
        %3303 = vmatprep.subr.bf16.mxu0 0
        %3304 = vmatpush1.bf16.msra.mxu0 %v3285
        %3305 = vmatprep.subr.bf16.mxu0 0
        %3306 = vmatpush1.bf16.msra.mxu0 %v3286
        %3307 = vmatprep.subr.bf16.mxu0 0
        %3308 = vmatpush1.bf16.msra.mxu0 %v3287
        %3309 = vmatprep.subr.bf16.mxu0 0
        %3310 = vmatpush1.bf16.msra.mxu0 %v3288
        %3311 = vmatprep.subr.bf16.mxu0 0
        %3312 = vmatpush1.bf16.msra.mxu0 %v3289
        %3313 = vmatprep.subr.bf16.mxu0 0
        %3314 = vmatpush1.bf16.msra.mxu0 %v3290
        %3315 = vmatprep.subr.bf16.mxu0 0
        %3316 = vmatpush1.bf16.msra.mxu0 0
        %3317 = vmatprep.subr.bf16.mxu0 0
        %3318 = vmatpush1.bf16.msra.mxu0 0
        %3319 = vmatprep.subr.bf16.mxu0 0
        %3320 = vmatpush1.bf16.msra.mxu0 0
        %3321 = vmatprep.subr.bf16.mxu0 0
        %3322 = vmatpush1.bf16.msra.mxu0 0
        %3323 = vmatprep.subr.bf16.mxu0 0
        %3324 = vmatpush1.bf16.msra.mxu0 0
        %3325 = vmatprep.subr.bf16.mxu0 0
        %3326 = vmatpush1.bf16.msra.mxu0 0
        %3327 = vmatprep.subr.bf16.mxu0 0
        %3328 = vmatpush1.bf16.msra.mxu0 0
        %3329 = vmatprep.subr.bf16.mxu0 0
        %3330 = vmatpush1.bf16.msra.mxu0 0
        %3331 = vmatprep.mubr.bf16.mxu0 0
        %3332 = vmatmul.mubr.bf16.gmra.mrb[0].mxu0 %v3079
        %v3333 = vpop.f32.mrb[0].mxu0
        %v3334 = vadd.f32 0.0, %v3333
        %v3335 = vpop.f32.mrb[0].mxu0
        %v3336 = vpop.f32.mrb[0].mxu0
        %v3337 = vadd.f32 0.0, %v3336
        %v3338 = vpop.f32.mrb[0].mxu0
        %3339 = vmatprep.mubr.bf16.mxu0 0
        %3340 = vmatmul.mubr.bf16.gmra.mrb[0].mxu0 %v3088
        %v3341 = vpop.f32.mrb[0].mxu0
        %v3342 = vadd.f32 0.0, %v3341
        %v3343 = vpop.f32.mrb[0].mxu0
        %v3344 = vpop.f32.mrb[0].mxu0
        %v3345 = vadd.f32 0.0, %v3344
        %v3346 = vpop.f32.mrb[0].mxu0
        %3347 = vmatprep.mubr.bf16.mxu0 0
        %3348 = vmatmul.mubr.bf16.gmra.mrb[0].mxu0 %v3097
        %v3349 = vpop.f32.mrb[0].mxu0
        %v3350 = vadd.f32 0.0, %v3349
        %v3351 = vpop.f32.mrb[0].mxu0
        %v3352 = vpop.f32.mrb[0].mxu0
        %v3353 = vadd.f32 0.0, %v3352
        %v3354 = vpop.f32.mrb[0].mxu0
        %3355 = vmatprep.mubr.bf16.mxu0 0
        %3356 = vmatmul.mubr.bf16.gmra.mrb[0].mxu0 %v3106
        %v3357 = vpop.f32.mrb[0].mxu0
        %v3358 = vadd.f32 0.0, %v3357
        %v3359 = vpop.f32.mrb[0].mxu0
        %v3360 = vpop.f32.mrb[0].mxu0
        %v3361 = vadd.f32 0.0, %v3360
        %v3362 = vpop.f32.mrb[0].mxu0
        %3363 = vmatprep.mubr.bf16.mxu0 0
        %3364 = vmatmul.mubr.bf16.gmra.mrb[0].mxu0 %v3115
        %v3365 = vpop.f32.mrb[0].mxu0
        %v3366 = vadd.f32 0.0, %v3365
        %v3367 = vpop.f32.mrb[0].mxu0
        %v3368 = vpop.f32.mrb[0].mxu0
        %v3369 = vadd.f32 0.0, %v3368
        %v3370 = vpop.f32.mrb[0].mxu0
        %3371 = vmatprep.mubr.bf16.mxu0 0
        %3372 = vmatmul.mubr.bf16.gmra.mrb[0].mxu0 %v3124
        %v3373 = vpop.f32.mrb[0].mxu0
        %v3374 = vadd.f32 0.0, %v3373
        %v3375 = vpop.f32.mrb[0].mxu0
        %v3376 = vpop.f32.mrb[0].mxu0
        %v3377 = vadd.f32 0.0, %v3376
        %v3378 = vpop.f32.mrb[0].mxu0
        %3379 = vmatprep.mubr.bf16.mxu0 0
        %3380 = vmatmul.mubr.bf16.gmra.mrb[0].mxu0 %v3133
        %v3381 = vpop.f32.mrb[0].mxu0
        %v3382 = vadd.f32 0.0, %v3381
        %v3383 = vpop.f32.mrb[0].mxu0
        %v3384 = vpop.f32.mrb[0].mxu0
        %v3385 = vadd.f32 0.0, %v3384
        %v3386 = vpop.f32.mrb[0].mxu0
        %3387 = vmatprep.mubr.bf16.mxu0 0
        %3388 = vmatmul.mubr.bf16.gmra.mrb[0].mxu0 %v3142
        %v3389 = vpop.f32.mrb[0].mxu0
        %v3390 = vadd.f32 0.0, %v3389
        %v3391 = vpop.f32.mrb[0].mxu0
        %v3392 = vpop.f32.mrb[0].mxu0
        %v3393 = vadd.f32 0.0, %v3392
        %v3394 = vpop.f32.mrb[0].mxu0
        %3395 = vmatprep.mubr.bf16.mxu0 0
        %3396 = vmatmul.mubr.bf16.gmra.mrb[0].mxu0 %v3151
        %v3397 = vpop.f32.mrb[0].mxu0
        %v3398 = vadd.f32 0.0, %v3397
        %v3399 = vpop.f32.mrb[0].mxu0
        %v3400 = vpop.f32.mrb[0].mxu0
        %v3401 = vadd.f32 0.0, %v3400
        %v3402 = vpop.f32.mrb[0].mxu0
        %3403 = vmatprep.mubr.bf16.mxu0 0
        %3404 = vmatmul.mubr.bf16.gmra.mrb[0].mxu0 %v3160
        %v3405 = vpop.f32.mrb[0].mxu0
        %v3406 = vadd.f32 0.0, %v3405
        %v3407 = vpop.f32.mrb[0].mxu0
        %v3408 = vpop.f32.mrb[0].mxu0
        %v3409 = vadd.f32 0.0, %v3408
        %v3410 = vpop.f32.mrb[0].mxu0
        %3411 = vmatprep.mubr.bf16.mxu0 0
        %3412 = vmatmul.mubr.bf16.gmra.mrb[0].mxu0 %v3169
        %v3413 = vpop.f32.mrb[0].mxu0
        %v3414 = vadd.f32 0.0, %v3413
        %v3415 = vpop.f32.mrb[0].mxu0
        %v3416 = vpop.f32.mrb[0].mxu0
        %v3417 = vadd.f32 0.0, %v3416
        %v3418 = vpop.f32.mrb[0].mxu0
        %3419 = vmatprep.mubr.bf16.mxu0 0
        %3420 = vmatmul.mubr.bf16.gmra.mrb[0].mxu0 %v3178
        %v3421 = vpop.f32.mrb[0].mxu0
        %v3422 = vadd.f32 0.0, %v3421
        %v3423 = vpop.f32.mrb[0].mxu0
        %v3424 = vpop.f32.mrb[0].mxu0
        %v3425 = vadd.f32 0.0, %v3424
        %v3426 = vpop.f32.mrb[0].mxu0
        %3427 = vmatprep.mubr.bf16.mxu0 0
        %3428 = vmatmul.mubr.bf16.gmra.mrb[0].mxu0 %v3187
        %v3429 = vpop.f32.mrb[0].mxu0
        %v3430 = vadd.f32 0.0, %v3429
        %v3431 = vpop.f32.mrb[0].mxu0
        %v3432 = vpop.f32.mrb[0].mxu0
        %v3433 = vadd.f32 0.0, %v3432
        %v3434 = vpop.f32.mrb[0].mxu0
        %3435 = vmatprep.mubr.bf16.mxu0 0
        %3436 = vmatmul.mubr.bf16.gmra.mrb[0].mxu0 %v3196
        %v3437 = vpop.f32.mrb[0].mxu0
        %v3438 = vadd.f32 0.0, %v3437
        %v3439 = vpop.f32.mrb[0].mxu0
        %v3440 = vpop.f32.mrb[0].mxu0
        %v3441 = vadd.f32 0.0, %v3440
        %v3442 = vpop.f32.mrb[0].mxu0
        %3443 = vmatprep.mubr.bf16.mxu0 0
        %3444 = vmatmul.mubr.bf16.gmra.mrb[0].mxu0 %v3205
        %v3445 = vpop.f32.mrb[0].mxu0
        %v3446 = vadd.f32 0.0, %v3445
        %v3447 = vpop.f32.mrb[0].mxu0
        %v3448 = vpop.f32.mrb[0].mxu0
        %v3449 = vadd.f32 0.0, %v3448
        %v3450 = vpop.f32.mrb[0].mxu0
        %3451 = vmatprep.mubr.bf16.mxu0 0
        %3452 = vmatmul.mubr.bf16.gmra.mrb[0].mxu0 %v3214
        %v3453 = vpop.f32.mrb[0].mxu0
        %v3454 = vadd.f32 0.0, %v3453
        %v3455 = vpop.f32.mrb[0].mxu0
        %v3456 = vpop.f32.mrb[0].mxu0
        %v3457 = vadd.f32 0.0, %v3456
        %v3458 = vpop.f32.mrb[0].mxu0
        %3459 = vmatprep.mubr.bf16.mxu0 0
        %3460 = vmatmul.mubr.bf16.gmra.mrb[0].mxu0 %v3223
        %v3461 = vpop.f32.mrb[0].mxu0
        %v3462 = vadd.f32 0.0, %v3461
        %v3463 = vpop.f32.mrb[0].mxu0
        %v3464 = vpop.f32.mrb[0].mxu0
        %v3465 = vadd.f32 0.0, %v3464
        %v3466 = vpop.f32.mrb[0].mxu0
        %3467 = vmatprep.mubr.bf16.mxu0 0
        %3468 = vmatmul.mubr.bf16.gmra.mrb[0].mxu0 %v3232
        %v3469 = vpop.f32.mrb[0].mxu0
        %v3470 = vadd.f32 0.0, %v3469
        %v3471 = vpop.f32.mrb[0].mxu0
        %v3472 = vpop.f32.mrb[0].mxu0
        %v3473 = vadd.f32 0.0, %v3472
        %v3474 = vpop.f32.mrb[0].mxu0
        %3475 = vdwg.mxu0
        %v3476 = vadd.f32 %v3005, %v3334
        %v3477 = vadd.f32 %v3006, %v3337
        %v3478 = vadd.f32 %v3007, %v3342
        %v3479 = vadd.f32 %v3008, %v3345
        %v3480 = vadd.f32 %v3009, %v3350
        %v3481 = vadd.f32 %v3010, %v3353
        %v3482 = vadd.f32 %v3011, %v3358
        %v3483 = vadd.f32 %v3012, %v3361
        %v3484 = vadd.f32 %v3013, %v3366
        %v3485 = vadd.f32 %v3014, %v3369
        %v3486 = vadd.f32 %v3015, %v3374
        %v3487 = vadd.f32 %v3016, %v3377
        %v3488 = vadd.f32 %v3017, %v3382
        %v3489 = vadd.f32 %v3018, %v3385
        %v3490 = vadd.f32 %v3019, %v3390
        %v3491 = vadd.f32 %v3020, %v3393
        %v3492 = vadd.f32 %v3021, %v3398
        %v3493 = vadd.f32 %v3022, %v3401
        %v3494 = vadd.f32 %v3023, %v3406
        %v3495 = vadd.f32 %v3024, %v3409
        %v3496 = vadd.f32 %v3025, %v3414
        %v3497 = vadd.f32 %v3026, %v3417
        %v3498 = vadd.f32 %v3027, %v3422
        %v3499 = vadd.f32 %v3028, %v3425
        %v3500 = vadd.f32 %v3029, %v3430
        %v3501 = vadd.f32 %v3030, %v3433
        %v3502 = vadd.f32 %v3031, %v3438
        %v3503 = vadd.f32 %v3032, %v3441
        %v3504 = vadd.f32 %v3033, %v3446
        %v3505 = vadd.f32 %v3034, %v3449
        %v3506 = vadd.f32 %v3035, %v3454
        %v3507 = vadd.f32 %v3036, %v3457
        %v3508 = vadd.f32 %v3037, %v3462
        %v3509 = vadd.f32 %v3038, %v3465
        %v3510 = vadd.f32 %v3039, %v3470
        %v3511 = vadd.f32 %v3040, %v3473
        %v3512 = vld [vmem:[%s168 + $0x10] sm:$0x8]
        %s3513 = scalar_lea.vmem %s1, 512
        %v3514 = vld [vmem:[%s3513] sm:$0xf]
        %v3515 = vld [vmem:[%s3513 + $0x4] sm:$0xf]
        %v3516 = vld [vmem:[%s3513 + $0x8] sm:$0xf]
        %v3517 = vld [vmem:[%s3513 + $0xc] sm:$0xf]
        %v3518 = vld [vmem:[%s3513 + $0x10] sm:$0xf]
        %v3519 = vld [vmem:[%s3513 + $0x14] sm:$0xf]
        %v3520 = vld [vmem:[%s3513 + $0x18] sm:$0xf]
        %v3521 = vld [vmem:[%s3513 + $0x1c] sm:$0xf]
        %v3522 = vld [vmem:[%s3513 + $0x20] sm:$0xf]
        %v3523 = vld [vmem:[%s3513 + $0x24] sm:$0xf]
        %v3524 = vld [vmem:[%s3513 + $0x28] sm:$0xf]
        %v3525 = vld [vmem:[%s3513 + $0x2c] sm:$0xf]
        %v3526 = vld [vmem:[%s3513 + $0x30] sm:$0xf]
        %v3527 = vld [vmem:[%s3513 + $0x34] sm:$0xf]
        %v3528 = vld [vmem:[%s3513 + $0x38] sm:$0xf]
        %v3529 = vld [vmem:[%s3513 + $0x3c] sm:$0xf]
        %v3531 = vunpack.c.l.b16 %v3512
        %v3532 = vpack.c.b16 %v2670, %v3531
        %vm3533 = vcmask 1044480
        %v3534 = vrot.slane %v3532, 3
        %v3535 = vrot.slane %v2707, 3
        %v3536 = vsel %vm3533, %v3534, %v3535
        %v3537 = vrot.slane %v2708, 3
        %v3538 = vsel %vm3533, %v3535, %v3537
        %v3539 = vrot.slane %v2709, 3
        %v3540 = vsel %vm3533, %v3537, %v3539
        %v3541 = vrot.slane %v2710, 3
        %v3542 = vsel %vm3533, %v3539, %v3541
        %v3543 = vrot.slane %v2711, 3
        %v3544 = vsel %vm3533, %v3541, %v3543
        %v3545 = vrot.slane %v2712, 3
        %v3546 = vsel %vm3533, %v3543, %v3545
        %v3547 = vrot.slane %v2713, 3
        %v3548 = vsel %vm3533, %v3545, %v3547
        %v3549 = vrot.slane %v2714, 3
        %v3550 = vsel %vm3533, %v3547, %v3549
        %v3551 = vrot.slane %v2715, 3
        %v3552 = vsel %vm3533, %v3549, %v3551
        %v3553 = vrot.slane %v2716, 3
        %v3554 = vsel %vm3533, %v3551, %v3553
        %v3555 = vrot.slane %v2717, 3
        %v3556 = vsel %vm3533, %v3553, %v3555
        %v3557 = vrot.slane %v2718, 3
        %v3558 = vsel %vm3533, %v3555, %v3557
        %v3559 = vrot.slane %v2719, 3
        %v3560 = vsel %vm3533, %v3557, %v3559
        %v3561 = vrot.slane %v2720, 3
        %v3562 = vsel %vm3533, %v3559, %v3561
        %v3563 = vrot.slane %v2721, 3
        %v3564 = vsel %vm3533, %v3561, %v3563
        %v3565 = vrot.slane %v2722, 3
        %v3566 = vsel %vm3533, %v3563, %v3565
        %v3567 = vrot.slane %v2723, 3
        %v3568 = vsel %vm3533, %v3565, %v3567
        %v3569 = vrot.slane %v3061, 3
        %v3570 = vsel %vm3533, %v3567, %v3569
        %v3605 = vunpack.c.l.b16 %v3514
        %v3606 = vunpack.c.l.b16 %v3515
        %v3607 = vunpack.c.l.b16 %v3516
        %v3608 = vunpack.c.l.b16 %v3517
        %v3609 = vunpack.c.l.b16 %v3518
        %v3610 = vunpack.c.l.b16 %v3519
        %v3611 = vunpack.c.l.b16 %v3520
        %v3612 = vunpack.c.l.b16 %v3521
        %v3613 = vunpack.c.l.b16 %v3522
        %v3614 = vunpack.c.l.b16 %v3523
        %v3615 = vunpack.c.l.b16 %v3524
        %v3616 = vunpack.c.l.b16 %v3525
        %v3617 = vunpack.c.l.b16 %v3526
        %v3618 = vunpack.c.l.b16 %v3527
        %v3619 = vunpack.c.l.b16 %v3528
        %v3620 = vunpack.c.l.b16 %v3529
        %v3621 = vpack.c.b16 %v3606, %v3605
        %v3622 = vpack.c.b16 %v3608, %v3607
        %v3623 = vpack.c.b16 %v3610, %v3609
        %v3624 = vpack.c.b16 %v3612, %v3611
        %v3625 = vpack.c.b16 %v3614, %v3613
        %v3626 = vpack.c.b16 %v3616, %v3615
        %v3627 = vpack.c.b16 %v3618, %v3617
        %v3628 = vpack.c.b16 %v3620, %v3619
        %3637 = vmatprep.subr.bf16.mxu0 0
        %3638 = vmatpush1.bf16.msra.mxu0 %v3621
        %3639 = vmatprep.subr.bf16.mxu0 0
        %3640 = vmatpush1.bf16.msra.mxu0 %v3622
        %3641 = vmatprep.subr.bf16.mxu0 0
        %3642 = vmatpush1.bf16.msra.mxu0 %v3623
        %3643 = vmatprep.subr.bf16.mxu0 0
        %3644 = vmatpush1.bf16.msra.mxu0 %v3624
        %3645 = vmatprep.subr.bf16.mxu0 0
        %3646 = vmatpush1.bf16.msra.mxu0 %v3625
        %3647 = vmatprep.subr.bf16.mxu0 0
        %3648 = vmatpush1.bf16.msra.mxu0 %v3626
        %3649 = vmatprep.subr.bf16.mxu0 0
        %3650 = vmatpush1.bf16.msra.mxu0 %v3627
        %3651 = vmatprep.subr.bf16.mxu0 0
        %3652 = vmatpush1.bf16.msra.mxu0 %v3628
        %3653 = vmatprep.subr.bf16.mxu0 0
        %3654 = vmatpush1.bf16.msra.mxu0 0
        %3655 = vmatprep.subr.bf16.mxu0 0
        %3656 = vmatpush1.bf16.msra.mxu0 0
        %3657 = vmatprep.subr.bf16.mxu0 0
        %3658 = vmatpush1.bf16.msra.mxu0 0
        %3659 = vmatprep.subr.bf16.mxu0 0
        %3660 = vmatpush1.bf16.msra.mxu0 0
        %3661 = vmatprep.subr.bf16.mxu0 0
        %3662 = vmatpush1.bf16.msra.mxu0 0
        %3663 = vmatprep.subr.bf16.mxu0 0
        %3664 = vmatpush1.bf16.msra.mxu0 0
        %3665 = vmatprep.subr.bf16.mxu0 0
        %3666 = vmatpush1.bf16.msra.mxu0 0
        %3667 = vmatprep.subr.bf16.mxu0 0
        %3668 = vmatpush1.bf16.msra.mxu0 0
        %3669 = vmatprep.mubr.bf16.mxu0 0
        %3670 = vmatmul.mubr.bf16.gmra.mrb[0].mxu0 %v3536
        %v3671 = vpop.f32.mrb[0].mxu0
        %v3672 = vadd.f32 0.0, %v3671
        %v3673 = vpop.f32.mrb[0].mxu0
        %v3674 = vpop.f32.mrb[0].mxu0
        %v3675 = vadd.f32 0.0, %v3674
        %v3676 = vpop.f32.mrb[0].mxu0
        %3677 = vmatprep.mubr.bf16.mxu0 0
        %3678 = vmatmul.mubr.bf16.gmra.mrb[0].mxu0 %v3538
        %v3679 = vpop.f32.mrb[0].mxu0
        %v3680 = vadd.f32 0.0, %v3679
        %v3681 = vpop.f32.mrb[0].mxu0
        %v3682 = vpop.f32.mrb[0].mxu0
        %v3683 = vadd.f32 0.0, %v3682
        %v3684 = vpop.f32.mrb[0].mxu0
        %3685 = vmatprep.mubr.bf16.mxu0 0
        %3686 = vmatmul.mubr.bf16.gmra.mrb[0].mxu0 %v3540
        %v3687 = vpop.f32.mrb[0].mxu0
        %v3688 = vadd.f32 0.0, %v3687
        %v3689 = vpop.f32.mrb[0].mxu0
        %v3690 = vpop.f32.mrb[0].mxu0
        %v3691 = vadd.f32 0.0, %v3690
        %v3692 = vpop.f32.mrb[0].mxu0
        %3693 = vmatprep.mubr.bf16.mxu0 0
        %3694 = vmatmul.mubr.bf16.gmra.mrb[0].mxu0 %v3542
        %v3695 = vpop.f32.mrb[0].mxu0
        %v3696 = vadd.f32 0.0, %v3695
        %v3697 = vpop.f32.mrb[0].mxu0
        %v3698 = vpop.f32.mrb[0].mxu0
        %v3699 = vadd.f32 0.0, %v3698
        %v3700 = vpop.f32.mrb[0].mxu0
        %3701 = vmatprep.mubr.bf16.mxu0 0
        %3702 = vmatmul.mubr.bf16.gmra.mrb[0].mxu0 %v3544
        %v3703 = vpop.f32.mrb[0].mxu0
        %v3704 = vadd.f32 0.0, %v3703
        %v3705 = vpop.f32.mrb[0].mxu0
        %v3706 = vpop.f32.mrb[0].mxu0
        %v3707 = vadd.f32 0.0, %v3706
        %v3708 = vpop.f32.mrb[0].mxu0
        %3709 = vmatprep.mubr.bf16.mxu0 0
        %3710 = vmatmul.mubr.bf16.gmra.mrb[0].mxu0 %v3546
        %v3711 = vpop.f32.mrb[0].mxu0
        %v3712 = vadd.f32 0.0, %v3711
        %v3713 = vpop.f32.mrb[0].mxu0
        %v3714 = vpop.f32.mrb[0].mxu0
        %v3715 = vadd.f32 0.0, %v3714
        %v3716 = vpop.f32.mrb[0].mxu0
        %3717 = vmatprep.mubr.bf16.mxu0 0
        %3718 = vmatmul.mubr.bf16.gmra.mrb[0].mxu0 %v3548
        %v3719 = vpop.f32.mrb[0].mxu0
        %v3720 = vadd.f32 0.0, %v3719
        %v3721 = vpop.f32.mrb[0].mxu0
        %v3722 = vpop.f32.mrb[0].mxu0
        %v3723 = vadd.f32 0.0, %v3722
        %v3724 = vpop.f32.mrb[0].mxu0
        %3725 = vmatprep.mubr.bf16.mxu0 0
        %3726 = vmatmul.mubr.bf16.gmra.mrb[0].mxu0 %v3550
        %v3727 = vpop.f32.mrb[0].mxu0
        %v3728 = vadd.f32 0.0, %v3727
        %v3729 = vpop.f32.mrb[0].mxu0
        %v3730 = vpop.f32.mrb[0].mxu0
        %v3731 = vadd.f32 0.0, %v3730
        %v3732 = vpop.f32.mrb[0].mxu0
        %3733 = vmatprep.mubr.bf16.mxu0 0
        %3734 = vmatmul.mubr.bf16.gmra.mrb[0].mxu0 %v3552
        %v3735 = vpop.f32.mrb[0].mxu0
        %v3736 = vadd.f32 0.0, %v3735
        %v3737 = vpop.f32.mrb[0].mxu0
        %v3738 = vpop.f32.mrb[0].mxu0
        %v3739 = vadd.f32 0.0, %v3738
        %v3740 = vpop.f32.mrb[0].mxu0
        %3741 = vmatprep.mubr.bf16.mxu0 0
        %3742 = vmatmul.mubr.bf16.gmra.mrb[0].mxu0 %v3554
        %v3743 = vpop.f32.mrb[0].mxu0
        %v3744 = vadd.f32 0.0, %v3743
        %v3745 = vpop.f32.mrb[0].mxu0
        %v3746 = vpop.f32.mrb[0].mxu0
        %v3747 = vadd.f32 0.0, %v3746
        %v3748 = vpop.f32.mrb[0].mxu0
        %3749 = vmatprep.mubr.bf16.mxu0 0
        %3750 = vmatmul.mubr.bf16.gmra.mrb[0].mxu0 %v3556
        %v3751 = vpop.f32.mrb[0].mxu0
        %v3752 = vadd.f32 0.0, %v3751
        %v3753 = vpop.f32.mrb[0].mxu0
        %v3754 = vpop.f32.mrb[0].mxu0
        %v3755 = vadd.f32 0.0, %v3754
        %v3756 = vpop.f32.mrb[0].mxu0
        %3757 = vmatprep.mubr.bf16.mxu0 0
        %3758 = vmatmul.mubr.bf16.gmra.mrb[0].mxu0 %v3558
        %v3759 = vpop.f32.mrb[0].mxu0
        %v3760 = vadd.f32 0.0, %v3759
        %v3761 = vpop.f32.mrb[0].mxu0
        %v3762 = vpop.f32.mrb[0].mxu0
        %v3763 = vadd.f32 0.0, %v3762
        %v3764 = vpop.f32.mrb[0].mxu0
        %3765 = vmatprep.mubr.bf16.mxu0 0
        %3766 = vmatmul.mubr.bf16.gmra.mrb[0].mxu0 %v3560
        %v3767 = vpop.f32.mrb[0].mxu0
        %v3768 = vadd.f32 0.0, %v3767
        %v3769 = vpop.f32.mrb[0].mxu0
        %v3770 = vpop.f32.mrb[0].mxu0
        %v3771 = vadd.f32 0.0, %v3770
        %v3772 = vpop.f32.mrb[0].mxu0
        %3773 = vmatprep.mubr.bf16.mxu0 0
        %3774 = vmatmul.mubr.bf16.gmra.mrb[0].mxu0 %v3562
        %v3775 = vpop.f32.mrb[0].mxu0
        %v3776 = vadd.f32 0.0, %v3775
        %v3777 = vpop.f32.mrb[0].mxu0
        %v3778 = vpop.f32.mrb[0].mxu0
        %v3779 = vadd.f32 0.0, %v3778
        %v3780 = vpop.f32.mrb[0].mxu0
        %3781 = vmatprep.mubr.bf16.mxu0 0
        %3782 = vmatmul.mubr.bf16.gmra.mrb[0].mxu0 %v3564
        %v3783 = vpop.f32.mrb[0].mxu0
        %v3784 = vadd.f32 0.0, %v3783
        %v3785 = vpop.f32.mrb[0].mxu0
        %v3786 = vpop.f32.mrb[0].mxu0
        %v3787 = vadd.f32 0.0, %v3786
        %v3788 = vpop.f32.mrb[0].mxu0
        %3789 = vmatprep.mubr.bf16.mxu0 0
        %3790 = vmatmul.mubr.bf16.gmra.mrb[0].mxu0 %v3566
        %v3791 = vpop.f32.mrb[0].mxu0
        %v3792 = vadd.f32 0.0, %v3791
        %v3793 = vpop.f32.mrb[0].mxu0
        %v3794 = vpop.f32.mrb[0].mxu0
        %v3795 = vadd.f32 0.0, %v3794
        %v3796 = vpop.f32.mrb[0].mxu0
        %3797 = vmatprep.mubr.bf16.mxu0 0
        %3798 = vmatmul.mubr.bf16.gmra.mrb[0].mxu0 %v3568
        %v3799 = vpop.f32.mrb[0].mxu0
        %v3800 = vadd.f32 0.0, %v3799
        %v3801 = vpop.f32.mrb[0].mxu0
        %v3802 = vpop.f32.mrb[0].mxu0
        %v3803 = vadd.f32 0.0, %v3802
        %v3804 = vpop.f32.mrb[0].mxu0
        %3805 = vmatprep.mubr.bf16.mxu0 0
        %3806 = vmatmul.mubr.bf16.gmra.mrb[0].mxu0 %v3570
        %v3807 = vpop.f32.mrb[0].mxu0
        %v3808 = vadd.f32 0.0, %v3807
        %v3809 = vpop.f32.mrb[0].mxu0
        %v3810 = vpop.f32.mrb[0].mxu0
        %v3811 = vadd.f32 0.0, %v3810
        %v3812 = vpop.f32.mrb[0].mxu0
        %3813 = vdwg.mxu0
        %v3814 = vadd.f32 %v3476, %v3672
        %v3815 = vadd.f32 %v3477, %v3675
        %v3816 = vadd.f32 %v3478, %v3680
        %v3817 = vadd.f32 %v3479, %v3683
        %v3818 = vadd.f32 %v3480, %v3688
        %v3819 = vadd.f32 %v3481, %v3691
        %v3820 = vadd.f32 %v3482, %v3696
        %v3821 = vadd.f32 %v3483, %v3699
        %v3822 = vadd.f32 %v3484, %v3704
        %v3823 = vadd.f32 %v3485, %v3707
        %v3824 = vadd.f32 %v3486, %v3712
        %v3825 = vadd.f32 %v3487, %v3715
        %v3826 = vadd.f32 %v3488, %v3720
        %v3827 = vadd.f32 %v3489, %v3723
        %v3828 = vadd.f32 %v3490, %v3728
        %v3829 = vadd.f32 %v3491, %v3731
        %v3830 = vadd.f32 %v3492, %v3736
        %v3831 = vadd.f32 %v3493, %v3739
        %v3832 = vadd.f32 %v3494, %v3744
        %v3833 = vadd.f32 %v3495, %v3747
        %v3834 = vadd.f32 %v3496, %v3752
        %v3835 = vadd.f32 %v3497, %v3755
        %v3836 = vadd.f32 %v3498, %v3760
        %v3837 = vadd.f32 %v3499, %v3763
        %v3838 = vadd.f32 %v3500, %v3768
        %v3839 = vadd.f32 %v3501, %v3771
        %v3840 = vadd.f32 %v3502, %v3776
        %v3841 = vadd.f32 %v3503, %v3779
        %v3842 = vadd.f32 %v3504, %v3784
        %v3843 = vadd.f32 %v3505, %v3787
        %v3844 = vadd.f32 %v3506, %v3792
        %v3845 = vadd.f32 %v3507, %v3795
        %v3846 = vadd.f32 %v3508, %v3800
        %v3847 = vadd.f32 %v3509, %v3803
        %v3848 = vadd.f32 %v3510, %v3808
        %v3849 = vadd.f32 %v3511, %v3811
        %v3850 = vld [vmem:[%s2] sm:$0x1]
        %v3852 = vlaneseq
        %v3853 = vshrl.u32 %v3852, 7
        %v3854 = vsub.s32 0, %v3853
        %v3855 = vrot.slane %v3850, %v3854
        %v3857 = vadd.f32 %v3814, %v3855
        %v3858 = vadd.f32 %v3815, %v3855
        %v3859 = vadd.f32 %v3816, %v3855
        %v3860 = vadd.f32 %v3817, %v3855
        %v3861 = vadd.f32 %v3818, %v3855
        %v3862 = vadd.f32 %v3819, %v3855
        %v3863 = vadd.f32 %v3820, %v3855
        %v3864 = vadd.f32 %v3821, %v3855
        %v3865 = vadd.f32 %v3822, %v3855
        %v3866 = vadd.f32 %v3823, %v3855
        %v3867 = vadd.f32 %v3824, %v3855
        %v3868 = vadd.f32 %v3825, %v3855
        %v3869 = vadd.f32 %v3826, %v3855
        %v3870 = vadd.f32 %v3827, %v3855
        %v3871 = vadd.f32 %v3828, %v3855
        %v3872 = vadd.f32 %v3829, %v3855
        %v3873 = vadd.f32 %v3830, %v3855
        %v3874 = vadd.f32 %v3831, %v3855
        %v3875 = vadd.f32 %v3832, %v3855
        %v3876 = vadd.f32 %v3833, %v3855
        %v3877 = vadd.f32 %v3834, %v3855
        %v3878 = vadd.f32 %v3835, %v3855
        %v3879 = vadd.f32 %v3836, %v3855
        %v3880 = vadd.f32 %v3837, %v3855
        %v3881 = vadd.f32 %v3838, %v3855
        %v3882 = vadd.f32 %v3839, %v3855
        %v3883 = vadd.f32 %v3840, %v3855
        %v3884 = vadd.f32 %v3841, %v3855
        %v3885 = vadd.f32 %v3842, %v3855
        %v3886 = vadd.f32 %v3843, %v3855
        %v3887 = vadd.f32 %v3844, %v3855
        %v3888 = vadd.f32 %v3845, %v3855
        %v3889 = vadd.f32 %v3846, %v3855
        %v3890 = vadd.f32 %v3847, %v3855
        %v3891 = vadd.f32 %v3848, %v3855
        %v3892 = vadd.f32 %v3849, %v3855
        %v3893 = vmax.f32 %v3857, 0.0
        %v3894 = vmax.f32 %v3858, 0.0
        %v3895 = vmax.f32 %v3859, 0.0
        %v3896 = vmax.f32 %v3860, 0.0
        %v3897 = vmax.f32 %v3861, 0.0
        %v3898 = vmax.f32 %v3862, 0.0
        %v3899 = vmax.f32 %v3863, 0.0
        %v3900 = vmax.f32 %v3864, 0.0
        %v3901 = vmax.f32 %v3865, 0.0
        %v3902 = vmax.f32 %v3866, 0.0
        %v3903 = vmax.f32 %v3867, 0.0
        %v3904 = vmax.f32 %v3868, 0.0
        %v3905 = vmax.f32 %v3869, 0.0
        %v3906 = vmax.f32 %v3870, 0.0
        %v3907 = vmax.f32 %v3871, 0.0
        %v3908 = vmax.f32 %v3872, 0.0
        %v3909 = vmax.f32 %v3873, 0.0
        %v3910 = vmax.f32 %v3874, 0.0
        %v3911 = vmax.f32 %v3875, 0.0
        %v3912 = vmax.f32 %v3876, 0.0
        %v3913 = vmax.f32 %v3877, 0.0
        %v3914 = vmax.f32 %v3878, 0.0
        %v3915 = vmax.f32 %v3879, 0.0
        %v3916 = vmax.f32 %v3880, 0.0
        %v3917 = vmax.f32 %v3881, 0.0
        %v3918 = vmax.f32 %v3882, 0.0
        %v3919 = vmax.f32 %v3883, 0.0
        %v3920 = vmax.f32 %v3884, 0.0
        %v3921 = vmax.f32 %v3885, 0.0
        %v3922 = vmax.f32 %v3886, 0.0
        %v3923 = vmax.f32 %v3887, 0.0
        %v3924 = vmax.f32 %v3888, 0.0
        %v3925 = vmax.f32 %v3889, 0.0
        %v3926 = vmax.f32 %v3890, 0.0
        %v3927 = vmax.f32 %v3891, 0.0
        %v3928 = vmax.f32 %v3892, 0.0
        %v3929 = vlaneseq
        %v3930 = vshrl.u32 %v3929, 7
        %v3931 = vadd.s32 %v3930, 8
        %v3932 = vadd.s32 %v3930, 16
        %v3933 = vadd.s32 %v3930, 24
        %v3934 = vadd.s32 %v3930, 32
        %v3935 = vadd.s32 %v3930, 40
        %v3936 = vadd.s32 %v3930, 48
        %v3937 = vadd.s32 %v3930, 56
        %v3938 = vadd.s32 %v3930, 64
        %v3939 = vadd.s32 %v3930, 72
        %v3940 = vadd.s32 %v3930, 80
        %v3941 = vadd.s32 %v3930, 88
        %v3942 = vadd.s32 %v3930, 96
        %v3943 = vadd.s32 %v3930, 104
        %v3944 = vadd.s32 %v3930, 112
        %v3945 = vadd.s32 %v3930, 120
        %v3946 = vadd.s32 %v3930, 128
        %v3947 = vadd.s32 %v3930, 136
        %v3948 = vadd.s32 %v3930, 144
        %v3949 = vadd.s32 %v3930, 152
        %v3950 = vadd.s32 %v3930, 160
        %v3951 = vadd.s32 %v3930, 168
        %v3952 = vadd.s32 %v3930, 176
        %v3953 = vadd.s32 %v3930, 184
        %v3954 = vadd.s32 %v3930, 192
        %v3955 = vadd.s32 %v3930, 200
        %v3956 = vadd.s32 %v3930, 208
        %v3957 = vadd.s32 %v3930, 216
        %v3958 = vadd.s32 %v3930, 224
        %v3959 = vadd.s32 %v3930, 232
        %v3960 = vadd.s32 %v3930, 240
        %v3961 = vadd.s32 %v3930, 248
        %v3962 = vadd.s32 %v3930, 256
        %v3963 = vadd.s32 %v3930, 264
        %v3964 = vadd.s32 %v3930, 272
        %v3965 = vadd.s32 %v3930, 280
        %vm3966 = vcmp.lt.s32.totalorder %v3930, 0
        %v3967 = vsub.s32 0, %v3930
        %v3968 = vsel %vm3966, %v3967, %v3930
        %v3969 = vmul.u32.u64.compose %v3968, 3817748708
        %v3970 = vextract.low.u32 %v3969
        %v3971 = vextract.high.u32 %v3969
        %v3972 = vshrl.u32 %v3971, 4
        %v3973 = vmul.u32 %v3972, 18
        %v3974 = vsub.s32 %v3968, %v3973
        %v3975 = vsub.s32 0, %v3974
        %v3976 = vsel %vm3966, %v3975, %v3974
        %vm3977 = vcmp.lt.s32.totalorder %v3931, 0
        %v3978 = vsub.s32 0, %v3931
        %v3979 = vsel %vm3977, %v3978, %v3931
        %v3980 = vmul.u32.u64.compose %v3979, 3817748708
        %v3981 = vextract.low.u32 %v3980
        %v3982 = vextract.high.u32 %v3980
        %v3983 = vshrl.u32 %v3982, 4
        %v3984 = vmul.u32 %v3983, 18
        %v3985 = vsub.s32 %v3979, %v3984
        %v3986 = vsub.s32 0, %v3985
        %v3987 = vsel %vm3977, %v3986, %v3985
        %vm3988 = vcmp.lt.s32.totalorder %v3932, 0
        %v3989 = vsub.s32 0, %v3932
        %v3990 = vsel %vm3988, %v3989, %v3932
        %v3991 = vmul.u32.u64.compose %v3990, 3817748708
        %v3992 = vextract.low.u32 %v3991
        %v3993 = vextract.high.u32 %v3991
        %v3994 = vshrl.u32 %v3993, 4
        %v3995 = vmul.u32 %v3994, 18
        %v3996 = vsub.s32 %v3990, %v3995
        %v3997 = vsub.s32 0, %v3996
        %v3998 = vsel %vm3988, %v3997, %v3996
        %vm3999 = vcmp.lt.s32.totalorder %v3933, 0
        %v4000 = vsub.s32 0, %v3933
        %v4001 = vsel %vm3999, %v4000, %v3933
        %v4002 = vmul.u32.u64.compose %v4001, 3817748708
        %v4003 = vextract.low.u32 %v4002
        %v4004 = vextract.high.u32 %v4002
        %v4005 = vshrl.u32 %v4004, 4
        %v4006 = vmul.u32 %v4005, 18
        %v4007 = vsub.s32 %v4001, %v4006
        %v4008 = vsub.s32 0, %v4007
        %v4009 = vsel %vm3999, %v4008, %v4007
        %vm4010 = vcmp.lt.s32.totalorder %v3934, 0
        %v4011 = vsub.s32 0, %v3934
        %v4012 = vsel %vm4010, %v4011, %v3934
        %v4013 = vmul.u32.u64.compose %v4012, 3817748708
        %v4014 = vextract.low.u32 %v4013
        %v4015 = vextract.high.u32 %v4013
        %v4016 = vshrl.u32 %v4015, 4
        %v4017 = vmul.u32 %v4016, 18
        %v4018 = vsub.s32 %v4012, %v4017
        %v4019 = vsub.s32 0, %v4018
        %v4020 = vsel %vm4010, %v4019, %v4018
        %vm4021 = vcmp.lt.s32.totalorder %v3935, 0
        %v4022 = vsub.s32 0, %v3935
        %v4023 = vsel %vm4021, %v4022, %v3935
        %v4024 = vmul.u32.u64.compose %v4023, 3817748708
        %v4025 = vextract.low.u32 %v4024
        %v4026 = vextract.high.u32 %v4024
        %v4027 = vshrl.u32 %v4026, 4
        %v4028 = vmul.u32 %v4027, 18
        %v4029 = vsub.s32 %v4023, %v4028
        %v4030 = vsub.s32 0, %v4029
        %v4031 = vsel %vm4021, %v4030, %v4029
        %vm4032 = vcmp.lt.s32.totalorder %v3936, 0
        %v4033 = vsub.s32 0, %v3936
        %v4034 = vsel %vm4032, %v4033, %v3936
        %v4035 = vmul.u32.u64.compose %v4034, 3817748708
        %v4036 = vextract.low.u32 %v4035
        %v4037 = vextract.high.u32 %v4035
        %v4038 = vshrl.u32 %v4037, 4
        %v4039 = vmul.u32 %v4038, 18
        %v4040 = vsub.s32 %v4034, %v4039
        %v4041 = vsub.s32 0, %v4040
        %v4042 = vsel %vm4032, %v4041, %v4040
        %vm4043 = vcmp.lt.s32.totalorder %v3937, 0
        %v4044 = vsub.s32 0, %v3937
        %v4045 = vsel %vm4043, %v4044, %v3937
        %v4046 = vmul.u32.u64.compose %v4045, 3817748708
        %v4047 = vextract.low.u32 %v4046
        %v4048 = vextract.high.u32 %v4046
        %v4049 = vshrl.u32 %v4048, 4
        %v4050 = vmul.u32 %v4049, 18
        %v4051 = vsub.s32 %v4045, %v4050
        %v4052 = vsub.s32 0, %v4051
        %v4053 = vsel %vm4043, %v4052, %v4051
        %vm4054 = vcmp.lt.s32.totalorder %v3938, 0
        %v4055 = vsub.s32 0, %v3938
        %v4056 = vsel %vm4054, %v4055, %v3938
        %v4057 = vmul.u32.u64.compose %v4056, 3817748708
        %v4058 = vextract.low.u32 %v4057
        %v4059 = vextract.high.u32 %v4057
        %v4060 = vshrl.u32 %v4059, 4
        %v4061 = vmul.u32 %v4060, 18
        %v4062 = vsub.s32 %v4056, %v4061
        %v4063 = vsub.s32 0, %v4062
        %v4064 = vsel %vm4054, %v4063, %v4062
        %vm4065 = vcmp.lt.s32.totalorder %v3939, 0
        %v4066 = vsub.s32 0, %v3939
        %v4067 = vsel %vm4065, %v4066, %v3939
        %v4068 = vmul.u32.u64.compose %v4067, 3817748708
        %v4069 = vextract.low.u32 %v4068
        %v4070 = vextract.high.u32 %v4068
        %v4071 = vshrl.u32 %v4070, 4
        %v4072 = vmul.u32 %v4071, 18
        %v4073 = vsub.s32 %v4067, %v4072
        %v4074 = vsub.s32 0, %v4073
        %v4075 = vsel %vm4065, %v4074, %v4073
        %vm4076 = vcmp.lt.s32.totalorder %v3940, 0
        %v4077 = vsub.s32 0, %v3940
        %v4078 = vsel %vm4076, %v4077, %v3940
        %v4079 = vmul.u32.u64.compose %v4078, 3817748708
        %v4080 = vextract.low.u32 %v4079
        %v4081 = vextract.high.u32 %v4079
        %v4082 = vshrl.u32 %v4081, 4
        %v4083 = vmul.u32 %v4082, 18
        %v4084 = vsub.s32 %v4078, %v4083
        %v4085 = vsub.s32 0, %v4084
        %v4086 = vsel %vm4076, %v4085, %v4084
        %vm4087 = vcmp.lt.s32.totalorder %v3941, 0
        %v4088 = vsub.s32 0, %v3941
        %v4089 = vsel %vm4087, %v4088, %v3941
        %v4090 = vmul.u32.u64.compose %v4089, 3817748708
        %v4091 = vextract.low.u32 %v4090
        %v4092 = vextract.high.u32 %v4090
        %v4093 = vshrl.u32 %v4092, 4
        %v4094 = vmul.u32 %v4093, 18
        %v4095 = vsub.s32 %v4089, %v4094
        %v4096 = vsub.s32 0, %v4095
        %v4097 = vsel %vm4087, %v4096, %v4095
        %vm4098 = vcmp.lt.s32.totalorder %v3942, 0
        %v4099 = vsub.s32 0, %v3942
        %v4100 = vsel %vm4098, %v4099, %v3942
        %v4101 = vmul.u32.u64.compose %v4100, 3817748708
        %v4102 = vextract.low.u32 %v4101
        %v4103 = vextract.high.u32 %v4101
        %v4104 = vshrl.u32 %v4103, 4
        %v4105 = vmul.u32 %v4104, 18
        %v4106 = vsub.s32 %v4100, %v4105
        %v4107 = vsub.s32 0, %v4106
        %v4108 = vsel %vm4098, %v4107, %v4106
        %vm4109 = vcmp.lt.s32.totalorder %v3943, 0
        %v4110 = vsub.s32 0, %v3943
        %v4111 = vsel %vm4109, %v4110, %v3943
        %v4112 = vmul.u32.u64.compose %v4111, 3817748708
        %v4113 = vextract.low.u32 %v4112
        %v4114 = vextract.high.u32 %v4112
        %v4115 = vshrl.u32 %v4114, 4
        %v4116 = vmul.u32 %v4115, 18
        %v4117 = vsub.s32 %v4111, %v4116
        %v4118 = vsub.s32 0, %v4117
        %v4119 = vsel %vm4109, %v4118, %v4117
        %vm4120 = vcmp.lt.s32.totalorder %v3944, 0
        %v4121 = vsub.s32 0, %v3944
        %v4122 = vsel %vm4120, %v4121, %v3944
        %v4123 = vmul.u32.u64.compose %v4122, 3817748708
        %v4124 = vextract.low.u32 %v4123
        %v4125 = vextract.high.u32 %v4123
        %v4126 = vshrl.u32 %v4125, 4
        %v4127 = vmul.u32 %v4126, 18
        %v4128 = vsub.s32 %v4122, %v4127
        %v4129 = vsub.s32 0, %v4128
        %v4130 = vsel %vm4120, %v4129, %v4128
        %vm4131 = vcmp.lt.s32.totalorder %v3945, 0
        %v4132 = vsub.s32 0, %v3945
        %v4133 = vsel %vm4131, %v4132, %v3945
        %v4134 = vmul.u32.u64.compose %v4133, 3817748708
        %v4135 = vextract.low.u32 %v4134
        %v4136 = vextract.high.u32 %v4134
        %v4137 = vshrl.u32 %v4136, 4
        %v4138 = vmul.u32 %v4137, 18
        %v4139 = vsub.s32 %v4133, %v4138
        %v4140 = vsub.s32 0, %v4139
        %v4141 = vsel %vm4131, %v4140, %v4139
        %vm4142 = vcmp.lt.s32.totalorder %v3946, 0
        %v4143 = vsub.s32 0, %v3946
        %v4144 = vsel %vm4142, %v4143, %v3946
        %v4145 = vmul.u32.u64.compose %v4144, 3817748708
        %v4146 = vextract.low.u32 %v4145
        %v4147 = vextract.high.u32 %v4145
        %v4148 = vshrl.u32 %v4147, 4
        %v4149 = vmul.u32 %v4148, 18
        %v4150 = vsub.s32 %v4144, %v4149
        %v4151 = vsub.s32 0, %v4150
        %v4152 = vsel %vm4142, %v4151, %v4150
        %vm4153 = vcmp.lt.s32.totalorder %v3947, 0
        %v4154 = vsub.s32 0, %v3947
        %v4155 = vsel %vm4153, %v4154, %v3947
        %v4156 = vmul.u32.u64.compose %v4155, 3817748708
        %v4157 = vextract.low.u32 %v4156
        %v4158 = vextract.high.u32 %v4156
        %v4159 = vshrl.u32 %v4158, 4
        %v4160 = vmul.u32 %v4159, 18
        %v4161 = vsub.s32 %v4155, %v4160
        %v4162 = vsub.s32 0, %v4161
        %v4163 = vsel %vm4153, %v4162, %v4161
        %vm4164 = vcmp.lt.s32.totalorder %v3948, 0
        %v4165 = vsub.s32 0, %v3948
        %v4166 = vsel %vm4164, %v4165, %v3948
        %v4167 = vmul.u32.u64.compose %v4166, 3817748708
        %v4168 = vextract.low.u32 %v4167
        %v4169 = vextract.high.u32 %v4167
        %v4170 = vshrl.u32 %v4169, 4
        %v4171 = vmul.u32 %v4170, 18
        %v4172 = vsub.s32 %v4166, %v4171
        %v4173 = vsub.s32 0, %v4172
        %v4174 = vsel %vm4164, %v4173, %v4172
        %vm4175 = vcmp.lt.s32.totalorder %v3949, 0
        %v4176 = vsub.s32 0, %v3949
        %v4177 = vsel %vm4175, %v4176, %v3949
        %v4178 = vmul.u32.u64.compose %v4177, 3817748708
        %v4179 = vextract.low.u32 %v4178
        %v4180 = vextract.high.u32 %v4178
        %v4181 = vshrl.u32 %v4180, 4
        %v4182 = vmul.u32 %v4181, 18
        %v4183 = vsub.s32 %v4177, %v4182
        %v4184 = vsub.s32 0, %v4183
        %v4185 = vsel %vm4175, %v4184, %v4183
        %vm4186 = vcmp.lt.s32.totalorder %v3950, 0
        %v4187 = vsub.s32 0, %v3950
        %v4188 = vsel %vm4186, %v4187, %v3950
        %v4189 = vmul.u32.u64.compose %v4188, 3817748708
        %v4190 = vextract.low.u32 %v4189
        %v4191 = vextract.high.u32 %v4189
        %v4192 = vshrl.u32 %v4191, 4
        %v4193 = vmul.u32 %v4192, 18
        %v4194 = vsub.s32 %v4188, %v4193
        %v4195 = vsub.s32 0, %v4194
        %v4196 = vsel %vm4186, %v4195, %v4194
        %vm4197 = vcmp.lt.s32.totalorder %v3951, 0
        %v4198 = vsub.s32 0, %v3951
        %v4199 = vsel %vm4197, %v4198, %v3951
        %v4200 = vmul.u32.u64.compose %v4199, 3817748708
        %v4201 = vextract.low.u32 %v4200
        %v4202 = vextract.high.u32 %v4200
        %v4203 = vshrl.u32 %v4202, 4
        %v4204 = vmul.u32 %v4203, 18
        %v4205 = vsub.s32 %v4199, %v4204
        %v4206 = vsub.s32 0, %v4205
        %v4207 = vsel %vm4197, %v4206, %v4205
        %vm4208 = vcmp.lt.s32.totalorder %v3952, 0
        %v4209 = vsub.s32 0, %v3952
        %v4210 = vsel %vm4208, %v4209, %v3952
        %v4211 = vmul.u32.u64.compose %v4210, 3817748708
        %v4212 = vextract.low.u32 %v4211
        %v4213 = vextract.high.u32 %v4211
        %v4214 = vshrl.u32 %v4213, 4
        %v4215 = vmul.u32 %v4214, 18
        %v4216 = vsub.s32 %v4210, %v4215
        %v4217 = vsub.s32 0, %v4216
        %v4218 = vsel %vm4208, %v4217, %v4216
        %vm4219 = vcmp.lt.s32.totalorder %v3953, 0
        %v4220 = vsub.s32 0, %v3953
        %v4221 = vsel %vm4219, %v4220, %v3953
        %v4222 = vmul.u32.u64.compose %v4221, 3817748708
        %v4223 = vextract.low.u32 %v4222
        %v4224 = vextract.high.u32 %v4222
        %v4225 = vshrl.u32 %v4224, 4
        %v4226 = vmul.u32 %v4225, 18
        %v4227 = vsub.s32 %v4221, %v4226
        %v4228 = vsub.s32 0, %v4227
        %v4229 = vsel %vm4219, %v4228, %v4227
        %vm4230 = vcmp.lt.s32.totalorder %v3954, 0
        %v4231 = vsub.s32 0, %v3954
        %v4232 = vsel %vm4230, %v4231, %v3954
        %v4233 = vmul.u32.u64.compose %v4232, 3817748708
        %v4234 = vextract.low.u32 %v4233
        %v4235 = vextract.high.u32 %v4233
        %v4236 = vshrl.u32 %v4235, 4
        %v4237 = vmul.u32 %v4236, 18
        %v4238 = vsub.s32 %v4232, %v4237
        %v4239 = vsub.s32 0, %v4238
        %v4240 = vsel %vm4230, %v4239, %v4238
        %vm4241 = vcmp.lt.s32.totalorder %v3955, 0
        %v4242 = vsub.s32 0, %v3955
        %v4243 = vsel %vm4241, %v4242, %v3955
        %v4244 = vmul.u32.u64.compose %v4243, 3817748708
        %v4245 = vextract.low.u32 %v4244
        %v4246 = vextract.high.u32 %v4244
        %v4247 = vshrl.u32 %v4246, 4
        %v4248 = vmul.u32 %v4247, 18
        %v4249 = vsub.s32 %v4243, %v4248
        %v4250 = vsub.s32 0, %v4249
        %v4251 = vsel %vm4241, %v4250, %v4249
        %vm4252 = vcmp.lt.s32.totalorder %v3956, 0
        %v4253 = vsub.s32 0, %v3956
        %v4254 = vsel %vm4252, %v4253, %v3956
        %v4255 = vmul.u32.u64.compose %v4254, 3817748708
        %v4256 = vextract.low.u32 %v4255
        %v4257 = vextract.high.u32 %v4255
        %v4258 = vshrl.u32 %v4257, 4
        %v4259 = vmul.u32 %v4258, 18
        %v4260 = vsub.s32 %v4254, %v4259
        %v4261 = vsub.s32 0, %v4260
        %v4262 = vsel %vm4252, %v4261, %v4260
        %vm4263 = vcmp.lt.s32.totalorder %v3957, 0
        %v4264 = vsub.s32 0, %v3957
        %v4265 = vsel %vm4263, %v4264, %v3957
        %v4266 = vmul.u32.u64.compose %v4265, 3817748708
        %v4267 = vextract.low.u32 %v4266
        %v4268 = vextract.high.u32 %v4266
        %v4269 = vshrl.u32 %v4268, 4
        %v4270 = vmul.u32 %v4269, 18
        %v4271 = vsub.s32 %v4265, %v4270
        %v4272 = vsub.s32 0, %v4271
        %v4273 = vsel %vm4263, %v4272, %v4271
        %vm4274 = vcmp.lt.s32.totalorder %v3958, 0
        %v4275 = vsub.s32 0, %v3958
        %v4276 = vsel %vm4274, %v4275, %v3958
        %v4277 = vmul.u32.u64.compose %v4276, 3817748708
        %v4278 = vextract.low.u32 %v4277
        %v4279 = vextract.high.u32 %v4277
        %v4280 = vshrl.u32 %v4279, 4
        %v4281 = vmul.u32 %v4280, 18
        %v4282 = vsub.s32 %v4276, %v4281
        %v4283 = vsub.s32 0, %v4282
        %v4284 = vsel %vm4274, %v4283, %v4282
        %vm4285 = vcmp.lt.s32.totalorder %v3959, 0
        %v4286 = vsub.s32 0, %v3959
        %v4287 = vsel %vm4285, %v4286, %v3959
        %v4288 = vmul.u32.u64.compose %v4287, 3817748708
        %v4289 = vextract.low.u32 %v4288
        %v4290 = vextract.high.u32 %v4288
        %v4291 = vshrl.u32 %v4290, 4
        %v4292 = vmul.u32 %v4291, 18
        %v4293 = vsub.s32 %v4287, %v4292
        %v4294 = vsub.s32 0, %v4293
        %v4295 = vsel %vm4285, %v4294, %v4293
        %vm4296 = vcmp.lt.s32.totalorder %v3960, 0
        %v4297 = vsub.s32 0, %v3960
        %v4298 = vsel %vm4296, %v4297, %v3960
        %v4299 = vmul.u32.u64.compose %v4298, 3817748708
        %v4300 = vextract.low.u32 %v4299
        %v4301 = vextract.high.u32 %v4299
        %v4302 = vshrl.u32 %v4301, 4
        %v4303 = vmul.u32 %v4302, 18
        %v4304 = vsub.s32 %v4298, %v4303
        %v4305 = vsub.s32 0, %v4304
        %v4306 = vsel %vm4296, %v4305, %v4304
        %vm4307 = vcmp.lt.s32.totalorder %v3961, 0
        %v4308 = vsub.s32 0, %v3961
        %v4309 = vsel %vm4307, %v4308, %v3961
        %v4310 = vmul.u32.u64.compose %v4309, 3817748708
        %v4311 = vextract.low.u32 %v4310
        %v4312 = vextract.high.u32 %v4310
        %v4313 = vshrl.u32 %v4312, 4
        %v4314 = vmul.u32 %v4313, 18
        %v4315 = vsub.s32 %v4309, %v4314
        %v4316 = vsub.s32 0, %v4315
        %v4317 = vsel %vm4307, %v4316, %v4315
        %vm4318 = vcmp.lt.s32.totalorder %v3962, 0
        %v4319 = vsub.s32 0, %v3962
        %v4320 = vsel %vm4318, %v4319, %v3962
        %v4321 = vmul.u32.u64.compose %v4320, 3817748708
        %v4322 = vextract.low.u32 %v4321
        %v4323 = vextract.high.u32 %v4321
        %v4324 = vshrl.u32 %v4323, 4
        %v4325 = vmul.u32 %v4324, 18
        %v4326 = vsub.s32 %v4320, %v4325
        %v4327 = vsub.s32 0, %v4326
        %v4328 = vsel %vm4318, %v4327, %v4326
        %vm4329 = vcmp.lt.s32.totalorder %v3963, 0
        %v4330 = vsub.s32 0, %v3963
        %v4331 = vsel %vm4329, %v4330, %v3963
        %v4332 = vmul.u32.u64.compose %v4331, 3817748708
        %v4333 = vextract.low.u32 %v4332
        %v4334 = vextract.high.u32 %v4332
        %v4335 = vshrl.u32 %v4334, 4
        %v4336 = vmul.u32 %v4335, 18
        %v4337 = vsub.s32 %v4331, %v4336
        %v4338 = vsub.s32 0, %v4337
        %v4339 = vsel %vm4329, %v4338, %v4337
        %vm4340 = vcmp.lt.s32.totalorder %v3964, 0
        %v4341 = vsub.s32 0, %v3964
        %v4342 = vsel %vm4340, %v4341, %v3964
        %v4343 = vmul.u32.u64.compose %v4342, 3817748708
        %v4344 = vextract.low.u32 %v4343
        %v4345 = vextract.high.u32 %v4343
        %v4346 = vshrl.u32 %v4345, 4
        %v4347 = vmul.u32 %v4346, 18
        %v4348 = vsub.s32 %v4342, %v4347
        %v4349 = vsub.s32 0, %v4348
        %v4350 = vsel %vm4340, %v4349, %v4348
        %vm4351 = vcmp.lt.s32.totalorder %v3965, 0
        %v4352 = vsub.s32 0, %v3965
        %v4353 = vsel %vm4351, %v4352, %v3965
        %v4354 = vmul.u32.u64.compose %v4353, 3817748708
        %v4355 = vextract.low.u32 %v4354
        %v4356 = vextract.high.u32 %v4354
        %v4357 = vshrl.u32 %v4356, 4
        %v4358 = vmul.u32 %v4357, 18
        %v4359 = vsub.s32 %v4353, %v4358
        %v4360 = vsub.s32 0, %v4359
        %v4361 = vsel %vm4351, %v4360, %v4359
        %vm4362 = vcmp.ne.s32.totalorder %v3976, 0
        %vm4363 = vcmp.ne.s32.totalorder %v3987, 0
        %vm4364 = vcmp.ne.s32.totalorder %v3998, 0
        %vm4365 = vcmp.ne.s32.totalorder %v4009, 0
        %vm4366 = vcmp.ne.s32.totalorder %v4020, 0
        %vm4367 = vcmp.ne.s32.totalorder %v4031, 0
        %vm4368 = vcmp.ne.s32.totalorder %v4042, 0
        %vm4369 = vcmp.ne.s32.totalorder %v4053, 0
        %vm4370 = vcmp.ne.s32.totalorder %v4064, 0
        %vm4371 = vcmp.ne.s32.totalorder %v4075, 0
        %vm4372 = vcmp.ne.s32.totalorder %v4086, 0
        %vm4373 = vcmp.ne.s32.totalorder %v4097, 0
        %vm4374 = vcmp.ne.s32.totalorder %v4108, 0
        %vm4375 = vcmp.ne.s32.totalorder %v4119, 0
        %vm4376 = vcmp.ne.s32.totalorder %v4130, 0
        %vm4377 = vcmp.ne.s32.totalorder %v4141, 0
        %vm4378 = vcmp.ne.s32.totalorder %v4152, 0
        %vm4379 = vcmp.ne.s32.totalorder %v4163, 0
        %vm4380 = vcmp.ne.s32.totalorder %v4174, 0
        %vm4381 = vcmp.ne.s32.totalorder %v4185, 0
        %vm4382 = vcmp.ne.s32.totalorder %v4196, 0
        %vm4383 = vcmp.ne.s32.totalorder %v4207, 0
        %vm4384 = vcmp.ne.s32.totalorder %v4218, 0
        %vm4385 = vcmp.ne.s32.totalorder %v4229, 0
        %vm4386 = vcmp.ne.s32.totalorder %v4240, 0
        %vm4387 = vcmp.ne.s32.totalorder %v4251, 0
        %vm4388 = vcmp.ne.s32.totalorder %v4262, 0
        %vm4389 = vcmp.ne.s32.totalorder %v4273, 0
        %vm4390 = vcmp.ne.s32.totalorder %v4284, 0
        %vm4391 = vcmp.ne.s32.totalorder %v4295, 0
        %vm4392 = vcmp.ne.s32.totalorder %v4306, 0
        %vm4393 = vcmp.ne.s32.totalorder %v4317, 0
        %vm4394 = vcmp.ne.s32.totalorder %v4328, 0
        %vm4395 = vcmp.ne.s32.totalorder %v4339, 0
        %vm4396 = vcmp.ne.s32.totalorder %v4350, 0
        %vm4397 = vcmp.ne.s32.totalorder %v4361, 0
        %vm4398 = vcmp.lt.s32.totalorder %v3976, 0
        %vm4399 = vcmp.lt.s32.totalorder %v3987, 0
        %vm4400 = vcmp.lt.s32.totalorder %v3998, 0
        %vm4401 = vcmp.lt.s32.totalorder %v4009, 0
        %vm4402 = vcmp.lt.s32.totalorder %v4020, 0
        %vm4403 = vcmp.lt.s32.totalorder %v4031, 0
        %vm4404 = vcmp.lt.s32.totalorder %v4042, 0
        %vm4405 = vcmp.lt.s32.totalorder %v4053, 0
        %vm4406 = vcmp.lt.s32.totalorder %v4064, 0
        %vm4407 = vcmp.lt.s32.totalorder %v4075, 0
        %vm4408 = vcmp.lt.s32.totalorder %v4086, 0
        %vm4409 = vcmp.lt.s32.totalorder %v4097, 0
        %vm4410 = vcmp.lt.s32.totalorder %v4108, 0
        %vm4411 = vcmp.lt.s32.totalorder %v4119, 0
        %vm4412 = vcmp.lt.s32.totalorder %v4130, 0
        %vm4413 = vcmp.lt.s32.totalorder %v4141, 0
        %vm4414 = vcmp.lt.s32.totalorder %v4152, 0
        %vm4415 = vcmp.lt.s32.totalorder %v4163, 0
        %vm4416 = vcmp.lt.s32.totalorder %v4174, 0
        %vm4417 = vcmp.lt.s32.totalorder %v4185, 0
        %vm4418 = vcmp.lt.s32.totalorder %v4196, 0
        %vm4419 = vcmp.lt.s32.totalorder %v4207, 0
        %vm4420 = vcmp.lt.s32.totalorder %v4218, 0
        %vm4421 = vcmp.lt.s32.totalorder %v4229, 0
        %vm4422 = vcmp.lt.s32.totalorder %v4240, 0
        %vm4423 = vcmp.lt.s32.totalorder %v4251, 0
        %vm4424 = vcmp.lt.s32.totalorder %v4262, 0
        %vm4425 = vcmp.lt.s32.totalorder %v4273, 0
        %vm4426 = vcmp.lt.s32.totalorder %v4284, 0
        %vm4427 = vcmp.lt.s32.totalorder %v4295, 0
        %vm4428 = vcmp.lt.s32.totalorder %v4306, 0
        %vm4429 = vcmp.lt.s32.totalorder %v4317, 0
        %vm4430 = vcmp.lt.s32.totalorder %v4328, 0
        %vm4431 = vcmp.lt.s32.totalorder %v4339, 0
        %vm4432 = vcmp.lt.s32.totalorder %v4350, 0
        %vm4433 = vcmp.lt.s32.totalorder %v4361, 0
        %vm4434 = vmand %vm4398, %vm4362
        %vm4435 = vmand %vm4399, %vm4363
        %vm4436 = vmand %vm4400, %vm4364
        %vm4437 = vmand %vm4401, %vm4365
        %vm4438 = vmand %vm4402, %vm4366
        %vm4439 = vmand %vm4403, %vm4367
        %vm4440 = vmand %vm4404, %vm4368
        %vm4441 = vmand %vm4405, %vm4369
        %vm4442 = vmand %vm4406, %vm4370
        %vm4443 = vmand %vm4407, %vm4371
        %vm4444 = vmand %vm4408, %vm4372
        %vm4445 = vmand %vm4409, %vm4373
        %vm4446 = vmand %vm4410, %vm4374
        %vm4447 = vmand %vm4411, %vm4375
        %vm4448 = vmand %vm4412, %vm4376
        %vm4449 = vmand %vm4413, %vm4377
        %vm4450 = vmand %vm4414, %vm4378
        %vm4451 = vmand %vm4415, %vm4379
        %vm4452 = vmand %vm4416, %vm4380
        %vm4453 = vmand %vm4417, %vm4381
        %vm4454 = vmand %vm4418, %vm4382
        %vm4455 = vmand %vm4419, %vm4383
        %vm4456 = vmand %vm4420, %vm4384
        %vm4457 = vmand %vm4421, %vm4385
        %vm4458 = vmand %vm4422, %vm4386
        %vm4459 = vmand %vm4423, %vm4387
        %vm4460 = vmand %vm4424, %vm4388
        %vm4461 = vmand %vm4425, %vm4389
        %vm4462 = vmand %vm4426, %vm4390
        %vm4463 = vmand %vm4427, %vm4391
        %vm4464 = vmand %vm4428, %vm4392
        %vm4465 = vmand %vm4429, %vm4393
        %vm4466 = vmand %vm4430, %vm4394
        %vm4467 = vmand %vm4431, %vm4395
        %vm4468 = vmand %vm4432, %vm4396
        %vm4469 = vmand %vm4433, %vm4397
        %v4470 = vadd.s32 %v3976, 18
        %v4471 = vadd.s32 %v3987, 18
        %v4472 = vadd.s32 %v3998, 18
        %v4473 = vadd.s32 %v4009, 18
        %v4474 = vadd.s32 %v4020, 18
        %v4475 = vadd.s32 %v4031, 18
        %v4476 = vadd.s32 %v4042, 18
        %v4477 = vadd.s32 %v4053, 18
        %v4478 = vadd.s32 %v4064, 18
        %v4479 = vadd.s32 %v4075, 18
        %v4480 = vadd.s32 %v4086, 18
        %v4481 = vadd.s32 %v4097, 18
        %v4482 = vadd.s32 %v4108, 18
        %v4483 = vadd.s32 %v4119, 18
        %v4484 = vadd.s32 %v4130, 18
        %v4485 = vadd.s32 %v4141, 18
        %v4486 = vadd.s32 %v4152, 18
        %v4487 = vadd.s32 %v4163, 18
        %v4488 = vadd.s32 %v4174, 18
        %v4489 = vadd.s32 %v4185, 18
        %v4490 = vadd.s32 %v4196, 18
        %v4491 = vadd.s32 %v4207, 18
        %v4492 = vadd.s32 %v4218, 18
        %v4493 = vadd.s32 %v4229, 18
        %v4494 = vadd.s32 %v4240, 18
        %v4495 = vadd.s32 %v4251, 18
        %v4496 = vadd.s32 %v4262, 18
        %v4497 = vadd.s32 %v4273, 18
        %v4498 = vadd.s32 %v4284, 18
        %v4499 = vadd.s32 %v4295, 18
        %v4500 = vadd.s32 %v4306, 18
        %v4501 = vadd.s32 %v4317, 18
        %v4502 = vadd.s32 %v4328, 18
        %v4503 = vadd.s32 %v4339, 18
        %v4504 = vadd.s32 %v4350, 18
        %v4505 = vadd.s32 %v4361, 18
        %v4506 = vsel %vm4434, %v4470, %v3976
        %v4507 = vsel %vm4435, %v4471, %v3987
        %v4508 = vsel %vm4436, %v4472, %v3998
        %v4509 = vsel %vm4437, %v4473, %v4009
        %v4510 = vsel %vm4438, %v4474, %v4020
        %v4511 = vsel %vm4439, %v4475, %v4031
        %v4512 = vsel %vm4440, %v4476, %v4042
        %v4513 = vsel %vm4441, %v4477, %v4053
        %v4514 = vsel %vm4442, %v4478, %v4064
        %v4515 = vsel %vm4443, %v4479, %v4075
        %v4516 = vsel %vm4444, %v4480, %v4086
        %v4517 = vsel %vm4445, %v4481, %v4097
        %v4518 = vsel %vm4446, %v4482, %v4108
        %v4519 = vsel %vm4447, %v4483, %v4119
        %v4520 = vsel %vm4448, %v4484, %v4130
        %v4521 = vsel %vm4449, %v4485, %v4141
        %v4522 = vsel %vm4450, %v4486, %v4152
        %v4523 = vsel %vm4451, %v4487, %v4163
        %v4524 = vsel %vm4452, %v4488, %v4174
        %v4525 = vsel %vm4453, %v4489, %v4185
        %v4526 = vsel %vm4454, %v4490, %v4196
        %v4527 = vsel %vm4455, %v4491, %v4207
        %v4528 = vsel %vm4456, %v4492, %v4218
        %v4529 = vsel %vm4457, %v4493, %v4229
        %v4530 = vsel %vm4458, %v4494, %v4240
        %v4531 = vsel %vm4459, %v4495, %v4251
        %v4532 = vsel %vm4460, %v4496, %v4262
        %v4533 = vsel %vm4461, %v4497, %v4273
        %v4534 = vsel %vm4462, %v4498, %v4284
        %v4535 = vsel %vm4463, %v4499, %v4295
        %v4536 = vsel %vm4464, %v4500, %v4306
        %v4537 = vsel %vm4465, %v4501, %v4317
        %v4538 = vsel %vm4466, %v4502, %v4328
        %v4539 = vsel %vm4467, %v4503, %v4339
        %v4540 = vsel %vm4468, %v4504, %v4350
        %v4541 = vsel %vm4469, %v4505, %v4361
        %vm4542 = vcmp.lt.s32.totalorder %v4506, 16
        %vm4543 = vcmp.lt.s32.totalorder %v4507, 16
        %vm4544 = vcmp.lt.s32.totalorder %v4508, 16
        %vm4545 = vcmp.lt.s32.totalorder %v4509, 16
        %vm4546 = vcmp.lt.s32.totalorder %v4510, 16
        %vm4547 = vcmp.lt.s32.totalorder %v4511, 16
        %vm4548 = vcmp.lt.s32.totalorder %v4512, 16
        %vm4549 = vcmp.lt.s32.totalorder %v4513, 16
        %vm4550 = vcmp.lt.s32.totalorder %v4514, 16
        %vm4551 = vcmp.lt.s32.totalorder %v4515, 16
        %vm4552 = vcmp.lt.s32.totalorder %v4516, 16
        %vm4553 = vcmp.lt.s32.totalorder %v4517, 16
        %vm4554 = vcmp.lt.s32.totalorder %v4518, 16
        %vm4555 = vcmp.lt.s32.totalorder %v4519, 16
        %vm4556 = vcmp.lt.s32.totalorder %v4520, 16
        %vm4557 = vcmp.lt.s32.totalorder %v4521, 16
        %vm4558 = vcmp.lt.s32.totalorder %v4522, 16
        %vm4559 = vcmp.lt.s32.totalorder %v4523, 16
        %vm4560 = vcmp.lt.s32.totalorder %v4524, 16
        %vm4561 = vcmp.lt.s32.totalorder %v4525, 16
        %vm4562 = vcmp.lt.s32.totalorder %v4526, 16
        %vm4563 = vcmp.lt.s32.totalorder %v4527, 16
        %vm4564 = vcmp.lt.s32.totalorder %v4528, 16
        %vm4565 = vcmp.lt.s32.totalorder %v4529, 16
        %vm4566 = vcmp.lt.s32.totalorder %v4530, 16
        %vm4567 = vcmp.lt.s32.totalorder %v4531, 16
        %vm4568 = vcmp.lt.s32.totalorder %v4532, 16
        %vm4569 = vcmp.lt.s32.totalorder %v4533, 16
        %vm4570 = vcmp.lt.s32.totalorder %v4534, 16
        %vm4571 = vcmp.lt.s32.totalorder %v4535, 16
        %vm4572 = vcmp.lt.s32.totalorder %v4536, 16
        %vm4573 = vcmp.lt.s32.totalorder %v4537, 16
        %vm4574 = vcmp.lt.s32.totalorder %v4538, 16
        %vm4575 = vcmp.lt.s32.totalorder %v4539, 16
        %vm4576 = vcmp.lt.s32.totalorder %v4540, 16
        %vm4577 = vcmp.lt.s32.totalorder %v4541, 16
        %v4578 = vsel %vm4542, 1, 0
        %v4579 = vsel %vm4543, 1, 0
        %v4580 = vsel %vm4544, 1, 0
        %v4581 = vsel %vm4545, 1, 0
        %v4582 = vsel %vm4546, 1, 0
        %v4583 = vsel %vm4547, 1, 0
        %v4584 = vsel %vm4548, 1, 0
        %v4585 = vsel %vm4549, 1, 0
        %v4586 = vsel %vm4550, 1, 0
        %v4587 = vsel %vm4551, 1, 0
        %v4588 = vsel %vm4552, 1, 0
        %v4589 = vsel %vm4553, 1, 0
        %v4590 = vsel %vm4554, 1, 0
        %v4591 = vsel %vm4555, 1, 0
        %v4592 = vsel %vm4556, 1, 0
        %v4593 = vsel %vm4557, 1, 0
        %v4594 = vsel %vm4558, 1, 0
        %v4595 = vsel %vm4559, 1, 0
        %v4596 = vsel %vm4560, 1, 0
        %v4597 = vsel %vm4561, 1, 0
        %v4598 = vsel %vm4562, 1, 0
        %v4599 = vsel %vm4563, 1, 0
        %v4600 = vsel %vm4564, 1, 0
        %v4601 = vsel %vm4565, 1, 0
        %v4602 = vsel %vm4566, 1, 0
        %v4603 = vsel %vm4567, 1, 0
        %v4604 = vsel %vm4568, 1, 0
        %v4605 = vsel %vm4569, 1, 0
        %v4606 = vsel %vm4570, 1, 0
        %v4607 = vsel %vm4571, 1, 0
        %v4608 = vsel %vm4572, 1, 0
        %v4609 = vsel %vm4573, 1, 0
        %v4610 = vsel %vm4574, 1, 0
        %v4611 = vsel %vm4575, 1, 0
        %v4612 = vsel %vm4576, 1, 0
        %v4613 = vsel %vm4577, 1, 0
        %vm4614 = vcmp.eq.s32.totalorder %v4578, 1
        %vm4615 = vcmp.eq.s32.totalorder %v4579, 1
        %vm4616 = vcmp.eq.s32.totalorder %v4580, 1
        %vm4617 = vcmp.eq.s32.totalorder %v4581, 1
        %vm4618 = vcmp.eq.s32.totalorder %v4582, 1
        %vm4619 = vcmp.eq.s32.totalorder %v4583, 1
        %vm4620 = vcmp.eq.s32.totalorder %v4584, 1
        %vm4621 = vcmp.eq.s32.totalorder %v4585, 1
        %vm4622 = vcmp.eq.s32.totalorder %v4586, 1
        %vm4623 = vcmp.eq.s32.totalorder %v4587, 1
        %vm4624 = vcmp.eq.s32.totalorder %v4588, 1
        %vm4625 = vcmp.eq.s32.totalorder %v4589, 1
        %vm4626 = vcmp.eq.s32.totalorder %v4590, 1
        %vm4627 = vcmp.eq.s32.totalorder %v4591, 1
        %vm4628 = vcmp.eq.s32.totalorder %v4592, 1
        %vm4629 = vcmp.eq.s32.totalorder %v4593, 1
        %vm4630 = vcmp.eq.s32.totalorder %v4594, 1
        %vm4631 = vcmp.eq.s32.totalorder %v4595, 1
        %vm4632 = vcmp.eq.s32.totalorder %v4596, 1
        %vm4633 = vcmp.eq.s32.totalorder %v4597, 1
        %vm4634 = vcmp.eq.s32.totalorder %v4598, 1
        %vm4635 = vcmp.eq.s32.totalorder %v4599, 1
        %vm4636 = vcmp.eq.s32.totalorder %v4600, 1
        %vm4637 = vcmp.eq.s32.totalorder %v4601, 1
        %vm4638 = vcmp.eq.s32.totalorder %v4602, 1
        %vm4639 = vcmp.eq.s32.totalorder %v4603, 1
        %vm4640 = vcmp.eq.s32.totalorder %v4604, 1
        %vm4641 = vcmp.eq.s32.totalorder %v4605, 1
        %vm4642 = vcmp.eq.s32.totalorder %v4606, 1
        %vm4643 = vcmp.eq.s32.totalorder %v4607, 1
        %vm4644 = vcmp.eq.s32.totalorder %v4608, 1
        %vm4645 = vcmp.eq.s32.totalorder %v4609, 1
        %vm4646 = vcmp.eq.s32.totalorder %v4610, 1
        %vm4647 = vcmp.eq.s32.totalorder %v4611, 1
        %vm4648 = vcmp.eq.s32.totalorder %v4612, 1
        %vm4649 = vcmp.eq.s32.totalorder %v4613, 1
        %v4650 = vsel %vm4614, %v3893, 0.0
        %v4651 = vsel %vm4615, %v3894, 0.0
        %v4652 = vsel %vm4616, %v3895, 0.0
        %v4653 = vsel %vm4617, %v3896, 0.0
        %v4654 = vsel %vm4618, %v3897, 0.0
        %v4655 = vsel %vm4619, %v3898, 0.0
        %v4656 = vsel %vm4620, %v3899, 0.0
        %v4657 = vsel %vm4621, %v3900, 0.0
        %v4658 = vsel %vm4622, %v3901, 0.0
        %v4659 = vsel %vm4623, %v3902, 0.0
        %v4660 = vsel %vm4624, %v3903, 0.0
        %v4661 = vsel %vm4625, %v3904, 0.0
        %v4662 = vsel %vm4626, %v3905, 0.0
        %v4663 = vsel %vm4627, %v3906, 0.0
        %v4664 = vsel %vm4628, %v3907, 0.0
        %v4665 = vsel %vm4629, %v3908, 0.0
        %v4666 = vsel %vm4630, %v3909, 0.0
        %v4667 = vsel %vm4631, %v3910, 0.0
        %v4668 = vsel %vm4632, %v3911, 0.0
        %v4669 = vsel %vm4633, %v3912, 0.0
        %v4670 = vsel %vm4634, %v3913, 0.0
        %v4671 = vsel %vm4635, %v3914, 0.0
        %v4672 = vsel %vm4636, %v3915, 0.0
        %v4673 = vsel %vm4637, %v3916, 0.0
        %v4674 = vsel %vm4638, %v3917, 0.0
        %v4675 = vsel %vm4639, %v3918, 0.0
        %v4676 = vsel %vm4640, %v3919, 0.0
        %v4677 = vsel %vm4641, %v3920, 0.0
        %v4678 = vsel %vm4642, %v3921, 0.0
        %v4679 = vsel %vm4643, %v3922, 0.0
        %v4680 = vsel %vm4644, %v3923, 0.0
        %v4681 = vsel %vm4645, %v3924, 0.0
        %v4682 = vsel %vm4646, %v3925, 0.0
        %v4683 = vsel %vm4647, %v3926, 0.0
        %v4684 = vsel %vm4648, %v3927, 0.0
        %v4685 = vsel %vm4649, %v3928, 0.0
        %v4686 = vpack.c.bf16 %v4651, %v4650
        %v4687 = vpack.c.bf16 %v4653, %v4652
        %v4688 = vpack.c.bf16 %v4655, %v4654
        %v4689 = vpack.c.bf16 %v4657, %v4656
        %v4690 = vpack.c.bf16 %v4659, %v4658
        %v4691 = vpack.c.bf16 %v4661, %v4660
        %v4692 = vpack.c.bf16 %v4663, %v4662
        %v4693 = vpack.c.bf16 %v4665, %v4664
        %v4694 = vpack.c.bf16 %v4667, %v4666
        %v4695 = vpack.c.bf16 %v4669, %v4668
        %v4696 = vpack.c.bf16 %v4671, %v4670
        %v4697 = vpack.c.bf16 %v4673, %v4672
        %v4698 = vpack.c.bf16 %v4675, %v4674
        %v4699 = vpack.c.bf16 %v4677, %v4676
        %v4700 = vpack.c.bf16 %v4679, %v4678
        %v4701 = vpack.c.bf16 %v4681, %v4680
        %v4702 = vpack.c.bf16 %v4683, %v4682
        %v4703 = vpack.c.bf16 %v4685, %v4684
        %v4722 = vunpack.c.l.b16 %v4686
        %v4723 = vunpack.c.h.b16 %v4686
        %v4724 = vunpack.c.l.b16 %v4687
        %v4725 = vunpack.c.h.b16 %v4687
        %v4726 = vunpack.c.l.b16 %v4688
        %v4727 = vunpack.c.h.b16 %v4688
        %v4728 = vunpack.c.l.b16 %v4689
        %v4729 = vunpack.c.h.b16 %v4689
        %v4730 = vunpack.c.l.b16 %v4690
        %v4731 = vunpack.c.h.b16 %v4690
        %v4732 = vunpack.c.l.b16 %v4691
        %v4733 = vunpack.c.h.b16 %v4691
        %v4734 = vunpack.c.l.b16 %v4692
        %v4735 = vunpack.c.h.b16 %v4692
        %v4736 = vunpack.c.l.b16 %v4693
        %v4737 = vunpack.c.h.b16 %v4693
        %v4738 = vunpack.c.l.b16 %v4694
        %v4739 = vunpack.c.h.b16 %v4694
        %v4740 = vunpack.c.l.b16 %v4695
        %v4741 = vunpack.c.h.b16 %v4695
        %v4742 = vunpack.c.l.b16 %v4696
        %v4743 = vunpack.c.h.b16 %v4696
        %v4744 = vunpack.c.l.b16 %v4697
        %v4745 = vunpack.c.h.b16 %v4697
        %v4746 = vunpack.c.l.b16 %v4698
        %v4747 = vunpack.c.h.b16 %v4698
        %v4748 = vunpack.c.l.b16 %v4699
        %v4749 = vunpack.c.h.b16 %v4699
        %v4750 = vunpack.c.l.b16 %v4700
        %v4751 = vunpack.c.h.b16 %v4700
        %v4752 = vunpack.c.l.b16 %v4701
        %v4753 = vunpack.c.h.b16 %v4701
        %v4754 = vunpack.c.l.b16 %v4702
        %v4755 = vunpack.c.h.b16 %v4702
        %v4756 = vunpack.c.l.b16 %v4703
        %v4757 = vunpack.c.h.b16 %v4703
        %v4758 = vpack.c.b16 %v4722, %v4722
        %v4759 = vpack.c.b16 %v4723, %v4723
        %v4760 = vpack.c.b16 %v4724, %v4724
        %v4761 = vpack.c.b16 %v4725, %v4725
        %v4762 = vpack.c.b16 %v4726, %v4726
        %v4763 = vpack.c.b16 %v4727, %v4727
        %v4764 = vpack.c.b16 %v4728, %v4728
        %v4765 = vpack.c.b16 %v4729, %v4729
        %v4766 = vpack.c.b16 %v4730, %v4730
        %v4767 = vpack.c.b16 %v4731, %v4731
        %v4768 = vpack.c.b16 %v4732, %v4732
        %v4769 = vpack.c.b16 %v4733, %v4733
        %v4770 = vpack.c.b16 %v4734, %v4734
        %v4771 = vpack.c.b16 %v4735, %v4735
        %v4772 = vpack.c.b16 %v4736, %v4736
        %v4773 = vpack.c.b16 %v4737, %v4737
        %v4774 = vpack.c.b16 %v4738, %v4738
        %v4775 = vpack.c.b16 %v4739, %v4739
        %v4776 = vpack.c.b16 %v4740, %v4740
        %v4777 = vpack.c.b16 %v4741, %v4741
        %v4778 = vpack.c.b16 %v4742, %v4742
        %v4779 = vpack.c.b16 %v4743, %v4743
        %v4780 = vpack.c.b16 %v4744, %v4744
        %v4781 = vpack.c.b16 %v4745, %v4745
        %v4782 = vpack.c.b16 %v4746, %v4746
        %v4783 = vpack.c.b16 %v4747, %v4747
        %v4784 = vpack.c.b16 %v4748, %v4748
        %v4785 = vpack.c.b16 %v4749, %v4749
        %v4786 = vpack.c.b16 %v4750, %v4750
        %v4787 = vpack.c.b16 %v4751, %v4751
        %v4788 = vpack.c.b16 %v4752, %v4752
        %v4789 = vpack.c.b16 %v4753, %v4753
        %v4790 = vpack.c.b16 %v4754, %v4754
        %v4791 = vpack.c.b16 %v4755, %v4755
        %v4792 = vpack.c.b16 %v4756, %v4756
        %v4793 = vpack.c.b16 %v4757, %v4757
        %4830 = vst [vmem:[%s163] sm:$0xf] %v4758
        %4831 = vst [vmem:[%s163 + $0x4] sm:$0xf] %v4759
        %4832 = vst [vmem:[%s163 + $0x8] sm:$0xf] %v4760
        %4833 = vst [vmem:[%s163 + $0xc] sm:$0xf] %v4761
        %4834 = vst [vmem:[%s163 + $0x10] sm:$0xf] %v4762
        %4835 = vst [vmem:[%s163 + $0x14] sm:$0xf] %v4763
        %4836 = vst [vmem:[%s163 + $0x18] sm:$0xf] %v4764
        %4837 = vst [vmem:[%s163 + $0x1c] sm:$0xf] %v4765
        %4838 = vst [vmem:[%s163 + $0x20] sm:$0xf] %v4766
        %4839 = vst [vmem:[%s163 + $0x24] sm:$0xf] %v4767
        %4840 = vst [vmem:[%s163 + $0x28] sm:$0xf] %v4768
        %4841 = vst [vmem:[%s163 + $0x2c] sm:$0xf] %v4769
        %4842 = vst [vmem:[%s163 + $0x30] sm:$0xf] %v4770
        %4843 = vst [vmem:[%s163 + $0x34] sm:$0xf] %v4771
        %4844 = vst [vmem:[%s163 + $0x38] sm:$0xf] %v4772
        %4845 = vst [vmem:[%s163 + $0x3c] sm:$0xf] %v4773
        %4846 = vst [vmem:[%s163 + $0x40] sm:$0xf] %v4774
        %4847 = vst [vmem:[%s163 + $0x44] sm:$0xf] %v4775
        %4848 = vst [vmem:[%s163 + $0x48] sm:$0xf] %v4776
        %4849 = vst [vmem:[%s163 + $0x4c] sm:$0xf] %v4777
        %4850 = vst [vmem:[%s163 + $0x50] sm:$0xf] %v4778
        %4851 = vst [vmem:[%s163 + $0x54] sm:$0xf] %v4779
        %4852 = vst [vmem:[%s163 + $0x58] sm:$0xf] %v4780
        %4853 = vst [vmem:[%s163 + $0x5c] sm:$0xf] %v4781
        %4854 = vst [vmem:[%s163 + $0x60] sm:$0xf] %v4782
        %4855 = vst [vmem:[%s163 + $0x64] sm:$0xf] %v4783
        %4856 = vst [vmem:[%s163 + $0x68] sm:$0xf] %v4784
        %4857 = vst [vmem:[%s163 + $0x6c] sm:$0xf] %v4785
        %4858 = vst [vmem:[%s163 + $0x70] sm:$0xf] %v4786
        %4859 = vst [vmem:[%s163 + $0x74] sm:$0xf] %v4787
        %4860 = vst [vmem:[%s163 + $0x78] sm:$0xf] %v4788
        %4861 = vst [vmem:[%s163 + $0x7c] sm:$0xf] %v4789
        %4862 = vst [vmem:[%s163 + $0x80] sm:$0xf] %v4790
        %4863 = vst [vmem:[%s163 + $0x84] sm:$0xf] %v4791
        %4864 = vst [vmem:[%s163 + $0x88] sm:$0xf] %v4792
        %4865 = vst [vmem:[%s163 + $0x8c] sm:$0xf] %v4793
        %s4866 = sand.u32 %s93, 1
        %s4867 = scalar_lea.sflag [#allocation3], %s4866
        %s4868 = sand.u32 %s93, 1
        %s4869 = smul.addr %s4868, 144
        %s4870 = scalar_lea.vmem [#allocation2], %s4869
        // Predicated region
        $region33: #{tpu_custom_call.1} parent=31 // pred_check
          %p4871 = pneg %p103
        $region34: #{tpu_custom_call.1} parent=31 // pred_check_branch
          %4873 = sbr.rel (%p4871) target = $region36
        $region35: #{tpu_custom_call.1} parent=31 // pred_region
          %s4875 = ssub.s32 2304, 2304
          %4876 = vsyncadd %s4867, %s4875
          %s4877 = smul.addr %s17, 36
          %s4878 = smul.addr %s4877, 64
          %s4879 = scalar_lea.hbm %s3, %s4878
          %s4880 = sshll.u32 %s4870, 4
          %s4881 = int_to_ptr.vmem [resolvable:$true] %s4880
          %4886 = dma.vmem_to_hbm [thread:$0]  %s4881, 2304, %s4879, %s4867, 64, 64, 4
        $region36: #{tpu_custom_call.1} parent=31 // pred_fallthru
          _
      $region32: #{tpu_custom_call.1} parent=5 // pred_fallthru
        _
      %p4887 = scmp.le.s32.totalorder 2, %s12
      // Predicated region
      $region37: #{tpu_custom_call.1} parent=5 // pred_check
        %p4888 = pneg %p4887
      $region38: #{tpu_custom_call.1} parent=5 // pred_check_branch
        %4890 = sbr.rel (%p4888) target = $region40
      $region39: #{tpu_custom_call.1} parent=5 // pred_region
        %s4891 = ssub.s32 %s12, 2
        // Predicated region
        $region41: #{tpu_custom_call.1} parent=39 // pred_check
          %p4892 = pneg %p109
        $region42: #{tpu_custom_call.1} parent=39 // pred_check_branch
          %4894 = sbr.rel (%p4892) target = $region44
        $region43: #{tpu_custom_call.1} parent=39 // pred_region
          %s4895 = sand.u32 %s94, 1
          %s4896 = scalar_lea.sflag [#allocation3], %s4895
          %s4897 = sand.u32 %s94, 1
          %s4898 = smul.addr %s4897, 144
          %s4899 = scalar_lea.vmem [#allocation2], %s4898
          %4900 = dma.done %s4896, 2304
        $region44: #{tpu_custom_call.1} parent=39 // pred_fallthru
          _
      $region40: #{tpu_custom_call.1} parent=5 // pred_fallthru
        _
    $region6: #{tpu_custom_call.1} parent=1 // loop_footer
      %s16 = sadd.s32 1, %s12
    $region7: #{tpu_custom_call.1} parent=1 // loop_footer_branch
      %11 = sbr.rel target = $region3
    $region8: #{tpu_custom_call.1} parent=1 // loop_exit
      _
    %4901 = vsyncpa [#allocation3], 1
    %s4902 = scalar_lea.sflag [#allocation3], 1
    %4903 = vsyncpa %s4902, 1

</llo_original>
